<compile_context>
chip_gen: v7x
topology: tpu7x:2x2x1
jax: 0.10.0
libtpu: 0.0.40
codegen_flags: <defaults>
</compile_context>

<pallas_src>
import jax
import jax.numpy as jnp
from jax import lax
from jax.experimental import pallas as pl
from jax.experimental.pallas import tpu as pltpu


def _round_up(x, m):
    return ((x + m - 1) // m) * m


# ---------------------------------------------------------------------------
# Fused kernel: all GRU layers + dense projection for one batch block.
# ---------------------------------------------------------------------------
def _make_gru4rec_kernel(T, Bb, Hp, H_out, L, unroll):
    def kernel(x_ref, wih_ref, whh_ref, wd_ref, bd_ref, out_ref, gx_ref,
               *seq_scratch):
        # x_ref:   (T, Bb, Hp)    time-major, lane-padded input block
        # wih_ref: (L, Hp, 3*Hp)  per-layer input->hidden  [W_ir|W_iz|W_in]^T
        # whh_ref: (L, Hp, 3*Hp)  per-layer hidden->hidden [W_hr|W_hz|W_hn]^T
        # wd_ref:  (Hp, Hp)       dense W^T (zero-padded)
        # bd_ref:  (1, Hp)        dense bias (f32, zero-padded)
        # out_ref: (T, Bb, H_out)
        # gx_ref:  (T, Bb, 3*Hp)  f32 scratch: input-projection pre-activations
        # seq_scratch: [(T, Bb, Hp)] inter-layer activations (only if L > 1)
        seq_ref = seq_scratch[0] if seq_scratch else None
        f32 = jnp.float32
        mm_dt = wih_ref.dtype            # bf16 params -> bf16 MXU (f32 accum)

        wd = wd_ref[...]                 # resident, loaded once
        bd = bd_ref[...].astype(f32)

        for layer in range(L):           # static fused layer loop
            last = layer == L - 1

            # Input->hidden projection for ALL timesteps at once: one
            # lane-dense (T*Bb, Hp) x (Hp, 3*Hp) matmul, stored to VMEM scratch.
            if layer == 0:
                x_flat = x_ref[...].reshape(T * Bb, Hp).astype(mm_dt)
            else:
                x_flat = seq_ref[...].reshape(T * Bb, Hp)   # already mm_dt
            gx = jnp.dot(x_flat, wih_ref[layer], preferred_element_type=f32)
            gx_ref[...] = gx.reshape(T, Bb, 3 * Hp)

            w_hh = whh_ref[layer]        # (Hp, 3*Hp), gates [r|z|n] on lanes

            def step(t, h_prev):
                # ONE recurrent matmul per step (gate-concatenated weights).
                gh = jnp.dot(h_prev.astype(mm_dt), w_hh,
                             preferred_element_type=f32)        # (Bb, 3*Hp)
                gx_t = gx_ref[t]                                 # (Bb, 3*Hp)
                # r and z share one lane-concatenated sigmoid.
                rz = jax.nn.sigmoid(gx_t[:, :2 * Hp] + gh[:, :2 * Hp])
                r = rz[:, :Hp]
                z = rz[:, Hp:]
                n = jnp.tanh(gx_t[:, 2 * Hp:] + r * gh[:, 2 * Hp:])
                h_new = n + z * (h_prev - n)       # == (1 - z) * n + z * h_prev
                if last:
                    # Dense epilogue fused under the MXU-idle recurrence.
                    y = jnp.dot(h_new.astype(mm_dt), wd,
                                preferred_element_type=f32) + bd
                    out_ref[t] = y[:, :H_out].astype(out_ref.dtype)
                else:
                    seq_ref[t] = h_new.astype(seq_ref.dtype)
                return h_new

            lax.fori_loop(0, T, step, jnp.zeros((Bb, Hp), f32), unroll=unroll)

    return kernel


# ---------------------------------------------------------------------------
# Generation-aware VMEM budgeting / batch-block / unroll selection.
# ---------------------------------------------------------------------------
def _tpu_vmem_and_megacore():
    cap = None
    try:
        cap = int(pltpu.get_tpu_info().vmem_capacity_bytes)
    except Exception:
        cap = None
    kind = ""
    try:
        kind = jax.devices()[0].device_kind.lower()
    except Exception:
        pass
    two_tc = ("v7" in kind) or ("tpu7" in kind)   # v7x: 2 TensorCores / chip
    if cap is None:
        cap = (64 << 20) if two_tc else (128 << 20)
    return cap, two_tc


def _vmem_bytes_estimate(T, Bb, Hp, L, w_bytes, io_bytes):
    f32 = 4
    io = 2 * 2 * T * Bb * Hp * io_bytes                  # x + out, double-buffered
    gx = T * Bb * 3 * Hp * f32                           # gx scratch (f32)
    seq = T * Bb * Hp * w_bytes if L > 1 else 0          # inter-layer activations
    wts = 2 * ((2 * L * 3 + 1) * Hp * Hp * w_bytes + Hp * f32)  # dbl-buffered weights
    tmp = 8 * Bb * 3 * Hp * f32                          # per-step live values / slack
    return io + gx + seq + wts + tmp + (2 << 20)


def _pick_batch_block(B, T, Hp, L, w_bytes, io_bytes, budget, two_tc):
    if B < 16 or B % 8 != 0:
        return B                     # full-batch block (block dim == array dim)
    cands = [bb for bb in range(8, B + 1, 8) if B % bb == 0]
    fits = [bb for bb in cands
            if _vmem_bytes_estimate(T, bb, Hp, L, w_bytes, io_bytes) <= budget]
    if not fits:
        return cands[0]              # smallest aligned block; vmem_limit raised
    if two_tc:
        # v7x megacore: prefer an even grid >= 2 so both TensorCores get work.
        even = [bb for bb in fits if (B // bb) >= 2 and (B // bb) % 2 == 0]
        if even:
            return max(even)
    return max(fits)                 # single TC (v5e/v6e): largest block that fits


def _pick_unroll(T, Bb, Hp):
    live = Bb * 3 * Hp * 4           # rough per-step live-set bytes
    if live <= 96 * 1024:
        return max(1, min(T, 8))
    if live <= 384 * 1024:
        return max(1, min(T, 4))
    return max(1, min(T, 2))


# ---------------------------------------------------------------------------
# Parameter init (matching the PyTorch module) and wrapper-side packing.
# ---------------------------------------------------------------------------
def init_params(key, hidden_size, num_layers):
    H = hidden_size
    gru = []
    for layer in range(num_layers):
        key, k1, k2 = jax.random.split(key, 3)
        if layer == 0:
            # xavier_uniform_ on (3H, H): bound = sqrt(6 / (fan_in + fan_out))
            bound = (6.0 / (H + 3 * H)) ** 0.5
        else:
            # PyTorch default GRU init for layers > 0: U(-1/sqrt(H), 1/sqrt(H))
            bound = 1.0 / (H ** 0.5)
        w_ih = jax.random.uniform(k1, (3 * H, H), jnp.float32, -bound, bound)
        w_hh = jax.random.uniform(k2, (3 * H, H), jnp.float32, -bound, bound)
        gru.append((w_ih, w_hh))
    key, k3, k4 = jax.random.split(key, 3)
    lin_bound = 1.0 / (H ** 0.5)
    dense_w = jax.random.uniform(k3, (H, H), jnp.float32, -lin_bound, lin_bound)
    dense_b = jax.random.uniform(k4, (H,), jnp.float32, -lin_bound, lin_bound)
    return {"gru": gru, "dense_w": dense_w, "dense_b": dense_b}


def pack_params(params, compute_dtype=jnp.bfloat16):
    """Pre-transpose, gate-concatenate along lanes, and zero-pad H to a
    multiple of 128, so every in-kernel matmul is one lane-dense contraction.
    Padding is exact: padded lanes stay 0 through the GRU and the dense.
    compute_dtype=bf16 uses the bf16 MXU path (f32 accumulation / gate math);
    pass jnp.float32 for bit-closer parity with the f32 PyTorch reference."""
    H = params["dense_w"].shape[0]
    Hp = _round_up(H, 128)

    def pad_gate(w):                               # (H, H) -> (Hp, Hp)
        return jnp.pad(w, ((0, Hp - H), (0, Hp - H)))

    def pack_rnn(w):                               # (3H, H) -> (Hp, 3*Hp)
        gates = [pad_gate(w[g * H:(g + 1) * H, :].T) for g in range(3)]
        return jnp.concatenate(gates, axis=1).astype(compute_dtype)

    wih = jnp.stack([pack_rnn(w_ih) for (w_ih, _) in params["gru"]])  # (L,Hp,3Hp)
    whh = jnp.stack([pack_rnn(w_hh) for (_, w_hh) in params["gru"]])  # (L,Hp,3Hp)
    wd = pad_gate(params["dense_w"].T).astype(compute_dtype)          # (Hp,Hp)=Wd^T
    bd = jnp.pad(params["dense_b"], (0, Hp - H)).reshape(1, Hp).astype(jnp.float32)
    return (wih, whh, wd, bd)


# ---------------------------------------------------------------------------
# Forward pass.
# ---------------------------------------------------------------------------
def _gru4rec_forward(packed, item_seq_emb):
    wih, whh, wd, bd = packed
    B, T, H = item_seq_emb.shape
    L, Hp = wih.shape[0], wih.shape[1]
    w_bytes = wih.dtype.itemsize
    io_bytes = item_seq_emb.dtype.itemsize

    cap, two_tc = _tpu_vmem_and_megacore()
    block_budget = max(min(cap - (24 << 20), (cap * 4) // 5), 8 << 20)
    Bb = _pick_batch_block(B, T, Hp, L, w_bytes, io_bytes, block_budget, two_tc)
    est = _vmem_bytes_estimate(T, Bb, Hp, L, w_bytes, io_bytes)
    vmem_limit = int(min(max(est + est // 4, 16 << 20), cap - (8 << 20)))
    unroll = _pick_unroll(T, Bb, Hp)

    # Dropout: identity at inference (matches nn.Dropout in eval mode).
    # TODO(synk): training-mode dropout (pltpu.prng_*) not implemented.
    x_tm = jnp.transpose(item_seq_emb, (1, 0, 2))          # time-major (T, B, H)
    if Hp != H:
        x_tm = jnp.pad(x_tm, ((0, 0), (0, 0), (0, Hp - H)))  # lane-pad (exact)

    scratch = [pltpu.VMEM((T, Bb, 3 * Hp), jnp.float32)]   # gx pre-activations
    if L > 1:
        scratch.append(pltpu.VMEM((T, Bb, Hp), wih.dtype))  # inter-layer h

    y_tm = pl.pallas_call(
        _make_gru4rec_kernel(T, Bb, Hp, H, L, unroll),
        out_shape=jax.ShapeDtypeStruct((T, B, H), item_seq_emb.dtype),
        grid=(B // Bb,),
        in_specs=[
            pl.BlockSpec((T, Bb, Hp), lambda b: (0, b, 0)),       # x (batch-tiled)
            pl.BlockSpec((L, Hp, 3 * Hp), lambda b: (0, 0, 0)),   # wih (resident)
            pl.BlockSpec((L, Hp, 3 * Hp), lambda b: (0, 0, 0)),   # whh (resident)
            pl.BlockSpec((Hp, Hp), lambda b: (0, 0)),             # dense W^T
            pl.BlockSpec((1, Hp), lambda b: (0, 0)),              # dense bias
        ],
        out_specs=pl.BlockSpec((T, Bb, H), lambda b: (0, b, 0)),
        scratch_shapes=scratch,
        compiler_params=pltpu.CompilerParams(
            dimension_semantics=("parallel",),
            vmem_limit_bytes=vmem_limit,
        ),
    )(x_tm, wih, whh, wd, bd)

    return jnp.transpose(y_tm, (1, 0, 2))                  # back to (B, T, H)


gru4rec_forward = jax.jit(_gru4rec_forward)


# ---------------------------------------------------------------------------
# Pure-JAX reference of the PyTorch math (for the correctness smoke test).
# ---------------------------------------------------------------------------
def _reference_forward(params, x):
    B, T, H = x.shape
    h_seq = x
    for (w_ih, w_hh) in params["gru"]:
        h = jnp.zeros((B, H), jnp.float32)
        outs = []
        for t in range(T):
            gi = h_seq[:, t, :] @ w_ih.T
            gh = h @ w_hh.T
            r = jax.nn.sigmoid(gi[:, :H] + gh[:, :H])
            z = jax.nn.sigmoid(gi[:, H:2 * H] + gh[:, H:2 * H])
            n = jnp.tanh(gi[:, 2 * H:] + r * gh[:, 2 * H:])
            h = (1.0 - z) * n + z * h
            outs.append(h)
        h_seq = jnp.stack(outs, axis=1)
    return h_seq @ params["dense_w"].T + params["dense_b"]


if __name__ == "__main__":
    B, T, H = 2, 8, 32       # batch, seq_len, hidden_size
    NUM_LAYERS = 2

    key = jax.random.PRNGKey(0)
    key, kx, kp = jax.random.split(key, 3)
    item_seq_emb = jax.random.normal(kx, (B, T, H), jnp.float32)
    params = init_params(kp, H, NUM_LAYERS)

    # f32-weight path: check against the pure-JAX reference of the PyTorch math.
    out_f32 = gru4rec_forward(pack_params(params, jnp.float32), item_seq_emb)
    out_f32 = jax.block_until_ready(out_f32)
    ref = _reference_forward(params, item_seq_emb)
    assert out_f32.shape == (B, T, H)
    assert bool(jnp.allclose(out_f32, ref, atol=5e-2, rtol=5e-2)), \
        float(jnp.max(jnp.abs(out_f32 - ref)))

    # Default bf16-weight path (bf16 MXU matmuls, f32 gate math / accumulation).
    out_bf16 = gru4rec_forward(pack_params(params), item_seq_emb)
    out_bf16 = jax.block_until_ready(out_bf16)
    assert out_bf16.shape == (B, T, H)
    assert bool(jnp.all(jnp.isfinite(out_bf16)))

    print("KERNEL_OK")
</pallas_src>

<mosaic_0001>
module attributes {stable_mosaic.version = 11 : i64} {
  func.func @kernel(%arg0: i32, %arg1: memref<8x2x128xf32, #tpu.memory_space<vmem>>, %arg2: memref<2x128x384xf32, #tpu.memory_space<vmem>>, %arg3: memref<2x128x384xf32, #tpu.memory_space<vmem>>, %arg4: memref<128x128xf32, #tpu.memory_space<vmem>>, %arg5: memref<1x128xf32, #tpu.memory_space<vmem>>, %arg6: memref<8x2x32xf32, #tpu.memory_space<vmem>>, %arg7: memref<8x2x384xf32, #tpu.memory_space<vmem>>, %arg8: memref<8x2x128xf32, #tpu.memory_space<vmem>>) attributes {dimension_semantics = [#tpu.dimension_semantics<parallel>], iteration_bounds = array<i64: 1>, scalar_prefetch = 0 : i64, scratch_operands = 2 : i64, tpu.core_type = #tpu.core_type<tc>, window_params = [{transform_indices = @transform_0, window_bounds = array<i64: 8, 2, 128>}, {pipeline_mode = #tpu.pipeline_mode<synchronous>, transform_indices = @transform_1, window_bounds = array<i64: 2, 128, 384>}, {pipeline_mode = #tpu.pipeline_mode<synchronous>, transform_indices = @transform_2, window_bounds = array<i64: 2, 128, 384>}, {pipeline_mode = #tpu.pipeline_mode<synchronous>, transform_indices = @transform_3, window_bounds = array<i64: 128, 128>}, {pipeline_mode = #tpu.pipeline_mode<synchronous>, transform_indices = @transform_4, window_bounds = array<i64: 1, 128>}, {transform_indices = @transform_5, window_bounds = array<i64: 8, 2, 32>}]} {
    %c0 = arith.constant 0 : index
    %c0_0 = arith.constant 0 : index
    %0 = vector.load %arg4[%c0, %c0_0] : memref<128x128xf32, #tpu.memory_space<vmem>>, vector<128x128xf32>
    %c0_1 = arith.constant 0 : index
    %c0_2 = arith.constant 0 : index
    %1 = vector.load %arg5[%c0_1, %c0_2] : memref<1x128xf32, #tpu.memory_space<vmem>>, vector<1x128xf32>
    %c0_3 = arith.constant 0 : index
    %c0_4 = arith.constant 0 : index
    %c0_5 = arith.constant 0 : index
    %2 = vector.load %arg1[%c0_3, %c0_4, %c0_5] : memref<8x2x128xf32, #tpu.memory_space<vmem>>, vector<8x2x128xf32>
    %3 = vector.shape_cast %2 : vector<8x2x128xf32> to vector<16x128xf32>
    %c0_6 = arith.constant 0 : index
    %c0_7 = arith.constant 0 : index
    %c0_8 = arith.constant 0 : index
    %4 = vector.load %arg2[%c0_6, %c0_7, %c0_8] : memref<2x128x384xf32, #tpu.memory_space<vmem>>, vector<1x128x384xf32>
    %5 = vector.shape_cast %4 : vector<1x128x384xf32> to vector<128x384xf32>
    %cst = arith.constant dense<0.000000e+00> : vector<16x384xf32>
    %6 = tpu.matmul %3, %5, %cst {dimension_numbers = #tpu.dot_dimension_numbers<[1], [0], [0], [1], [0, 0, 1, 1], [], []>} : vector<16x128xf32>, vector<128x384xf32>, vector<16x384xf32> -> vector<16x384xf32>
    %7 = vector.shape_cast %6 : vector<16x384xf32> to vector<8x2x384xf32>
    %c0_9 = arith.constant 0 : index
    %c0_10 = arith.constant 0 : index
    %c0_11 = arith.constant 0 : index
    %8 = vector.load %arg7[%c0_9, %c0_10, %c0_11] : memref<8x2x384xf32, #tpu.memory_space<vmem>>, vector<8x2x384xf32>
    tpu.vector_store %arg7[%c0_9, %c0_10, %c0_11], %7 {strides = array<i32>} : memref<8x2x384xf32, #tpu.memory_space<vmem>>, vector<8x2x384xf32>,
    %c0_12 = arith.constant 0 : index
    %c0_13 = arith.constant 0 : index
    %c0_14 = arith.constant 0 : index
    %9 = vector.load %arg3[%c0_12, %c0_13, %c0_14] : memref<2x128x384xf32, #tpu.memory_space<vmem>>, vector<1x128x384xf32>
    %10 = vector.shape_cast %9 : vector<1x128x384xf32> to vector<128x384xf32>
    %cst_15 = arith.constant 0.000000e+00 : f32
    %11 = vector.broadcast %cst_15 : f32 to vector<2x128xf32>
    %c0_i32 = arith.constant 0 : i32
    %cst_16 = arith.constant dense<0.000000e+00> : vector<2x384xf32>
    %12 = tpu.matmul %11, %10, %cst_16 {dimension_numbers = #tpu.dot_dimension_numbers<[1], [0], [0], [1], [0, 0, 1, 1], [], []>} : vector<2x128xf32>, vector<128x384xf32>, vector<2x384xf32> -> vector<2x384xf32>
    %13 = arith.index_cast %c0_i32 : i32 to index
    %c0_17 = arith.constant 0 : index
    %c0_18 = arith.constant 0 : index
    %14 = vector.load %arg7[%13, %c0_17, %c0_18] : memref<8x2x384xf32, #tpu.memory_space<vmem>>, vector<1x2x384xf32>
    %15 = vector.shape_cast %14 : vector<1x2x384xf32> to vector<2x384xf32>
    %16 = vector.extract_strided_slice %15 {offsets = [0, 0], sizes = [2, 256], strides = [1, 1]} : vector<2x384xf32> to vector<2x256xf32>
    %17 = vector.extract_strided_slice %12 {offsets = [0, 0], sizes = [2, 256], strides = [1, 1]} : vector<2x384xf32> to vector<2x256xf32>
    %18 = arith.addf %16, %17 : vector<2x256xf32>
    %19 = arith.negf %18 : vector<2x256xf32>
    %20 = math.exp %19 : vector<2x256xf32>
    %cst_19 = arith.constant 1.000000e+00 : f32
    %21 = vector.broadcast %cst_19 : f32 to vector<2x256xf32>
    %22 = arith.addf %21, %20 : vector<2x256xf32>
    %23 = arith.divf %21, %22 : vector<2x256xf32>
    %24 = vector.extract_strided_slice %23 {offsets = [0, 0], sizes = [2, 128], strides = [1, 1]} : vector<2x256xf32> to vector<2x128xf32>
    %25 = vector.extract_strided_slice %23 {offsets = [0, 128], sizes = [2, 128], strides = [1, 1]} : vector<2x256xf32> to vector<2x128xf32>
    %26 = vector.extract_strided_slice %15 {offsets = [0, 256], sizes = [2, 128], strides = [1, 1]} : vector<2x384xf32> to vector<2x128xf32>
    %27 = vector.extract_strided_slice %12 {offsets = [0, 256], sizes = [2, 128], strides = [1, 1]} : vector<2x384xf32> to vector<2x128xf32>
    %28 = arith.mulf %24, %27 : vector<2x128xf32>
    %29 = arith.addf %26, %28 : vector<2x128xf32>
    %30 = math.tanh %29 : vector<2x128xf32>
    %31 = arith.subf %11, %30 : vector<2x128xf32>
    %32 = arith.mulf %25, %31 : vector<2x128xf32>
    %33 = arith.addf %30, %32 : vector<2x128xf32>
    %34 = arith.index_cast %c0_i32 : i32 to index
    %c0_20 = arith.constant 0 : index
    %c0_21 = arith.constant 0 : index
    %35 = vector.load %arg8[%34, %c0_20, %c0_21] : memref<8x2x128xf32, #tpu.memory_space<vmem>>, vector<1x2x128xf32>
    %36 = vector.shape_cast %35 : vector<1x2x128xf32> to vector<2x128xf32>
    %37 = vector.shape_cast %33 : vector<2x128xf32> to vector<1x2x128xf32>
    tpu.vector_store %arg8[%34, %c0_20, %c0_21], %37 {strides = array<i32>} : memref<8x2x128xf32, #tpu.memory_space<vmem>>, vector<1x2x128xf32>,
    %c1_i32 = arith.constant 1 : i32
    %cst_22 = arith.constant dense<0.000000e+00> : vector<2x384xf32>
    %38 = tpu.matmul %33, %10, %cst_22 {dimension_numbers = #tpu.dot_dimension_numbers<[1], [0], [0], [1], [0, 0, 1, 1], [], []>} : vector<2x128xf32>, vector<128x384xf32>, vector<2x384xf32> -> vector<2x384xf32>
    %39 = arith.index_cast %c1_i32 : i32 to index
    %c0_23 = arith.constant 0 : index
    %c0_24 = arith.constant 0 : index
    %40 = vector.load %arg7[%39, %c0_23, %c0_24] : memref<8x2x384xf32, #tpu.memory_space<vmem>>, vector<1x2x384xf32>
    %41 = vector.shape_cast %40 : vector<1x2x384xf32> to vector<2x384xf32>
    %42 = vector.extract_strided_slice %41 {offsets = [0, 0], sizes = [2, 256], strides = [1, 1]} : vector<2x384xf32> to vector<2x256xf32>
    %43 = vector.extract_strided_slice %38 {offsets = [0, 0], sizes = [2, 256], strides = [1, 1]} : vector<2x384xf32> to vector<2x256xf32>
    %44 = arith.addf %42, %43 : vector<2x256xf32>
    %45 = arith.negf %44 : vector<2x256xf32>
    %46 = math.exp %45 : vector<2x256xf32>
    %cst_25 = arith.constant 1.000000e+00 : f32
    %47 = vector.broadcast %cst_25 : f32 to vector<2x256xf32>
    %48 = arith.addf %47, %46 : vector<2x256xf32>
    %49 = arith.divf %47, %48 : vector<2x256xf32>
    %50 = vector.extract_strided_slice %49 {offsets = [0, 0], sizes = [2, 128], strides = [1, 1]} : vector<2x256xf32> to vector<2x128xf32>
    %51 = vector.extract_strided_slice %49 {offsets = [0, 128], sizes = [2, 128], strides = [1, 1]} : vector<2x256xf32> to vector<2x128xf32>
    %52 = vector.extract_strided_slice %41 {offsets = [0, 256], sizes = [2, 128], strides = [1, 1]} : vector<2x384xf32> to vector<2x128xf32>
    %53 = vector.extract_strided_slice %38 {offsets = [0, 256], sizes = [2, 128], strides = [1, 1]} : vector<2x384xf32> to vector<2x128xf32>
    %54 = arith.mulf %50, %53 : vector<2x128xf32>
    %55 = arith.addf %52, %54 : vector<2x128xf32>
    %56 = math.tanh %55 : vector<2x128xf32>
    %57 = arith.subf %33, %56 : vector<2x128xf32>
    %58 = arith.mulf %51, %57 : vector<2x128xf32>
    %59 = arith.addf %56, %58 : vector<2x128xf32>
    %60 = arith.index_cast %c1_i32 : i32 to index
    %c0_26 = arith.constant 0 : index
    %c0_27 = arith.constant 0 : index
    %61 = vector.load %arg8[%60, %c0_26, %c0_27] : memref<8x2x128xf32, #tpu.memory_space<vmem>>, vector<1x2x128xf32>
    %62 = vector.shape_cast %61 : vector<1x2x128xf32> to vector<2x128xf32>
    %63 = vector.shape_cast %59 : vector<2x128xf32> to vector<1x2x128xf32>
    tpu.vector_store %arg8[%60, %c0_26, %c0_27], %63 {strides = array<i32>} : memref<8x2x128xf32, #tpu.memory_space<vmem>>, vector<1x2x128xf32>,
    %c2_i32 = arith.constant 2 : i32
    %cst_28 = arith.constant dense<0.000000e+00> : vector<2x384xf32>
    %64 = tpu.matmul %59, %10, %cst_28 {dimension_numbers = #tpu.dot_dimension_numbers<[1], [0], [0], [1], [0, 0, 1, 1], [], []>} : vector<2x128xf32>, vector<128x384xf32>, vector<2x384xf32> -> vector<2x384xf32>
    %65 = arith.index_cast %c2_i32 : i32 to index
    %c0_29 = arith.constant 0 : index
    %c0_30 = arith.constant 0 : index
    %66 = vector.load %arg7[%65, %c0_29, %c0_30] : memref<8x2x384xf32, #tpu.memory_space<vmem>>, vector<1x2x384xf32>
    %67 = vector.shape_cast %66 : vector<1x2x384xf32> to vector<2x384xf32>
    %68 = vector.extract_strided_slice %67 {offsets = [0, 0], sizes = [2, 256], strides = [1, 1]} : vector<2x384xf32> to vector<2x256xf32>
    %69 = vector.extract_strided_slice %64 {offsets = [0, 0], sizes = [2, 256], strides = [1, 1]} : vector<2x384xf32> to vector<2x256xf32>
    %70 = arith.addf %68, %69 : vector<2x256xf32>
    %71 = arith.negf %70 : vector<2x256xf32>
    %72 = math.exp %71 : vector<2x256xf32>
    %cst_31 = arith.constant 1.000000e+00 : f32
    %73 = vector.broadcast %cst_31 : f32 to vector<2x256xf32>
    %74 = arith.addf %73, %72 : vector<2x256xf32>
    %75 = arith.divf %73, %74 : vector<2x256xf32>
    %76 = vector.extract_strided_slice %75 {offsets = [0, 0], sizes = [2, 128], strides = [1, 1]} : vector<2x256xf32> to vector<2x128xf32>
    %77 = vector.extract_strided_slice %75 {offsets = [0, 128], sizes = [2, 128], strides = [1, 1]} : vector<2x256xf32> to vector<2x128xf32>
    %78 = vector.extract_strided_slice %67 {offsets = [0, 256], sizes = [2, 128], strides = [1, 1]} : vector<2x384xf32> to vector<2x128xf32>
    %79 = vector.extract_strided_slice %64 {offsets = [0, 256], sizes = [2, 128], strides = [1, 1]} : vector<2x384xf32> to vector<2x128xf32>
    %80 = arith.mulf %76, %79 : vector<2x128xf32>
    %81 = arith.addf %78, %80 : vector<2x128xf32>
    %82 = math.tanh %81 : vector<2x128xf32>
    %83 = arith.subf %59, %82 : vector<2x128xf32>
    %84 = arith.mulf %77, %83 : vector<2x128xf32>
    %85 = arith.addf %82, %84 : vector<2x128xf32>
    %86 = arith.index_cast %c2_i32 : i32 to index
    %c0_32 = arith.constant 0 : index
    %c0_33 = arith.constant 0 : index
    %87 = vector.load %arg8[%86, %c0_32, %c0_33] : memref<8x2x128xf32, #tpu.memory_space<vmem>>, vector<1x2x128xf32>
    %88 = vector.shape_cast %87 : vector<1x2x128xf32> to vector<2x128xf32>
    %89 = vector.shape_cast %85 : vector<2x128xf32> to vector<1x2x128xf32>
    tpu.vector_store %arg8[%86, %c0_32, %c0_33], %89 {strides = array<i32>} : memref<8x2x128xf32, #tpu.memory_space<vmem>>, vector<1x2x128xf32>,
    %c3_i32 = arith.constant 3 : i32
    %cst_34 = arith.constant dense<0.000000e+00> : vector<2x384xf32>
    %90 = tpu.matmul %85, %10, %cst_34 {dimension_numbers = #tpu.dot_dimension_numbers<[1], [0], [0], [1], [0, 0, 1, 1], [], []>} : vector<2x128xf32>, vector<128x384xf32>, vector<2x384xf32> -> vector<2x384xf32>
    %91 = arith.index_cast %c3_i32 : i32 to index
    %c0_35 = arith.constant 0 : index
    %c0_36 = arith.constant 0 : index
    %92 = vector.load %arg7[%91, %c0_35, %c0_36] : memref<8x2x384xf32, #tpu.memory_space<vmem>>, vector<1x2x384xf32>
    %93 = vector.shape_cast %92 : vector<1x2x384xf32> to vector<2x384xf32>
    %94 = vector.extract_strided_slice %93 {offsets = [0, 0], sizes = [2, 256], strides = [1, 1]} : vector<2x384xf32> to vector<2x256xf32>
    %95 = vector.extract_strided_slice %90 {offsets = [0, 0], sizes = [2, 256], strides = [1, 1]} : vector<2x384xf32> to vector<2x256xf32>
    %96 = arith.addf %94, %95 : vector<2x256xf32>
    %97 = arith.negf %96 : vector<2x256xf32>
    %98 = math.exp %97 : vector<2x256xf32>
    %cst_37 = arith.constant 1.000000e+00 : f32
    %99 = vector.broadcast %cst_37 : f32 to vector<2x256xf32>
    %100 = arith.addf %99, %98 : vector<2x256xf32>
    %101 = arith.divf %99, %100 : vector<2x256xf32>
    %102 = vector.extract_strided_slice %101 {offsets = [0, 0], sizes = [2, 128], strides = [1, 1]} : vector<2x256xf32> to vector<2x128xf32>
    %103 = vector.extract_strided_slice %101 {offsets = [0, 128], sizes = [2, 128], strides = [1, 1]} : vector<2x256xf32> to vector<2x128xf32>
    %104 = vector.extract_strided_slice %93 {offsets = [0, 256], sizes = [2, 128], strides = [1, 1]} : vector<2x384xf32> to vector<2x128xf32>
    %105 = vector.extract_strided_slice %90 {offsets = [0, 256], sizes = [2, 128], strides = [1, 1]} : vector<2x384xf32> to vector<2x128xf32>
    %106 = arith.mulf %102, %105 : vector<2x128xf32>
    %107 = arith.addf %104, %106 : vector<2x128xf32>
    %108 = math.tanh %107 : vector<2x128xf32>
    %109 = arith.subf %85, %108 : vector<2x128xf32>
    %110 = arith.mulf %103, %109 : vector<2x128xf32>
    %111 = arith.addf %108, %110 : vector<2x128xf32>
    %112 = arith.index_cast %c3_i32 : i32 to index
    %c0_38 = arith.constant 0 : index
    %c0_39 = arith.constant 0 : index
    %113 = vector.load %arg8[%112, %c0_38, %c0_39] : memref<8x2x128xf32, #tpu.memory_space<vmem>>, vector<1x2x128xf32>
    %114 = vector.shape_cast %113 : vector<1x2x128xf32> to vector<2x128xf32>
    %115 = vector.shape_cast %111 : vector<2x128xf32> to vector<1x2x128xf32>
    tpu.vector_store %arg8[%112, %c0_38, %c0_39], %115 {strides = array<i32>} : memref<8x2x128xf32, #tpu.memory_space<vmem>>, vector<1x2x128xf32>,
    %c4_i32 = arith.constant 4 : i32
    %cst_40 = arith.constant dense<0.000000e+00> : vector<2x384xf32>
    %116 = tpu.matmul %111, %10, %cst_40 {dimension_numbers = #tpu.dot_dimension_numbers<[1], [0], [0], [1], [0, 0, 1, 1], [], []>} : vector<2x128xf32>, vector<128x384xf32>, vector<2x384xf32> -> vector<2x384xf32>
    %117 = arith.index_cast %c4_i32 : i32 to index
    %c0_41 = arith.constant 0 : index
    %c0_42 = arith.constant 0 : index
    %118 = vector.load %arg7[%117, %c0_41, %c0_42] : memref<8x2x384xf32, #tpu.memory_space<vmem>>, vector<1x2x384xf32>
    %119 = vector.shape_cast %118 : vector<1x2x384xf32> to vector<2x384xf32>
    %120 = vector.extract_strided_slice %119 {offsets = [0, 0], sizes = [2, 256], strides = [1, 1]} : vector<2x384xf32> to vector<2x256xf32>
    %121 = vector.extract_strided_slice %116 {offsets = [0, 0], sizes = [2, 256], strides = [1, 1]} : vector<2x384xf32> to vector<2x256xf32>
    %122 = arith.addf %120, %121 : vector<2x256xf32>
    %123 = arith.negf %122 : vector<2x256xf32>
    %124 = math.exp %123 : vector<2x256xf32>
    %cst_43 = arith.constant 1.000000e+00 : f32
    %125 = vector.broadcast %cst_43 : f32 to vector<2x256xf32>
    %126 = arith.addf %125, %124 : vector<2x256xf32>
    %127 = arith.divf %125, %126 : vector<2x256xf32>
    %128 = vector.extract_strided_slice %127 {offsets = [0, 0], sizes = [2, 128], strides = [1, 1]} : vector<2x256xf32> to vector<2x128xf32>
    %129 = vector.extract_strided_slice %127 {offsets = [0, 128], sizes = [2, 128], strides = [1, 1]} : vector<2x256xf32> to vector<2x128xf32>
    %130 = vector.extract_strided_slice %119 {offsets = [0, 256], sizes = [2, 128], strides = [1, 1]} : vector<2x384xf32> to vector<2x128xf32>
    %131 = vector.extract_strided_slice %116 {offsets = [0, 256], sizes = [2, 128], strides = [1, 1]} : vector<2x384xf32> to vector<2x128xf32>
    %132 = arith.mulf %128, %131 : vector<2x128xf32>
    %133 = arith.addf %130, %132 : vector<2x128xf32>
    %134 = math.tanh %133 : vector<2x128xf32>
    %135 = arith.subf %111, %134 : vector<2x128xf32>
    %136 = arith.mulf %129, %135 : vector<2x128xf32>
    %137 = arith.addf %134, %136 : vector<2x128xf32>
    %138 = arith.index_cast %c4_i32 : i32 to index
    %c0_44 = arith.constant 0 : index
    %c0_45 = arith.constant 0 : index
    %139 = vector.load %arg8[%138, %c0_44, %c0_45] : memref<8x2x128xf32, #tpu.memory_space<vmem>>, vector<1x2x128xf32>
    %140 = vector.shape_cast %139 : vector<1x2x128xf32> to vector<2x128xf32>
    %141 = vector.shape_cast %137 : vector<2x128xf32> to vector<1x2x128xf32>
    tpu.vector_store %arg8[%138, %c0_44, %c0_45], %141 {strides = array<i32>} : memref<8x2x128xf32, #tpu.memory_space<vmem>>, vector<1x2x128xf32>,
    %c5_i32 = arith.constant 5 : i32
    %cst_46 = arith.constant dense<0.000000e+00> : vector<2x384xf32>
    %142 = tpu.matmul %137, %10, %cst_46 {dimension_numbers = #tpu.dot_dimension_numbers<[1], [0], [0], [1], [0, 0, 1, 1], [], []>} : vector<2x128xf32>, vector<128x384xf32>, vector<2x384xf32> -> vector<2x384xf32>
    %143 = arith.index_cast %c5_i32 : i32 to index
    %c0_47 = arith.constant 0 : index
    %c0_48 = arith.constant 0 : index
    %144 = vector.load %arg7[%143, %c0_47, %c0_48] : memref<8x2x384xf32, #tpu.memory_space<vmem>>, vector<1x2x384xf32>
    %145 = vector.shape_cast %144 : vector<1x2x384xf32> to vector<2x384xf32>
    %146 = vector.extract_strided_slice %145 {offsets = [0, 0], sizes = [2, 256], strides = [1, 1]} : vector<2x384xf32> to vector<2x256xf32>
    %147 = vector.extract_strided_slice %142 {offsets = [0, 0], sizes = [2, 256], strides = [1, 1]} : vector<2x384xf32> to vector<2x256xf32>
    %148 = arith.addf %146, %147 : vector<2x256xf32>
    %149 = arith.negf %148 : vector<2x256xf32>
    %150 = math.exp %149 : vector<2x256xf32>
    %cst_49 = arith.constant 1.000000e+00 : f32
    %151 = vector.broadcast %cst_49 : f32 to vector<2x256xf32>
    %152 = arith.addf %151, %150 : vector<2x256xf32>
    %153 = arith.divf %151, %152 : vector<2x256xf32>
    %154 = vector.extract_strided_slice %153 {offsets = [0, 0], sizes = [2, 128], strides = [1, 1]} : vector<2x256xf32> to vector<2x128xf32>
    %155 = vector.extract_strided_slice %153 {offsets = [0, 128], sizes = [2, 128], strides = [1, 1]} : vector<2x256xf32> to vector<2x128xf32>
    %156 = vector.extract_strided_slice %145 {offsets = [0, 256], sizes = [2, 128], strides = [1, 1]} : vector<2x384xf32> to vector<2x128xf32>
    %157 = vector.extract_strided_slice %142 {offsets = [0, 256], sizes = [2, 128], strides = [1, 1]} : vector<2x384xf32> to vector<2x128xf32>
    %158 = arith.mulf %154, %157 : vector<2x128xf32>
    %159 = arith.addf %156, %158 : vector<2x128xf32>
    %160 = math.tanh %159 : vector<2x128xf32>
    %161 = arith.subf %137, %160 : vector<2x128xf32>
    %162 = arith.mulf %155, %161 : vector<2x128xf32>
    %163 = arith.addf %160, %162 : vector<2x128xf32>
    %164 = arith.index_cast %c5_i32 : i32 to index
    %c0_50 = arith.constant 0 : index
    %c0_51 = arith.constant 0 : index
    %165 = vector.load %arg8[%164, %c0_50, %c0_51] : memref<8x2x128xf32, #tpu.memory_space<vmem>>, vector<1x2x128xf32>
    %166 = vector.shape_cast %165 : vector<1x2x128xf32> to vector<2x128xf32>
    %167 = vector.shape_cast %163 : vector<2x128xf32> to vector<1x2x128xf32>
    tpu.vector_store %arg8[%164, %c0_50, %c0_51], %167 {strides = array<i32>} : memref<8x2x128xf32, #tpu.memory_space<vmem>>, vector<1x2x128xf32>,
    %c6_i32 = arith.constant 6 : i32
    %cst_52 = arith.constant dense<0.000000e+00> : vector<2x384xf32>
    %168 = tpu.matmul %163, %10, %cst_52 {dimension_numbers = #tpu.dot_dimension_numbers<[1], [0], [0], [1], [0, 0, 1, 1], [], []>} : vector<2x128xf32>, vector<128x384xf32>, vector<2x384xf32> -> vector<2x384xf32>
    %169 = arith.index_cast %c6_i32 : i32 to index
    %c0_53 = arith.constant 0 : index
    %c0_54 = arith.constant 0 : index
    %170 = vector.load %arg7[%169, %c0_53, %c0_54] : memref<8x2x384xf32, #tpu.memory_space<vmem>>, vector<1x2x384xf32>
    %171 = vector.shape_cast %170 : vector<1x2x384xf32> to vector<2x384xf32>
    %172 = vector.extract_strided_slice %171 {offsets = [0, 0], sizes = [2, 256], strides = [1, 1]} : vector<2x384xf32> to vector<2x256xf32>
    %173 = vector.extract_strided_slice %168 {offsets = [0, 0], sizes = [2, 256], strides = [1, 1]} : vector<2x384xf32> to vector<2x256xf32>
    %174 = arith.addf %172, %173 : vector<2x256xf32>
    %175 = arith.negf %174 : vector<2x256xf32>
    %176 = math.exp %175 : vector<2x256xf32>
    %cst_55 = arith.constant 1.000000e+00 : f32
    %177 = vector.broadcast %cst_55 : f32 to vector<2x256xf32>
    %178 = arith.addf %177, %176 : vector<2x256xf32>
    %179 = arith.divf %177, %178 : vector<2x256xf32>
    %180 = vector.extract_strided_slice %179 {offsets = [0, 0], sizes = [2, 128], strides = [1, 1]} : vector<2x256xf32> to vector<2x128xf32>
    %181 = vector.extract_strided_slice %179 {offsets = [0, 128], sizes = [2, 128], strides = [1, 1]} : vector<2x256xf32> to vector<2x128xf32>
    %182 = vector.extract_strided_slice %171 {offsets = [0, 256], sizes = [2, 128], strides = [1, 1]} : vector<2x384xf32> to vector<2x128xf32>
    %183 = vector.extract_strided_slice %168 {offsets = [0, 256], sizes = [2, 128], strides = [1, 1]} : vector<2x384xf32> to vector<2x128xf32>
    %184 = arith.mulf %180, %183 : vector<2x128xf32>
    %185 = arith.addf %182, %184 : vector<2x128xf32>
    %186 = math.tanh %185 : vector<2x128xf32>
    %187 = arith.subf %163, %186 : vector<2x128xf32>
    %188 = arith.mulf %181, %187 : vector<2x128xf32>
    %189 = arith.addf %186, %188 : vector<2x128xf32>
    %190 = arith.index_cast %c6_i32 : i32 to index
    %c0_56 = arith.constant 0 : index
    %c0_57 = arith.constant 0 : index
    %191 = vector.load %arg8[%190, %c0_56, %c0_57] : memref<8x2x128xf32, #tpu.memory_space<vmem>>, vector<1x2x128xf32>
    %192 = vector.shape_cast %191 : vector<1x2x128xf32> to vector<2x128xf32>
    %193 = vector.shape_cast %189 : vector<2x128xf32> to vector<1x2x128xf32>
    tpu.vector_store %arg8[%190, %c0_56, %c0_57], %193 {strides = array<i32>} : memref<8x2x128xf32, #tpu.memory_space<vmem>>, vector<1x2x128xf32>,
    %c7_i32 = arith.constant 7 : i32
    %cst_58 = arith.constant dense<0.000000e+00> : vector<2x384xf32>
    %194 = tpu.matmul %189, %10, %cst_58 {dimension_numbers = #tpu.dot_dimension_numbers<[1], [0], [0], [1], [0, 0, 1, 1], [], []>} : vector<2x128xf32>, vector<128x384xf32>, vector<2x384xf32> -> vector<2x384xf32>
    %195 = arith.index_cast %c7_i32 : i32 to index
    %c0_59 = arith.constant 0 : index
    %c0_60 = arith.constant 0 : index
    %196 = vector.load %arg7[%195, %c0_59, %c0_60] : memref<8x2x384xf32, #tpu.memory_space<vmem>>, vector<1x2x384xf32>
    %197 = vector.shape_cast %196 : vector<1x2x384xf32> to vector<2x384xf32>
    %198 = vector.extract_strided_slice %197 {offsets = [0, 0], sizes = [2, 256], strides = [1, 1]} : vector<2x384xf32> to vector<2x256xf32>
    %199 = vector.extract_strided_slice %194 {offsets = [0, 0], sizes = [2, 256], strides = [1, 1]} : vector<2x384xf32> to vector<2x256xf32>
    %200 = arith.addf %198, %199 : vector<2x256xf32>
    %201 = arith.negf %200 : vector<2x256xf32>
    %202 = math.exp %201 : vector<2x256xf32>
    %cst_61 = arith.constant 1.000000e+00 : f32
    %203 = vector.broadcast %cst_61 : f32 to vector<2x256xf32>
    %204 = arith.addf %203, %202 : vector<2x256xf32>
    %205 = arith.divf %203, %204 : vector<2x256xf32>
    %206 = vector.extract_strided_slice %205 {offsets = [0, 0], sizes = [2, 128], strides = [1, 1]} : vector<2x256xf32> to vector<2x128xf32>
    %207 = vector.extract_strided_slice %205 {offsets = [0, 128], sizes = [2, 128], strides = [1, 1]} : vector<2x256xf32> to vector<2x128xf32>
    %208 = vector.extract_strided_slice %197 {offsets = [0, 256], sizes = [2, 128], strides = [1, 1]} : vector<2x384xf32> to vector<2x128xf32>
    %209 = vector.extract_strided_slice %194 {offsets = [0, 256], sizes = [2, 128], strides = [1, 1]} : vector<2x384xf32> to vector<2x128xf32>
    %210 = arith.mulf %206, %209 : vector<2x128xf32>
    %211 = arith.addf %208, %210 : vector<2x128xf32>
    %212 = math.tanh %211 : vector<2x128xf32>
    %213 = arith.subf %189, %212 : vector<2x128xf32>
    %214 = arith.mulf %207, %213 : vector<2x128xf32>
    %215 = arith.addf %212, %214 : vector<2x128xf32>
    %216 = arith.index_cast %c7_i32 : i32 to index
    %c0_62 = arith.constant 0 : index
    %c0_63 = arith.constant 0 : index
    %217 = vector.load %arg8[%216, %c0_62, %c0_63] : memref<8x2x128xf32, #tpu.memory_space<vmem>>, vector<1x2x128xf32>
    %218 = vector.shape_cast %217 : vector<1x2x128xf32> to vector<2x128xf32>
    %219 = vector.shape_cast %215 : vector<2x128xf32> to vector<1x2x128xf32>
    tpu.vector_store %arg8[%216, %c0_62, %c0_63], %219 {strides = array<i32>} : memref<8x2x128xf32, #tpu.memory_space<vmem>>, vector<1x2x128xf32>,
    %c8_i32 = arith.constant 8 : i32
    %c0_64 = arith.constant 0 : index
    %c0_65 = arith.constant 0 : index
    %c0_66 = arith.constant 0 : index
    %220 = vector.load %arg8[%c0_64, %c0_65, %c0_66] : memref<8x2x128xf32, #tpu.memory_space<vmem>>, vector<8x2x128xf32>
    %221 = vector.shape_cast %220 : vector<8x2x128xf32> to vector<16x128xf32>
    %c1 = arith.constant 1 : index
    %c0_67 = arith.constant 0 : index
    %c0_68 = arith.constant 0 : index
    %222 = vector.load %arg2[%c1, %c0_67, %c0_68] : memref<2x128x384xf32, #tpu.memory_space<vmem>>, vector<1x128x384xf32>
    %223 = vector.shape_cast %222 : vector<1x128x384xf32> to vector<128x384xf32>
    %cst_69 = arith.constant dense<0.000000e+00> : vector<16x384xf32>
    %224 = tpu.matmul %221, %223, %cst_69 {dimension_numbers = #tpu.dot_dimension_numbers<[1], [0], [0], [1], [0, 0, 1, 1], [], []>} : vector<16x128xf32>, vector<128x384xf32>, vector<16x384xf32> -> vector<16x384xf32>
    %225 = vector.shape_cast %224 : vector<16x384xf32> to vector<8x2x384xf32>
    %c0_70 = arith.constant 0 : index
    %c0_71 = arith.constant 0 : index
    %c0_72 = arith.constant 0 : index
    %226 = vector.load %arg7[%c0_70, %c0_71, %c0_72] : memref<8x2x384xf32, #tpu.memory_space<vmem>>, vector<8x2x384xf32>
    tpu.vector_store %arg7[%c0_70, %c0_71, %c0_72], %225 {strides = array<i32>} : memref<8x2x384xf32, #tpu.memory_space<vmem>>, vector<8x2x384xf32>,
    %c1_73 = arith.constant 1 : index
    %c0_74 = arith.constant 0 : index
    %c0_75 = arith.constant 0 : index
    %227 = vector.load %arg3[%c1_73, %c0_74, %c0_75] : memref<2x128x384xf32, #tpu.memory_space<vmem>>, vector<1x128x384xf32>
    %228 = vector.shape_cast %227 : vector<1x128x384xf32> to vector<128x384xf32>
    %cst_76 = arith.constant 0.000000e+00 : f32
    %229 = vector.broadcast %cst_76 : f32 to vector<2x128xf32>
    %c0_i32_77 = arith.constant 0 : i32
    %cst_78 = arith.constant dense<0.000000e+00> : vector<2x384xf32>
    %230 = tpu.matmul %229, %228, %cst_78 {dimension_numbers = #tpu.dot_dimension_numbers<[1], [0], [0], [1], [0, 0, 1, 1], [], []>} : vector<2x128xf32>, vector<128x384xf32>, vector<2x384xf32> -> vector<2x384xf32>
    %231 = arith.index_cast %c0_i32_77 : i32 to index
    %c0_79 = arith.constant 0 : index
    %c0_80 = arith.constant 0 : index
    %232 = vector.load %arg7[%231, %c0_79, %c0_80] : memref<8x2x384xf32, #tpu.memory_space<vmem>>, vector<1x2x384xf32>
    %233 = vector.shape_cast %232 : vector<1x2x384xf32> to vector<2x384xf32>
    %234 = vector.extract_strided_slice %233 {offsets = [0, 0], sizes = [2, 256], strides = [1, 1]} : vector<2x384xf32> to vector<2x256xf32>
    %235 = vector.extract_strided_slice %230 {offsets = [0, 0], sizes = [2, 256], strides = [1, 1]} : vector<2x384xf32> to vector<2x256xf32>
    %236 = arith.addf %234, %235 : vector<2x256xf32>
    %237 = arith.negf %236 : vector<2x256xf32>
    %238 = math.exp %237 : vector<2x256xf32>
    %cst_81 = arith.constant 1.000000e+00 : f32
    %239 = vector.broadcast %cst_81 : f32 to vector<2x256xf32>
    %240 = arith.addf %239, %238 : vector<2x256xf32>
    %241 = arith.divf %239, %240 : vector<2x256xf32>
    %242 = vector.extract_strided_slice %241 {offsets = [0, 0], sizes = [2, 128], strides = [1, 1]} : vector<2x256xf32> to vector<2x128xf32>
    %243 = vector.extract_strided_slice %241 {offsets = [0, 128], sizes = [2, 128], strides = [1, 1]} : vector<2x256xf32> to vector<2x128xf32>
    %244 = vector.extract_strided_slice %233 {offsets = [0, 256], sizes = [2, 128], strides = [1, 1]} : vector<2x384xf32> to vector<2x128xf32>
    %245 = vector.extract_strided_slice %230 {offsets = [0, 256], sizes = [2, 128], strides = [1, 1]} : vector<2x384xf32> to vector<2x128xf32>
    %246 = arith.mulf %242, %245 : vector<2x128xf32>
    %247 = arith.addf %244, %246 : vector<2x128xf32>
    %248 = math.tanh %247 : vector<2x128xf32>
    %249 = arith.subf %229, %248 : vector<2x128xf32>
    %250 = arith.mulf %243, %249 : vector<2x128xf32>
    %251 = arith.addf %248, %250 : vector<2x128xf32>
    %cst_82 = arith.constant dense<0.000000e+00> : vector<2x128xf32>
    %252 = tpu.matmul %251, %0, %cst_82 {dimension_numbers = #tpu.dot_dimension_numbers<[1], [0], [0], [1], [0, 0, 1, 1], [], []>} : vector<2x128xf32>, vector<128x128xf32>, vector<2x128xf32> -> vector<2x128xf32>
    %253 = vector.broadcast %1 : vector<1x128xf32> to vector<2x128xf32>
    %254 = arith.addf %252, %253 : vector<2x128xf32>
    %255 = vector.extract_strided_slice %254 {offsets = [0, 0], sizes = [2, 32], strides = [1, 1]} : vector<2x128xf32> to vector<2x32xf32>
    %256 = arith.index_cast %c0_i32_77 : i32 to index
    %c0_83 = arith.constant 0 : index
    %c0_84 = arith.constant 0 : index
    %257 = vector.load %arg6[%256, %c0_83, %c0_84] : memref<8x2x32xf32, #tpu.memory_space<vmem>>, vector<1x2x32xf32>
    %258 = vector.shape_cast %257 : vector<1x2x32xf32> to vector<2x32xf32>
    %259 = vector.shape_cast %255 : vector<2x32xf32> to vector<1x2x32xf32>
    tpu.vector_store %arg6[%256, %c0_83, %c0_84], %259 {strides = array<i32>} : memref<8x2x32xf32, #tpu.memory_space<vmem>>, vector<1x2x32xf32>,
    %c1_i32_85 = arith.constant 1 : i32
    %cst_86 = arith.constant dense<0.000000e+00> : vector<2x384xf32>
    %260 = tpu.matmul %251, %228, %cst_86 {dimension_numbers = #tpu.dot_dimension_numbers<[1], [0], [0], [1], [0, 0, 1, 1], [], []>} : vector<2x128xf32>, vector<128x384xf32>, vector<2x384xf32> -> vector<2x384xf32>
    %261 = arith.index_cast %c1_i32_85 : i32 to index
    %c0_87 = arith.constant 0 : index
    %c0_88 = arith.constant 0 : index
    %262 = vector.load %arg7[%261, %c0_87, %c0_88] : memref<8x2x384xf32, #tpu.memory_space<vmem>>, vector<1x2x384xf32>
    %263 = vector.shape_cast %262 : vector<1x2x384xf32> to vector<2x384xf32>
    %264 = vector.extract_strided_slice %263 {offsets = [0, 0], sizes = [2, 256], strides = [1, 1]} : vector<2x384xf32> to vector<2x256xf32>
    %265 = vector.extract_strided_slice %260 {offsets = [0, 0], sizes = [2, 256], strides = [1, 1]} : vector<2x384xf32> to vector<2x256xf32>
    %266 = arith.addf %264, %265 : vector<2x256xf32>
    %267 = arith.negf %266 : vector<2x256xf32>
    %268 = math.exp %267 : vector<2x256xf32>
    %cst_89 = arith.constant 1.000000e+00 : f32
    %269 = vector.broadcast %cst_89 : f32 to vector<2x256xf32>
    %270 = arith.addf %269, %268 : vector<2x256xf32>
    %271 = arith.divf %269, %270 : vector<2x256xf32>
    %272 = vector.extract_strided_slice %271 {offsets = [0, 0], sizes = [2, 128], strides = [1, 1]} : vector<2x256xf32> to vector<2x128xf32>
    %273 = vector.extract_strided_slice %271 {offsets = [0, 128], sizes = [2, 128], strides = [1, 1]} : vector<2x256xf32> to vector<2x128xf32>
    %274 = vector.extract_strided_slice %263 {offsets = [0, 256], sizes = [2, 128], strides = [1, 1]} : vector<2x384xf32> to vector<2x128xf32>
    %275 = vector.extract_strided_slice %260 {offsets = [0, 256], sizes = [2, 128], strides = [1, 1]} : vector<2x384xf32> to vector<2x128xf32>
    %276 = arith.mulf %272, %275 : vector<2x128xf32>
    %277 = arith.addf %274, %276 : vector<2x128xf32>
    %278 = math.tanh %277 : vector<2x128xf32>
    %279 = arith.subf %251, %278 : vector<2x128xf32>
    %280 = arith.mulf %273, %279 : vector<2x128xf32>
    %281 = arith.addf %278, %280 : vector<2x128xf32>
    %cst_90 = arith.constant dense<0.000000e+00> : vector<2x128xf32>
    %282 = tpu.matmul %281, %0, %cst_90 {dimension_numbers = #tpu.dot_dimension_numbers<[1], [0], [0], [1], [0, 0, 1, 1], [], []>} : vector<2x128xf32>, vector<128x128xf32>, vector<2x128xf32> -> vector<2x128xf32>
    %283 = vector.broadcast %1 : vector<1x128xf32> to vector<2x128xf32>
    %284 = arith.addf %282, %283 : vector<2x128xf32>
    %285 = vector.extract_strided_slice %284 {offsets = [0, 0], sizes = [2, 32], strides = [1, 1]} : vector<2x128xf32> to vector<2x32xf32>
    %286 = arith.index_cast %c1_i32_85 : i32 to index
    %c0_91 = arith.constant 0 : index
    %c0_92 = arith.constant 0 : index
    %287 = vector.load %arg6[%286, %c0_91, %c0_92] : memref<8x2x32xf32, #tpu.memory_space<vmem>>, vector<1x2x32xf32>
    %288 = vector.shape_cast %287 : vector<1x2x32xf32> to vector<2x32xf32>
    %289 = vector.shape_cast %285 : vector<2x32xf32> to vector<1x2x32xf32>
    tpu.vector_store %arg6[%286, %c0_91, %c0_92], %289 {strides = array<i32>} : memref<8x2x32xf32, #tpu.memory_space<vmem>>, vector<1x2x32xf32>,
    %c2_i32_93 = arith.constant 2 : i32
    %cst_94 = arith.constant dense<0.000000e+00> : vector<2x384xf32>
    %290 = tpu.matmul %281, %228, %cst_94 {dimension_numbers = #tpu.dot_dimension_numbers<[1], [0], [0], [1], [0, 0, 1, 1], [], []>} : vector<2x128xf32>, vector<128x384xf32>, vector<2x384xf32> -> vector<2x384xf32>
    %291 = arith.index_cast %c2_i32_93 : i32 to index
    %c0_95 = arith.constant 0 : index
    %c0_96 = arith.constant 0 : index
    %292 = vector.load %arg7[%291, %c0_95, %c0_96] : memref<8x2x384xf32, #tpu.memory_space<vmem>>, vector<1x2x384xf32>
    %293 = vector.shape_cast %292 : vector<1x2x384xf32> to vector<2x384xf32>
    %294 = vector.extract_strided_slice %293 {offsets = [0, 0], sizes = [2, 256], strides = [1, 1]} : vector<2x384xf32> to vector<2x256xf32>
    %295 = vector.extract_strided_slice %290 {offsets = [0, 0], sizes = [2, 256], strides = [1, 1]} : vector<2x384xf32> to vector<2x256xf32>
    %296 = arith.addf %294, %295 : vector<2x256xf32>
    %297 = arith.negf %296 : vector<2x256xf32>
    %298 = math.exp %297 : vector<2x256xf32>
    %cst_97 = arith.constant 1.000000e+00 : f32
    %299 = vector.broadcast %cst_97 : f32 to vector<2x256xf32>
    %300 = arith.addf %299, %298 : vector<2x256xf32>
    %301 = arith.divf %299, %300 : vector<2x256xf32>
    %302 = vector.extract_strided_slice %301 {offsets = [0, 0], sizes = [2, 128], strides = [1, 1]} : vector<2x256xf32> to vector<2x128xf32>
    %303 = vector.extract_strided_slice %301 {offsets = [0, 128], sizes = [2, 128], strides = [1, 1]} : vector<2x256xf32> to vector<2x128xf32>
    %304 = vector.extract_strided_slice %293 {offsets = [0, 256], sizes = [2, 128], strides = [1, 1]} : vector<2x384xf32> to vector<2x128xf32>
    %305 = vector.extract_strided_slice %290 {offsets = [0, 256], sizes = [2, 128], strides = [1, 1]} : vector<2x384xf32> to vector<2x128xf32>
    %306 = arith.mulf %302, %305 : vector<2x128xf32>
    %307 = arith.addf %304, %306 : vector<2x128xf32>
    %308 = math.tanh %307 : vector<2x128xf32>
    %309 = arith.subf %281, %308 : vector<2x128xf32>
    %310 = arith.mulf %303, %309 : vector<2x128xf32>
    %311 = arith.addf %308, %310 : vector<2x128xf32>
    %cst_98 = arith.constant dense<0.000000e+00> : vector<2x128xf32>
    %312 = tpu.matmul %311, %0, %cst_98 {dimension_numbers = #tpu.dot_dimension_numbers<[1], [0], [0], [1], [0, 0, 1, 1], [], []>} : vector<2x128xf32>, vector<128x128xf32>, vector<2x128xf32> -> vector<2x128xf32>
    %313 = vector.broadcast %1 : vector<1x128xf32> to vector<2x128xf32>
    %314 = arith.addf %312, %313 : vector<2x128xf32>
    %315 = vector.extract_strided_slice %314 {offsets = [0, 0], sizes = [2, 32], strides = [1, 1]} : vector<2x128xf32> to vector<2x32xf32>
    %316 = arith.index_cast %c2_i32_93 : i32 to index
    %c0_99 = arith.constant 0 : index
    %c0_100 = arith.constant 0 : index
    %317 = vector.load %arg6[%316, %c0_99, %c0_100] : memref<8x2x32xf32, #tpu.memory_space<vmem>>, vector<1x2x32xf32>
    %318 = vector.shape_cast %317 : vector<1x2x32xf32> to vector<2x32xf32>
    %319 = vector.shape_cast %315 : vector<2x32xf32> to vector<1x2x32xf32>
    tpu.vector_store %arg6[%316, %c0_99, %c0_100], %319 {strides = array<i32>} : memref<8x2x32xf32, #tpu.memory_space<vmem>>, vector<1x2x32xf32>,
    %c3_i32_101 = arith.constant 3 : i32
    %cst_102 = arith.constant dense<0.000000e+00> : vector<2x384xf32>
    %320 = tpu.matmul %311, %228, %cst_102 {dimension_numbers = #tpu.dot_dimension_numbers<[1], [0], [0], [1], [0, 0, 1, 1], [], []>} : vector<2x128xf32>, vector<128x384xf32>, vector<2x384xf32> -> vector<2x384xf32>
    %321 = arith.index_cast %c3_i32_101 : i32 to index
    %c0_103 = arith.constant 0 : index
    %c0_104 = arith.constant 0 : index
    %322 = vector.load %arg7[%321, %c0_103, %c0_104] : memref<8x2x384xf32, #tpu.memory_space<vmem>>, vector<1x2x384xf32>
    %323 = vector.shape_cast %322 : vector<1x2x384xf32> to vector<2x384xf32>
    %324 = vector.extract_strided_slice %323 {offsets = [0, 0], sizes = [2, 256], strides = [1, 1]} : vector<2x384xf32> to vector<2x256xf32>
    %325 = vector.extract_strided_slice %320 {offsets = [0, 0], sizes = [2, 256], strides = [1, 1]} : vector<2x384xf32> to vector<2x256xf32>
    %326 = arith.addf %324, %325 : vector<2x256xf32>
    %327 = arith.negf %326 : vector<2x256xf32>
    %328 = math.exp %327 : vector<2x256xf32>
    %cst_105 = arith.constant 1.000000e+00 : f32
    %329 = vector.broadcast %cst_105 : f32 to vector<2x256xf32>
    %330 = arith.addf %329, %328 : vector<2x256xf32>
    %331 = arith.divf %329, %330 : vector<2x256xf32>
    %332 = vector.extract_strided_slice %331 {offsets = [0, 0], sizes = [2, 128], strides = [1, 1]} : vector<2x256xf32> to vector<2x128xf32>
    %333 = vector.extract_strided_slice %331 {offsets = [0, 128], sizes = [2, 128], strides = [1, 1]} : vector<2x256xf32> to vector<2x128xf32>
    %334 = vector.extract_strided_slice %323 {offsets = [0, 256], sizes = [2, 128], strides = [1, 1]} : vector<2x384xf32> to vector<2x128xf32>
    %335 = vector.extract_strided_slice %320 {offsets = [0, 256], sizes = [2, 128], strides = [1, 1]} : vector<2x384xf32> to vector<2x128xf32>
    %336 = arith.mulf %332, %335 : vector<2x128xf32>
    %337 = arith.addf %334, %336 : vector<2x128xf32>
    %338 = math.tanh %337 : vector<2x128xf32>
    %339 = arith.subf %311, %338 : vector<2x128xf32>
    %340 = arith.mulf %333, %339 : vector<2x128xf32>
    %341 = arith.addf %338, %340 : vector<2x128xf32>
    %cst_106 = arith.constant dense<0.000000e+00> : vector<2x128xf32>
    %342 = tpu.matmul %341, %0, %cst_106 {dimension_numbers = #tpu.dot_dimension_numbers<[1], [0], [0], [1], [0, 0, 1, 1], [], []>} : vector<2x128xf32>, vector<128x128xf32>, vector<2x128xf32> -> vector<2x128xf32>
    %343 = vector.broadcast %1 : vector<1x128xf32> to vector<2x128xf32>
    %344 = arith.addf %342, %343 : vector<2x128xf32>
    %345 = vector.extract_strided_slice %344 {offsets = [0, 0], sizes = [2, 32], strides = [1, 1]} : vector<2x128xf32> to vector<2x32xf32>
    %346 = arith.index_cast %c3_i32_101 : i32 to index
    %c0_107 = arith.constant 0 : index
    %c0_108 = arith.constant 0 : index
    %347 = vector.load %arg6[%346, %c0_107, %c0_108] : memref<8x2x32xf32, #tpu.memory_space<vmem>>, vector<1x2x32xf32>
    %348 = vector.shape_cast %347 : vector<1x2x32xf32> to vector<2x32xf32>
    %349 = vector.shape_cast %345 : vector<2x32xf32> to vector<1x2x32xf32>
    tpu.vector_store %arg6[%346, %c0_107, %c0_108], %349 {strides = array<i32>} : memref<8x2x32xf32, #tpu.memory_space<vmem>>, vector<1x2x32xf32>,
    %c4_i32_109 = arith.constant 4 : i32
    %cst_110 = arith.constant dense<0.000000e+00> : vector<2x384xf32>
    %350 = tpu.matmul %341, %228, %cst_110 {dimension_numbers = #tpu.dot_dimension_numbers<[1], [0], [0], [1], [0, 0, 1, 1], [], []>} : vector<2x128xf32>, vector<128x384xf32>, vector<2x384xf32> -> vector<2x384xf32>
    %351 = arith.index_cast %c4_i32_109 : i32 to index
    %c0_111 = arith.constant 0 : index
    %c0_112 = arith.constant 0 : index
    %352 = vector.load %arg7[%351, %c0_111, %c0_112] : memref<8x2x384xf32, #tpu.memory_space<vmem>>, vector<1x2x384xf32>
    %353 = vector.shape_cast %352 : vector<1x2x384xf32> to vector<2x384xf32>
    %354 = vector.extract_strided_slice %353 {offsets = [0, 0], sizes = [2, 256], strides = [1, 1]} : vector<2x384xf32> to vector<2x256xf32>
    %355 = vector.extract_strided_slice %350 {offsets = [0, 0], sizes = [2, 256], strides = [1, 1]} : vector<2x384xf32> to vector<2x256xf32>
    %356 = arith.addf %354, %355 : vector<2x256xf32>
    %357 = arith.negf %356 : vector<2x256xf32>
    %358 = math.exp %357 : vector<2x256xf32>
    %cst_113 = arith.constant 1.000000e+00 : f32
    %359 = vector.broadcast %cst_113 : f32 to vector<2x256xf32>
    %360 = arith.addf %359, %358 : vector<2x256xf32>
    %361 = arith.divf %359, %360 : vector<2x256xf32>
    %362 = vector.extract_strided_slice %361 {offsets = [0, 0], sizes = [2, 128], strides = [1, 1]} : vector<2x256xf32> to vector<2x128xf32>
    %363 = vector.extract_strided_slice %361 {offsets = [0, 128], sizes = [2, 128], strides = [1, 1]} : vector<2x256xf32> to vector<2x128xf32>
    %364 = vector.extract_strided_slice %353 {offsets = [0, 256], sizes = [2, 128], strides = [1, 1]} : vector<2x384xf32> to vector<2x128xf32>
    %365 = vector.extract_strided_slice %350 {offsets = [0, 256], sizes = [2, 128], strides = [1, 1]} : vector<2x384xf32> to vector<2x128xf32>
    %366 = arith.mulf %362, %365 : vector<2x128xf32>
    %367 = arith.addf %364, %366 : vector<2x128xf32>
    %368 = math.tanh %367 : vector<2x128xf32>
    %369 = arith.subf %341, %368 : vector<2x128xf32>
    %370 = arith.mulf %363, %369 : vector<2x128xf32>
    %371 = arith.addf %368, %370 : vector<2x128xf32>
    %cst_114 = arith.constant dense<0.000000e+00> : vector<2x128xf32>
    %372 = tpu.matmul %371, %0, %cst_114 {dimension_numbers = #tpu.dot_dimension_numbers<[1], [0], [0], [1], [0, 0, 1, 1], [], []>} : vector<2x128xf32>, vector<128x128xf32>, vector<2x128xf32> -> vector<2x128xf32>
    %373 = vector.broadcast %1 : vector<1x128xf32> to vector<2x128xf32>
    %374 = arith.addf %372, %373 : vector<2x128xf32>
    %375 = vector.extract_strided_slice %374 {offsets = [0, 0], sizes = [2, 32], strides = [1, 1]} : vector<2x128xf32> to vector<2x32xf32>
    %376 = arith.index_cast %c4_i32_109 : i32 to index
    %c0_115 = arith.constant 0 : index
    %c0_116 = arith.constant 0 : index
    %377 = vector.load %arg6[%376, %c0_115, %c0_116] : memref<8x2x32xf32, #tpu.memory_space<vmem>>, vector<1x2x32xf32>
    %378 = vector.shape_cast %377 : vector<1x2x32xf32> to vector<2x32xf32>
    %379 = vector.shape_cast %375 : vector<2x32xf32> to vector<1x2x32xf32>
    tpu.vector_store %arg6[%376, %c0_115, %c0_116], %379 {strides = array<i32>} : memref<8x2x32xf32, #tpu.memory_space<vmem>>, vector<1x2x32xf32>,
    %c5_i32_117 = arith.constant 5 : i32
    %cst_118 = arith.constant dense<0.000000e+00> : vector<2x384xf32>
    %380 = tpu.matmul %371, %228, %cst_118 {dimension_numbers = #tpu.dot_dimension_numbers<[1], [0], [0], [1], [0, 0, 1, 1], [], []>} : vector<2x128xf32>, vector<128x384xf32>, vector<2x384xf32> -> vector<2x384xf32>
    %381 = arith.index_cast %c5_i32_117 : i32 to index
    %c0_119 = arith.constant 0 : index
    %c0_120 = arith.constant 0 : index
    %382 = vector.load %arg7[%381, %c0_119, %c0_120] : memref<8x2x384xf32, #tpu.memory_space<vmem>>, vector<1x2x384xf32>
    %383 = vector.shape_cast %382 : vector<1x2x384xf32> to vector<2x384xf32>
    %384 = vector.extract_strided_slice %383 {offsets = [0, 0], sizes = [2, 256], strides = [1, 1]} : vector<2x384xf32> to vector<2x256xf32>
    %385 = vector.extract_strided_slice %380 {offsets = [0, 0], sizes = [2, 256], strides = [1, 1]} : vector<2x384xf32> to vector<2x256xf32>
    %386 = arith.addf %384, %385 : vector<2x256xf32>
    %387 = arith.negf %386 : vector<2x256xf32>
    %388 = math.exp %387 : vector<2x256xf32>
    %cst_121 = arith.constant 1.000000e+00 : f32
    %389 = vector.broadcast %cst_121 : f32 to vector<2x256xf32>
    %390 = arith.addf %389, %388 : vector<2x256xf32>
    %391 = arith.divf %389, %390 : vector<2x256xf32>
    %392 = vector.extract_strided_slice %391 {offsets = [0, 0], sizes = [2, 128], strides = [1, 1]} : vector<2x256xf32> to vector<2x128xf32>
    %393 = vector.extract_strided_slice %391 {offsets = [0, 128], sizes = [2, 128], strides = [1, 1]} : vector<2x256xf32> to vector<2x128xf32>
    %394 = vector.extract_strided_slice %383 {offsets = [0, 256], sizes = [2, 128], strides = [1, 1]} : vector<2x384xf32> to vector<2x128xf32>
    %395 = vector.extract_strided_slice %380 {offsets = [0, 256], sizes = [2, 128], strides = [1, 1]} : vector<2x384xf32> to vector<2x128xf32>
    %396 = arith.mulf %392, %395 : vector<2x128xf32>
    %397 = arith.addf %394, %396 : vector<2x128xf32>
    %398 = math.tanh %397 : vector<2x128xf32>
    %399 = arith.subf %371, %398 : vector<2x128xf32>
    %400 = arith.mulf %393, %399 : vector<2x128xf32>
    %401 = arith.addf %398, %400 : vector<2x128xf32>
    %cst_122 = arith.constant dense<0.000000e+00> : vector<2x128xf32>
    %402 = tpu.matmul %401, %0, %cst_122 {dimension_numbers = #tpu.dot_dimension_numbers<[1], [0], [0], [1], [0, 0, 1, 1], [], []>} : vector<2x128xf32>, vector<128x128xf32>, vector<2x128xf32> -> vector<2x128xf32>
    %403 = vector.broadcast %1 : vector<1x128xf32> to vector<2x128xf32>
    %404 = arith.addf %402, %403 : vector<2x128xf32>
    %405 = vector.extract_strided_slice %404 {offsets = [0, 0], sizes = [2, 32], strides = [1, 1]} : vector<2x128xf32> to vector<2x32xf32>
    %406 = arith.index_cast %c5_i32_117 : i32 to index
    %c0_123 = arith.constant 0 : index
    %c0_124 = arith.constant 0 : index
    %407 = vector.load %arg6[%406, %c0_123, %c0_124] : memref<8x2x32xf32, #tpu.memory_space<vmem>>, vector<1x2x32xf32>
    %408 = vector.shape_cast %407 : vector<1x2x32xf32> to vector<2x32xf32>
    %409 = vector.shape_cast %405 : vector<2x32xf32> to vector<1x2x32xf32>
    tpu.vector_store %arg6[%406, %c0_123, %c0_124], %409 {strides = array<i32>} : memref<8x2x32xf32, #tpu.memory_space<vmem>>, vector<1x2x32xf32>,
    %c6_i32_125 = arith.constant 6 : i32
    %cst_126 = arith.constant dense<0.000000e+00> : vector<2x384xf32>
    %410 = tpu.matmul %401, %228, %cst_126 {dimension_numbers = #tpu.dot_dimension_numbers<[1], [0], [0], [1], [0, 0, 1, 1], [], []>} : vector<2x128xf32>, vector<128x384xf32>, vector<2x384xf32> -> vector<2x384xf32>
    %411 = arith.index_cast %c6_i32_125 : i32 to index
    %c0_127 = arith.constant 0 : index
    %c0_128 = arith.constant 0 : index
    %412 = vector.load %arg7[%411, %c0_127, %c0_128] : memref<8x2x384xf32, #tpu.memory_space<vmem>>, vector<1x2x384xf32>
    %413 = vector.shape_cast %412 : vector<1x2x384xf32> to vector<2x384xf32>
    %414 = vector.extract_strided_slice %413 {offsets = [0, 0], sizes = [2, 256], strides = [1, 1]} : vector<2x384xf32> to vector<2x256xf32>
    %415 = vector.extract_strided_slice %410 {offsets = [0, 0], sizes = [2, 256], strides = [1, 1]} : vector<2x384xf32> to vector<2x256xf32>
    %416 = arith.addf %414, %415 : vector<2x256xf32>
    %417 = arith.negf %416 : vector<2x256xf32>
    %418 = math.exp %417 : vector<2x256xf32>
    %cst_129 = arith.constant 1.000000e+00 : f32
    %419 = vector.broadcast %cst_129 : f32 to vector<2x256xf32>
    %420 = arith.addf %419, %418 : vector<2x256xf32>
    %421 = arith.divf %419, %420 : vector<2x256xf32>
    %422 = vector.extract_strided_slice %421 {offsets = [0, 0], sizes = [2, 128], strides = [1, 1]} : vector<2x256xf32> to vector<2x128xf32>
    %423 = vector.extract_strided_slice %421 {offsets = [0, 128], sizes = [2, 128], strides = [1, 1]} : vector<2x256xf32> to vector<2x128xf32>
    %424 = vector.extract_strided_slice %413 {offsets = [0, 256], sizes = [2, 128], strides = [1, 1]} : vector<2x384xf32> to vector<2x128xf32>
    %425 = vector.extract_strided_slice %410 {offsets = [0, 256], sizes = [2, 128], strides = [1, 1]} : vector<2x384xf32> to vector<2x128xf32>
    %426 = arith.mulf %422, %425 : vector<2x128xf32>
    %427 = arith.addf %424, %426 : vector<2x128xf32>
    %428 = math.tanh %427 : vector<2x128xf32>
    %429 = arith.subf %401, %428 : vector<2x128xf32>
    %430 = arith.mulf %423, %429 : vector<2x128xf32>
    %431 = arith.addf %428, %430 : vector<2x128xf32>
    %cst_130 = arith.constant dense<0.000000e+00> : vector<2x128xf32>
    %432 = tpu.matmul %431, %0, %cst_130 {dimension_numbers = #tpu.dot_dimension_numbers<[1], [0], [0], [1], [0, 0, 1, 1], [], []>} : vector<2x128xf32>, vector<128x128xf32>, vector<2x128xf32> -> vector<2x128xf32>
    %433 = vector.broadcast %1 : vector<1x128xf32> to vector<2x128xf32>
    %434 = arith.addf %432, %433 : vector<2x128xf32>
    %435 = vector.extract_strided_slice %434 {offsets = [0, 0], sizes = [2, 32], strides = [1, 1]} : vector<2x128xf32> to vector<2x32xf32>
    %436 = arith.index_cast %c6_i32_125 : i32 to index
    %c0_131 = arith.constant 0 : index
    %c0_132 = arith.constant 0 : index
    %437 = vector.load %arg6[%436, %c0_131, %c0_132] : memref<8x2x32xf32, #tpu.memory_space<vmem>>, vector<1x2x32xf32>
    %438 = vector.shape_cast %437 : vector<1x2x32xf32> to vector<2x32xf32>
    %439 = vector.shape_cast %435 : vector<2x32xf32> to vector<1x2x32xf32>
    tpu.vector_store %arg6[%436, %c0_131, %c0_132], %439 {strides = array<i32>} : memref<8x2x32xf32, #tpu.memory_space<vmem>>, vector<1x2x32xf32>,
    %c7_i32_133 = arith.constant 7 : i32
    %cst_134 = arith.constant dense<0.000000e+00> : vector<2x384xf32>
    %440 = tpu.matmul %431, %228, %cst_134 {dimension_numbers = #tpu.dot_dimension_numbers<[1], [0], [0], [1], [0, 0, 1, 1], [], []>} : vector<2x128xf32>, vector<128x384xf32>, vector<2x384xf32> -> vector<2x384xf32>
    %441 = arith.index_cast %c7_i32_133 : i32 to index
    %c0_135 = arith.constant 0 : index
    %c0_136 = arith.constant 0 : index
    %442 = vector.load %arg7[%441, %c0_135, %c0_136] : memref<8x2x384xf32, #tpu.memory_space<vmem>>, vector<1x2x384xf32>
    %443 = vector.shape_cast %442 : vector<1x2x384xf32> to vector<2x384xf32>
    %444 = vector.extract_strided_slice %443 {offsets = [0, 0], sizes = [2, 256], strides = [1, 1]} : vector<2x384xf32> to vector<2x256xf32>
    %445 = vector.extract_strided_slice %440 {offsets = [0, 0], sizes = [2, 256], strides = [1, 1]} : vector<2x384xf32> to vector<2x256xf32>
    %446 = arith.addf %444, %445 : vector<2x256xf32>
    %447 = arith.negf %446 : vector<2x256xf32>
    %448 = math.exp %447 : vector<2x256xf32>
    %cst_137 = arith.constant 1.000000e+00 : f32
    %449 = vector.broadcast %cst_137 : f32 to vector<2x256xf32>
    %450 = arith.addf %449, %448 : vector<2x256xf32>
    %451 = arith.divf %449, %450 : vector<2x256xf32>
    %452 = vector.extract_strided_slice %451 {offsets = [0, 0], sizes = [2, 128], strides = [1, 1]} : vector<2x256xf32> to vector<2x128xf32>
    %453 = vector.extract_strided_slice %451 {offsets = [0, 128], sizes = [2, 128], strides = [1, 1]} : vector<2x256xf32> to vector<2x128xf32>
    %454 = vector.extract_strided_slice %443 {offsets = [0, 256], sizes = [2, 128], strides = [1, 1]} : vector<2x384xf32> to vector<2x128xf32>
    %455 = vector.extract_strided_slice %440 {offsets = [0, 256], sizes = [2, 128], strides = [1, 1]} : vector<2x384xf32> to vector<2x128xf32>
    %456 = arith.mulf %452, %455 : vector<2x128xf32>
    %457 = arith.addf %454, %456 : vector<2x128xf32>
    %458 = math.tanh %457 : vector<2x128xf32>
    %459 = arith.subf %431, %458 : vector<2x128xf32>
    %460 = arith.mulf %453, %459 : vector<2x128xf32>
    %461 = arith.addf %458, %460 : vector<2x128xf32>
    %cst_138 = arith.constant dense<0.000000e+00> : vector<2x128xf32>
    %462 = tpu.matmul %461, %0, %cst_138 {dimension_numbers = #tpu.dot_dimension_numbers<[1], [0], [0], [1], [0, 0, 1, 1], [], []>} : vector<2x128xf32>, vector<128x128xf32>, vector<2x128xf32> -> vector<2x128xf32>
    %463 = vector.broadcast %1 : vector<1x128xf32> to vector<2x128xf32>
    %464 = arith.addf %462, %463 : vector<2x128xf32>
    %465 = vector.extract_strided_slice %464 {offsets = [0, 0], sizes = [2, 32], strides = [1, 1]} : vector<2x128xf32> to vector<2x32xf32>
    %466 = arith.index_cast %c7_i32_133 : i32 to index
    %c0_139 = arith.constant 0 : index
    %c0_140 = arith.constant 0 : index
    %467 = vector.load %arg6[%466, %c0_139, %c0_140] : memref<8x2x32xf32, #tpu.memory_space<vmem>>, vector<1x2x32xf32>
    %468 = vector.shape_cast %467 : vector<1x2x32xf32> to vector<2x32xf32>
    %469 = vector.shape_cast %465 : vector<2x32xf32> to vector<1x2x32xf32>
    tpu.vector_store %arg6[%466, %c0_139, %c0_140], %469 {strides = array<i32>} : memref<8x2x32xf32, #tpu.memory_space<vmem>>, vector<1x2x32xf32>,
    %c8_i32_141 = arith.constant 8 : i32
    return
  }
  func.func @transform_0(%arg0: i32) -> (i32, i32, i32) {
    %c0_i32 = arith.constant 0 : i32
    %c0_i32_0 = arith.constant 0 : i32
    %c0_i32_1 = arith.constant 0 : i32
    return %c0_i32, %arg0, %c0_i32_0 : i32, i32, i32
  }
  func.func @transform_1(%arg0: i32) -> (i32, i32, i32) {
    %c0_i32 = arith.constant 0 : i32
    %c0_i32_0 = arith.constant 0 : i32
    %c0_i32_1 = arith.constant 0 : i32
    %c0_i32_2 = arith.constant 0 : i32
    return %c0_i32, %c0_i32_0, %c0_i32_1 : i32, i32, i32
  }
  func.func @transform_2(%arg0: i32) -> (i32, i32, i32) {
    %c0_i32 = arith.constant 0 : i32
    %c0_i32_0 = arith.constant 0 : i32
    %c0_i32_1 = arith.constant 0 : i32
    %c0_i32_2 = arith.constant 0 : i32
    return %c0_i32, %c0_i32_0, %c0_i32_1 : i32, i32, i32
  }
  func.func @transform_3(%arg0: i32) -> (i32, i32) {
    %c0_i32 = arith.constant 0 : i32
    %c0_i32_0 = arith.constant 0 : i32
    %c0_i32_1 = arith.constant 0 : i32
    return %c0_i32, %c0_i32_0 : i32, i32
  }
  func.func @transform_4(%arg0: i32) -> (i32, i32) {
    %c0_i32 = arith.constant 0 : i32
    %c0_i32_0 = arith.constant 0 : i32
    %c0_i32_1 = arith.constant 0 : i32
    return %c0_i32, %c0_i32_0 : i32, i32
  }
  func.func @transform_5(%arg0: i32) -> (i32, i32, i32) {
    %c0_i32 = arith.constant 0 : i32
    %c0_i32_0 = arith.constant 0 : i32
    %c0_i32_1 = arith.constant 0 : i32
    return %c0_i32, %arg0, %c0_i32_0 : i32, i32, i32
  }
}

</mosaic_0001>

<llo_original>
// kernel: _gru4rec_forward.1
$region0: #{_gru4rec_forward.1}
  #allocation0 [shape = 'u32[]', space=smem, size = 0x4, offset = 0x4, fixed_abs, tag = 'smem constant byte address 0x4 - core index']
  #allocation1 [shape = 'u32[144,128]{1,0:T(1,128)}', space=vmem, size = 0x12000, scoped, tag = 'internal scratch']
  #allocation2 [shape = 'f32[8,2,384]{2,1,0:T(2,128)}', space=vmem, size = 0x6000, scoped, tag = 'scratch operand']
  #allocation3 [shape = 'f32[8,2,128]{2,1,0:T(2,128)}', space=vmem, size = 0x2000, scoped, tag = 'scratch operand']
  %s0 = inlined_call_operand.vmem [shape: f32[8,2,128], index: 0, kind: input, shape index: {}]
  %s1 = inlined_call_operand.hbm [shape: f32[2,128,384], index: 1, kind: input, shape index: {}]
  %s2 = inlined_call_operand.hbm [shape: f32[2,128,384], index: 2, kind: input, shape index: {}]
  %s3 = inlined_call_operand.hbm [shape: f32[128,128], index: 3, kind: input, shape index: {}]
  %s4 = inlined_call_operand.vmem [shape: f32[1,128], index: 4, kind: input, shape index: {}]
  %s5 = inlined_call_operand.vmem [shape: f32[8,2,32], index: 5, kind: output, shape index: {}]
  %s6 = sld [smem:[#allocation0]]
  $region42: #{_gru4rec_forward.1} parent=0
    _
  %s8 = ssub.s32 1, %s6
  %s9 = scalar_select 0, %s8, %s6
  $region1: #{_gru4rec_forward.1} parent=0
    #allocation4 [shape = 'u8[393216]{0}', space=vmem, size = 0x60000, scoped, tag = 'input window, operand 1, single buffered']
    #allocation5 [shape = 's32[1]{0}', space=sflag, size = 0x4, scoped, tag = 'scoped memory for _gru4rec_forward.1']
    #allocation6 [shape = 'u8[393216]{0}', space=vmem, size = 0x60000, scoped, tag = 'input window, operand 2, single buffered']
    #allocation7 [shape = 's32[1]{0}', space=sflag, size = 0x4, scoped, tag = 'scoped memory for _gru4rec_forward.1']
    #allocation8 [shape = 'u8[65536]{0}', space=vmem, size = 0x10000, scoped, tag = 'input window, operand 3, single buffered']
    %10 = vsyncpa [#allocation5], 0
    %11 = vsyncpa [#allocation7], 0
    // Predicated region
    $region2: #{_gru4rec_forward.1} parent=1 // pred_check
      _
    $region3: #{_gru4rec_forward.1} parent=1 // pred_check_branch
      %13 = sbr.rel (0) target = $region5
    $region4: #{_gru4rec_forward.1} parent=1 // pred_region
      _
    $region5: #{_gru4rec_forward.1} parent=1 // pred_fallthru
      _
    // Predicated region
    $region6: #{_gru4rec_forward.1} parent=1 // pred_check
      _
    $region7: #{_gru4rec_forward.1} parent=1 // pred_check_branch
      %15 = sbr.rel (0) target = $region9
    $region8: #{_gru4rec_forward.1} parent=1 // pred_region
      %s17 = ssub.s32 12288, 12288
      %18 = vsyncadd [#allocation5], %s17
      %s19 = sshll.u32 [#allocation4], 4
      %s20 = int_to_ptr.vmem [resolvable:$true] %s19
      %25 = dma.hbm_to_vmem [thread:$0]  %s1, 12288, %s20, [#allocation5], 384, 384, 24
    $region9: #{_gru4rec_forward.1} parent=1 // pred_fallthru
      _
    // Predicated region
    $region10: #{_gru4rec_forward.1} parent=1 // pred_check
      _
    $region11: #{_gru4rec_forward.1} parent=1 // pred_check_branch
      %27 = sbr.rel (0) target = $region13
    $region12: #{_gru4rec_forward.1} parent=1 // pred_region
      %s29 = ssub.s32 12288, 12288
      %30 = vsyncadd [#allocation7], %s29
      %s31 = sshll.u32 [#allocation6], 4
      %s32 = int_to_ptr.vmem [resolvable:$true] %s31
      %37 = dma.hbm_to_vmem [thread:$0]  %s2, 12288, %s32, [#allocation7], 384, 384, 24
    $region13: #{_gru4rec_forward.1} parent=1 // pred_fallthru
      _
    // Predicated region
    $region14: #{_gru4rec_forward.1} parent=1 // pred_check
      _
    $region15: #{_gru4rec_forward.1} parent=1 // pred_check_branch
      %39 = sbr.rel (0) target = $region17
    $region16: #{_gru4rec_forward.1} parent=1 // pred_region
      %s41 = ssub.s32 2048, 2048
      %42 = vsyncadd [#allocation7], %s41
      %s43 = sshll.u32 [#allocation8], 4
      %s44 = int_to_ptr.vmem [resolvable:$true] %s43
      %49 = dma.hbm_to_vmem [thread:$0]  %s3, 2048, %s44, [#allocation7], 128, 128, 8
    $region17: #{_gru4rec_forward.1} parent=1 // pred_fallthru
      _
    // Predicated region
    $region18: #{_gru4rec_forward.1} parent=1 // pred_check
      _
    $region19: #{_gru4rec_forward.1} parent=1 // pred_check_branch
      %51 = sbr.rel (0) target = $region21
    $region20: #{_gru4rec_forward.1} parent=1 // pred_region
      _
    $region21: #{_gru4rec_forward.1} parent=1 // pred_fallthru
      _
    // Predicated region
    $region22: #{_gru4rec_forward.1} parent=1 // pred_check
      _
    $region23: #{_gru4rec_forward.1} parent=1 // pred_check_branch
      %53 = sbr.rel (0) target = $region25
    $region24: #{_gru4rec_forward.1} parent=1 // pred_region
      %54 = dma.done [#allocation5], 12288
    $region25: #{_gru4rec_forward.1} parent=1 // pred_fallthru
      _
    // Predicated region
    $region26: #{_gru4rec_forward.1} parent=1 // pred_check
      _
    $region27: #{_gru4rec_forward.1} parent=1 // pred_check_branch
      %56 = sbr.rel (0) target = $region29
    $region28: #{_gru4rec_forward.1} parent=1 // pred_region
      %57 = dma.done [#allocation7], 12288
    $region29: #{_gru4rec_forward.1} parent=1 // pred_fallthru
      _
    // Predicated region
    $region30: #{_gru4rec_forward.1} parent=1 // pred_check
      _
    $region31: #{_gru4rec_forward.1} parent=1 // pred_check_branch
      %59 = sbr.rel (0) target = $region33
    $region32: #{_gru4rec_forward.1} parent=1 // pred_region
      %60 = dma.done [#allocation7], 2048
    $region33: #{_gru4rec_forward.1} parent=1 // pred_fallthru
      _
    %v61 = vld [vmem:[#allocation8] sm:$0xff]
    %v62 = vld [vmem:[#allocation8 + $0x8] sm:$0xff]
    %v63 = vld [vmem:[#allocation8 + $0x10] sm:$0xff]
    %v64 = vld [vmem:[#allocation8 + $0x18] sm:$0xff]
    %v65 = vld [vmem:[#allocation8 + $0x20] sm:$0xff]
    %v66 = vld [vmem:[#allocation8 + $0x28] sm:$0xff]
    %v67 = vld [vmem:[#allocation8 + $0x30] sm:$0xff]
    %v68 = vld [vmem:[#allocation8 + $0x38] sm:$0xff]
    %v69 = vld [vmem:[#allocation8 + $0x40] sm:$0xff]
    %v70 = vld [vmem:[#allocation8 + $0x48] sm:$0xff]
    %v71 = vld [vmem:[#allocation8 + $0x50] sm:$0xff]
    %v72 = vld [vmem:[#allocation8 + $0x58] sm:$0xff]
    %v73 = vld [vmem:[#allocation8 + $0x60] sm:$0xff]
    %v74 = vld [vmem:[#allocation8 + $0x68] sm:$0xff]
    %v75 = vld [vmem:[#allocation8 + $0x70] sm:$0xff]
    %v76 = vld [vmem:[#allocation8 + $0x78] sm:$0xff]
    %v77 = vld [vmem:[%s4] sm:$0x1]
    %v78 = vld [vmem:[%s0] sm:$0x3]
    %v79 = vld [vmem:[%s0 + $0x2] sm:$0x3]
    %v80 = vld [vmem:[%s0 + $0x4] sm:$0x3]
    %v81 = vld [vmem:[%s0 + $0x6] sm:$0x3]
    %v82 = vld [vmem:[%s0 + $0x8] sm:$0x3]
    %v83 = vld [vmem:[%s0 + $0xa] sm:$0x3]
    %v84 = vld [vmem:[%s0 + $0xc] sm:$0x3]
    %v85 = vld [vmem:[%s0 + $0xe] sm:$0x3]
    %v86 = vld [vmem:[#allocation4] sm:$0xff]
    %v87 = vld [vmem:[#allocation4 + $0x8] sm:$0xff]
    %v88 = vld [vmem:[#allocation4 + $0x10] sm:$0xff]
    %v89 = vld [vmem:[#allocation4 + $0x18] sm:$0xff]
    %v90 = vld [vmem:[#allocation4 + $0x20] sm:$0xff]
    %v91 = vld [vmem:[#allocation4 + $0x28] sm:$0xff]
    %v92 = vld [vmem:[#allocation4 + $0x30] sm:$0xff]
    %v93 = vld [vmem:[#allocation4 + $0x38] sm:$0xff]
    %v94 = vld [vmem:[#allocation4 + $0x40] sm:$0xff]
    %v95 = vld [vmem:[#allocation4 + $0x48] sm:$0xff]
    %v96 = vld [vmem:[#allocation4 + $0x50] sm:$0xff]
    %v97 = vld [vmem:[#allocation4 + $0x58] sm:$0xff]
    %v98 = vld [vmem:[#allocation4 + $0x60] sm:$0xff]
    %v99 = vld [vmem:[#allocation4 + $0x68] sm:$0xff]
    %v100 = vld [vmem:[#allocation4 + $0x70] sm:$0xff]
    %v101 = vld [vmem:[#allocation4 + $0x78] sm:$0xff]
    %v102 = vld [vmem:[#allocation4 + $0x80] sm:$0xff]
    %v103 = vld [vmem:[#allocation4 + $0x88] sm:$0xff]
    %v104 = vld [vmem:[#allocation4 + $0x90] sm:$0xff]
    %v105 = vld [vmem:[#allocation4 + $0x98] sm:$0xff]
    %v106 = vld [vmem:[#allocation4 + $0xa0] sm:$0xff]
    %v107 = vld [vmem:[#allocation4 + $0xa8] sm:$0xff]
    %v108 = vld [vmem:[#allocation4 + $0xb0] sm:$0xff]
    %v109 = vld [vmem:[#allocation4 + $0xb8] sm:$0xff]
    %v110 = vld [vmem:[#allocation4 + $0xc0] sm:$0xff]
    %v111 = vld [vmem:[#allocation4 + $0xc8] sm:$0xff]
    %v112 = vld [vmem:[#allocation4 + $0xd0] sm:$0xff]
    %v113 = vld [vmem:[#allocation4 + $0xd8] sm:$0xff]
    %v114 = vld [vmem:[#allocation4 + $0xe0] sm:$0xff]
    %v115 = vld [vmem:[#allocation4 + $0xe8] sm:$0xff]
    %v116 = vld [vmem:[#allocation4 + $0xf0] sm:$0xff]
    %v117 = vld [vmem:[#allocation4 + $0xf8] sm:$0xff]
    %v118 = vld [vmem:[#allocation4 + $0x100] sm:$0xff]
    %v119 = vld [vmem:[#allocation4 + $0x108] sm:$0xff]
    %v120 = vld [vmem:[#allocation4 + $0x110] sm:$0xff]
    %v121 = vld [vmem:[#allocation4 + $0x118] sm:$0xff]
    %v122 = vld [vmem:[#allocation4 + $0x120] sm:$0xff]
    %v123 = vld [vmem:[#allocation4 + $0x128] sm:$0xff]
    %v124 = vld [vmem:[#allocation4 + $0x130] sm:$0xff]
    %v125 = vld [vmem:[#allocation4 + $0x138] sm:$0xff]
    %v126 = vld [vmem:[#allocation4 + $0x140] sm:$0xff]
    %v127 = vld [vmem:[#allocation4 + $0x148] sm:$0xff]
    %v128 = vld [vmem:[#allocation4 + $0x150] sm:$0xff]
    %v129 = vld [vmem:[#allocation4 + $0x158] sm:$0xff]
    %v130 = vld [vmem:[#allocation4 + $0x160] sm:$0xff]
    %v131 = vld [vmem:[#allocation4 + $0x168] sm:$0xff]
    %v132 = vld [vmem:[#allocation4 + $0x170] sm:$0xff]
    %v133 = vld [vmem:[#allocation4 + $0x178] sm:$0xff]
    %v142 = vcombine.low %v78, %v79
    %v143 = vcombine.low %v80, %v81
    %v145 = vunpack.c.l.s4 1983009808
    %v146 = vunpack.c.0.s8 %v145
    %v147 = vlaneseq
    %v148 = vshrl.u32 %v147, 7
    %v149 = vsub.s32 %v146, %v148
    %v150 = vrot.slane %v142, %v149
    %v152 = vunpack.c.l.s4 1983009808
    %v153 = vunpack.c.0.s8 %v152
    %v154 = vlaneseq
    %v155 = vshrl.u32 %v154, 7
    %v156 = vsub.s32 %v153, %v155
    %v157 = vrot.slane %v143, %v156
    %v158 = vcombine.low %v150, %v157
    %v159 = vcombine.low %v82, %v83
    %v160 = vcombine.low %v84, %v85
    %v162 = vunpack.c.l.s4 1983009808
    %v163 = vunpack.c.0.s8 %v162
    %v164 = vlaneseq
    %v165 = vshrl.u32 %v164, 7
    %v166 = vsub.s32 %v163, %v165
    %v167 = vrot.slane %v159, %v166
    %v169 = vunpack.c.l.s4 1983009808
    %v170 = vunpack.c.0.s8 %v169
    %v171 = vlaneseq
    %v172 = vshrl.u32 %v171, 7
    %v173 = vsub.s32 %v170, %v172
    %v174 = vrot.slane %v160, %v173
    %v175 = vcombine.low %v167, %v174
    %178 = vmatprep.subr.mxu0 %v87
    %179 = vmatpush1.msra.mxu0 %v86
    %180 = vmatprep.subr.mxu0 %v90
    %181 = vmatpush1.msra.mxu0 %v89
    %182 = vmatprep.subr.mxu0 %v93
    %183 = vmatpush1.msra.mxu0 %v92
    %184 = vmatprep.subr.mxu0 %v96
    %185 = vmatpush1.msra.mxu0 %v95
    %186 = vmatprep.subr.mxu0 %v99
    %187 = vmatpush1.msra.mxu0 %v98
    %188 = vmatprep.subr.mxu0 %v102
    %189 = vmatpush1.msra.mxu0 %v101
    %190 = vmatprep.subr.mxu0 %v105
    %191 = vmatpush1.msra.mxu0 %v104
    %192 = vmatprep.subr.mxu0 %v108
    %193 = vmatpush1.msra.mxu0 %v107
    %194 = vmatprep.subr.mxu0 %v111
    %195 = vmatpush1.msra.mxu0 %v110
    %196 = vmatprep.subr.mxu0 %v114
    %197 = vmatpush1.msra.mxu0 %v113
    %198 = vmatprep.subr.mxu0 %v117
    %199 = vmatpush1.msra.mxu0 %v116
    %200 = vmatprep.subr.mxu0 %v120
    %201 = vmatpush1.msra.mxu0 %v119
    %202 = vmatprep.subr.mxu0 %v123
    %203 = vmatpush1.msra.mxu0 %v122
    %204 = vmatprep.subr.mxu0 %v126
    %205 = vmatpush1.msra.mxu0 %v125
    %206 = vmatprep.subr.mxu0 %v129
    %207 = vmatpush1.msra.mxu0 %v128
    %208 = vmatprep.subr.mxu0 %v132
    %209 = vmatpush1.msra.mxu0 %v131
    %210 = vmatprep.subr.mxu0 0.0
    %211 = vmatpush1.msra.mxu0 0.0
    %212 = vmatprep.subr.mxu0 0.0
    %213 = vmatpush1.msra.mxu0 0.0
    %214 = vmatprep.subr.mxu0 0.0
    %215 = vmatpush1.msra.mxu0 0.0
    %216 = vmatprep.subr.mxu0 0.0
    %217 = vmatpush1.msra.mxu0 0.0
    %218 = vmatprep.subr.mxu0 0.0
    %219 = vmatpush1.msra.mxu0 0.0
    %220 = vmatprep.subr.mxu0 0.0
    %221 = vmatpush1.msra.mxu0 0.0
    %222 = vmatprep.subr.mxu0 0.0
    %223 = vmatpush1.msra.mxu0 0.0
    %224 = vmatprep.subr.mxu0 0.0
    %225 = vmatpush1.msra.mxu0 0.0
    %226 = vmatprep.subr.mxu0 0.0
    %227 = vmatpush1.msra.mxu0 0.0
    %228 = vmatprep.subr.mxu0 0.0
    %229 = vmatpush1.msra.mxu0 0.0
    %230 = vmatprep.subr.mxu0 0.0
    %231 = vmatpush1.msra.mxu0 0.0
    %232 = vmatprep.subr.mxu0 0.0
    %233 = vmatpush1.msra.mxu0 0.0
    %234 = vmatprep.subr.mxu0 0.0
    %235 = vmatpush1.msra.mxu0 0.0
    %236 = vmatprep.subr.mxu0 0.0
    %237 = vmatpush1.msra.mxu0 0.0
    %238 = vmatprep.subr.mxu0 0.0
    %239 = vmatpush1.msra.mxu0 0.0
    %240 = vmatprep.subr.mxu0 0.0
    %241 = vmatpush1.msra.mxu0 0.0
    %242 = vmatprep.mubr.f32.mxu0 0.0
    %243 = vmatmul.mubr.f32.gmra.mrb[0].mxu0 %v158
    %v244 = vpop.f32.mrb[0].mxu0
    %v245 = vadd.f32 0.0, %v244
    %v246 = vpop.f32.mrb[0].mxu0
    %v247 = vadd.f32 0.0, %v246
    %248 = vmatprep.mubr.f32.mxu0 0.0
    %249 = vmatmul.mubr.f32.gmra.mrb[0].mxu0 %v175
    %v250 = vpop.f32.mrb[0].mxu0
    %v251 = vadd.f32 0.0, %v250
    %v252 = vpop.f32.mrb[0].mxu0
    %v253 = vadd.f32 0.0, %v252
    %254 = vdwg.mxu0
    %255 = vmatprep.subr.mxu0 0.0
    %256 = vmatpush1.msra.mxu0 %v88
    %257 = vmatprep.subr.mxu0 0.0
    %258 = vmatpush1.msra.mxu0 %v91
    %259 = vmatprep.subr.mxu0 0.0
    %260 = vmatpush1.msra.mxu0 %v94
    %261 = vmatprep.subr.mxu0 0.0
    %262 = vmatpush1.msra.mxu0 %v97
    %263 = vmatprep.subr.mxu0 0.0
    %264 = vmatpush1.msra.mxu0 %v100
    %265 = vmatprep.subr.mxu0 0.0
    %266 = vmatpush1.msra.mxu0 %v103
    %267 = vmatprep.subr.mxu0 0.0
    %268 = vmatpush1.msra.mxu0 %v106
    %269 = vmatprep.subr.mxu0 0.0
    %270 = vmatpush1.msra.mxu0 %v109
    %271 = vmatprep.subr.mxu0 0.0
    %272 = vmatpush1.msra.mxu0 %v112
    %273 = vmatprep.subr.mxu0 0.0
    %274 = vmatpush1.msra.mxu0 %v115
    %275 = vmatprep.subr.mxu0 0.0
    %276 = vmatpush1.msra.mxu0 %v118
    %277 = vmatprep.subr.mxu0 0.0
    %278 = vmatpush1.msra.mxu0 %v121
    %279 = vmatprep.subr.mxu0 0.0
    %280 = vmatpush1.msra.mxu0 %v124
    %281 = vmatprep.subr.mxu0 0.0
    %282 = vmatpush1.msra.mxu0 %v127
    %283 = vmatprep.subr.mxu0 0.0
    %284 = vmatpush1.msra.mxu0 %v130
    %285 = vmatprep.subr.mxu0 0.0
    %286 = vmatpush1.msra.mxu0 %v133
    %287 = vmatprep.subr.mxu0 0.0
    %288 = vmatpush1.msra.mxu0 0.0
    %289 = vmatprep.subr.mxu0 0.0
    %290 = vmatpush1.msra.mxu0 0.0
    %291 = vmatprep.subr.mxu0 0.0
    %292 = vmatpush1.msra.mxu0 0.0
    %293 = vmatprep.subr.mxu0 0.0
    %294 = vmatpush1.msra.mxu0 0.0
    %295 = vmatprep.subr.mxu0 0.0
    %296 = vmatpush1.msra.mxu0 0.0
    %297 = vmatprep.subr.mxu0 0.0
    %298 = vmatpush1.msra.mxu0 0.0
    %299 = vmatprep.subr.mxu0 0.0
    %300 = vmatpush1.msra.mxu0 0.0
    %301 = vmatprep.subr.mxu0 0.0
    %302 = vmatpush1.msra.mxu0 0.0
    %303 = vmatprep.subr.mxu0 0.0
    %304 = vmatpush1.msra.mxu0 0.0
    %305 = vmatprep.subr.mxu0 0.0
    %306 = vmatpush1.msra.mxu0 0.0
    %307 = vmatprep.subr.mxu0 0.0
    %308 = vmatpush1.msra.mxu0 0.0
    %309 = vmatprep.subr.mxu0 0.0
    %310 = vmatpush1.msra.mxu0 0.0
    %311 = vmatprep.subr.mxu0 0.0
    %312 = vmatpush1.msra.mxu0 0.0
    %313 = vmatprep.subr.mxu0 0.0
    %314 = vmatpush1.msra.mxu0 0.0
    %315 = vmatprep.subr.mxu0 0.0
    %316 = vmatpush1.msra.mxu0 0.0
    %317 = vmatprep.subr.mxu0 0.0
    %318 = vmatpush1.msra.mxu0 0.0
    %319 = vmatprep.mubr.f32.mxu0 0.0
    %320 = vmatmul.mubr.f32.gmra.mrb[0].mxu0 %v158
    %v321 = vpop.f32.mrb[0].mxu0
    %v322 = vadd.f32 0.0, %v321
    %v323 = vpop.f32.mrb[0].mxu0
    %324 = vmatprep.mubr.f32.mxu0 0.0
    %325 = vmatmul.mubr.f32.gmra.mrb[0].mxu0 %v175
    %v326 = vpop.f32.mrb[0].mxu0
    %v327 = vadd.f32 0.0, %v326
    %v328 = vpop.f32.mrb[0].mxu0
    %329 = vdwg.mxu0
    %v336 = vcombine.low %v245, %v247
    %v337 = vcombine.high %v245, %v247
    %v338 = vcombine.high %v322, %v322
    %v340 = vunpack.c.l.s4 1983009808
    %v341 = vunpack.c.0.s8 %v340
    %v342 = vlaneseq
    %v343 = vshrl.u32 %v342, 7
    %v344 = vsub.s32 %v341, %v343
    %v345 = vrot.slane %v336, %v344
    %v347 = vunpack.c.l.s4 1983009808
    %v348 = vunpack.c.0.s8 %v347
    %v349 = vlaneseq
    %v350 = vshrl.u32 %v349, 7
    %v351 = vsub.s32 %v348, %v350
    %v352 = vrot.slane %v337, %v351
    %v354 = vunpack.c.l.s4 1983009808
    %v355 = vunpack.c.0.s8 %v354
    %v356 = vlaneseq
    %v357 = vshrl.u32 %v356, 7
    %v358 = vsub.s32 %v355, %v357
    %v359 = vrot.slane %v322, %v358
    %v361 = vunpack.c.l.s4 1983009808
    %v362 = vunpack.c.0.s8 %v361
    %v363 = vlaneseq
    %v364 = vshrl.u32 %v363, 7
    %v365 = vsub.s32 %v362, %v364
    %v366 = vrot.slane %v338, %v365
    %v367 = vcombine.low %v345, %v359
    %v368 = vcombine.high %v345, %v359
    %v369 = vcombine.low %v352, %v366
    %v370 = vcombine.high %v352, %v366
    %v371 = vcombine.low %v251, %v253
    %v372 = vcombine.high %v251, %v253
    %v373 = vcombine.high %v327, %v327
    %v375 = vunpack.c.l.s4 1983009808
    %v376 = vunpack.c.0.s8 %v375
    %v377 = vlaneseq
    %v378 = vshrl.u32 %v377, 7
    %v379 = vsub.s32 %v376, %v378
    %v380 = vrot.slane %v371, %v379
    %v382 = vunpack.c.l.s4 1983009808
    %v383 = vunpack.c.0.s8 %v382
    %v384 = vlaneseq
    %v385 = vshrl.u32 %v384, 7
    %v386 = vsub.s32 %v383, %v385
    %v387 = vrot.slane %v372, %v386
    %v389 = vunpack.c.l.s4 1983009808
    %v390 = vunpack.c.0.s8 %v389
    %v391 = vlaneseq
    %v392 = vshrl.u32 %v391, 7
    %v393 = vsub.s32 %v390, %v392
    %v394 = vrot.slane %v327, %v393
    %v396 = vunpack.c.l.s4 1983009808
    %v397 = vunpack.c.0.s8 %v396
    %v398 = vlaneseq
    %v399 = vshrl.u32 %v398, 7
    %v400 = vsub.s32 %v397, %v399
    %v401 = vrot.slane %v373, %v400
    %v402 = vcombine.low %v380, %v394
    %v403 = vcombine.high %v380, %v394
    %v404 = vcombine.low %v387, %v401
    %v405 = vcombine.high %v387, %v401
    %414 = vst [vmem:[#allocation2] sm:$0x3f] %v367
    %415 = vst [vmem:[#allocation2 + $0x6] sm:$0x3f] %v368
    %416 = vst [vmem:[#allocation2 + $0xc] sm:$0x3f] %v369
    %417 = vst [vmem:[#allocation2 + $0x12] sm:$0x3f] %v370
    %418 = vst [vmem:[#allocation2 + $0x18] sm:$0x3f] %v402
    %419 = vst [vmem:[#allocation2 + $0x1e] sm:$0x3f] %v403
    %420 = vst [vmem:[#allocation2 + $0x24] sm:$0x3f] %v404
    %421 = vst [vmem:[#allocation2 + $0x2a] sm:$0x3f] %v405
    %v422 = vld [vmem:[#allocation6] sm:$0xff]
    %v423 = vld [vmem:[#allocation6 + $0x8] sm:$0xff]
    %v424 = vld [vmem:[#allocation6 + $0x10] sm:$0xff]
    %v425 = vld [vmem:[#allocation6 + $0x18] sm:$0xff]
    %v426 = vld [vmem:[#allocation6 + $0x20] sm:$0xff]
    %v427 = vld [vmem:[#allocation6 + $0x28] sm:$0xff]
    %v428 = vld [vmem:[#allocation6 + $0x30] sm:$0xff]
    %v429 = vld [vmem:[#allocation6 + $0x38] sm:$0xff]
    %v430 = vld [vmem:[#allocation6 + $0x40] sm:$0xff]
    %v431 = vld [vmem:[#allocation6 + $0x48] sm:$0xff]
    %v432 = vld [vmem:[#allocation6 + $0x50] sm:$0xff]
    %v433 = vld [vmem:[#allocation6 + $0x58] sm:$0xff]
    %v434 = vld [vmem:[#allocation6 + $0x60] sm:$0xff]
    %v435 = vld [vmem:[#allocation6 + $0x68] sm:$0xff]
    %v436 = vld [vmem:[#allocation6 + $0x70] sm:$0xff]
    %v437 = vld [vmem:[#allocation6 + $0x78] sm:$0xff]
    %v438 = vld [vmem:[#allocation6 + $0x80] sm:$0xff]
    %v439 = vld [vmem:[#allocation6 + $0x88] sm:$0xff]
    %v440 = vld [vmem:[#allocation6 + $0x90] sm:$0xff]
    %v441 = vld [vmem:[#allocation6 + $0x98] sm:$0xff]
    %v442 = vld [vmem:[#allocation6 + $0xa0] sm:$0xff]
    %v443 = vld [vmem:[#allocation6 + $0xa8] sm:$0xff]
    %v444 = vld [vmem:[#allocation6 + $0xb0] sm:$0xff]
    %v445 = vld [vmem:[#allocation6 + $0xb8] sm:$0xff]
    %v446 = vld [vmem:[#allocation6 + $0xc0] sm:$0xff]
    %v447 = vld [vmem:[#allocation6 + $0xc8] sm:$0xff]
    %v448 = vld [vmem:[#allocation6 + $0xd0] sm:$0xff]
    %v449 = vld [vmem:[#allocation6 + $0xd8] sm:$0xff]
    %v450 = vld [vmem:[#allocation6 + $0xe0] sm:$0xff]
    %v451 = vld [vmem:[#allocation6 + $0xe8] sm:$0xff]
    %v452 = vld [vmem:[#allocation6 + $0xf0] sm:$0xff]
    %v453 = vld [vmem:[#allocation6 + $0xf8] sm:$0xff]
    %v454 = vld [vmem:[#allocation6 + $0x100] sm:$0xff]
    %v455 = vld [vmem:[#allocation6 + $0x108] sm:$0xff]
    %v456 = vld [vmem:[#allocation6 + $0x110] sm:$0xff]
    %v457 = vld [vmem:[#allocation6 + $0x118] sm:$0xff]
    %v458 = vld [vmem:[#allocation6 + $0x120] sm:$0xff]
    %v459 = vld [vmem:[#allocation6 + $0x128] sm:$0xff]
    %v460 = vld [vmem:[#allocation6 + $0x130] sm:$0xff]
    %v461 = vld [vmem:[#allocation6 + $0x138] sm:$0xff]
    %v462 = vld [vmem:[#allocation6 + $0x140] sm:$0xff]
    %v463 = vld [vmem:[#allocation6 + $0x148] sm:$0xff]
    %v464 = vld [vmem:[#allocation6 + $0x150] sm:$0xff]
    %v465 = vld [vmem:[#allocation6 + $0x158] sm:$0xff]
    %v466 = vld [vmem:[#allocation6 + $0x160] sm:$0xff]
    %v467 = vld [vmem:[#allocation6 + $0x168] sm:$0xff]
    %v468 = vld [vmem:[#allocation6 + $0x170] sm:$0xff]
    %v469 = vld [vmem:[#allocation6 + $0x178] sm:$0xff]
    %470 = vmatprep.subr.mxu0 %v423
    %471 = vmatpush1.msra.mxu0 %v422
    %472 = vmatprep.subr.mxu0 %v426
    %473 = vmatpush1.msra.mxu0 %v425
    %474 = vmatprep.subr.mxu0 %v429
    %475 = vmatpush1.msra.mxu0 %v428
    %476 = vmatprep.subr.mxu0 %v432
    %477 = vmatpush1.msra.mxu0 %v431
    %478 = vmatprep.subr.mxu0 %v435
    %479 = vmatpush1.msra.mxu0 %v434
    %480 = vmatprep.subr.mxu0 %v438
    %481 = vmatpush1.msra.mxu0 %v437
    %482 = vmatprep.subr.mxu0 %v441
    %483 = vmatpush1.msra.mxu0 %v440
    %484 = vmatprep.subr.mxu0 %v444
    %485 = vmatpush1.msra.mxu0 %v443
    %486 = vmatprep.subr.mxu0 %v447
    %487 = vmatpush1.msra.mxu0 %v446
    %488 = vmatprep.subr.mxu0 %v450
    %489 = vmatpush1.msra.mxu0 %v449
    %490 = vmatprep.subr.mxu0 %v453
    %491 = vmatpush1.msra.mxu0 %v452
    %492 = vmatprep.subr.mxu0 %v456
    %493 = vmatpush1.msra.mxu0 %v455
    %494 = vmatprep.subr.mxu0 %v459
    %495 = vmatpush1.msra.mxu0 %v458
    %496 = vmatprep.subr.mxu0 %v462
    %497 = vmatpush1.msra.mxu0 %v461
    %498 = vmatprep.subr.mxu0 %v465
    %499 = vmatpush1.msra.mxu0 %v464
    %500 = vmatprep.subr.mxu0 %v468
    %501 = vmatpush1.msra.mxu0 %v467
    %502 = vmatprep.subr.mxu0 0.0
    %503 = vmatpush1.msra.mxu0 0.0
    %504 = vmatprep.subr.mxu0 0.0
    %505 = vmatpush1.msra.mxu0 0.0
    %506 = vmatprep.subr.mxu0 0.0
    %507 = vmatpush1.msra.mxu0 0.0
    %508 = vmatprep.subr.mxu0 0.0
    %509 = vmatpush1.msra.mxu0 0.0
    %510 = vmatprep.subr.mxu0 0.0
    %511 = vmatpush1.msra.mxu0 0.0
    %512 = vmatprep.subr.mxu0 0.0
    %513 = vmatpush1.msra.mxu0 0.0
    %514 = vmatprep.subr.mxu0 0.0
    %515 = vmatpush1.msra.mxu0 0.0
    %516 = vmatprep.subr.mxu0 0.0
    %517 = vmatpush1.msra.mxu0 0.0
    %518 = vmatprep.subr.mxu0 0.0
    %519 = vmatpush1.msra.mxu0 0.0
    %520 = vmatprep.subr.mxu0 0.0
    %521 = vmatpush1.msra.mxu0 0.0
    %522 = vmatprep.subr.mxu0 0.0
    %523 = vmatpush1.msra.mxu0 0.0
    %524 = vmatprep.subr.mxu0 0.0
    %525 = vmatpush1.msra.mxu0 0.0
    %526 = vmatprep.subr.mxu0 0.0
    %527 = vmatpush1.msra.mxu0 0.0
    %528 = vmatprep.subr.mxu0 0.0
    %529 = vmatpush1.msra.mxu0 0.0
    %530 = vmatprep.subr.mxu0 0.0
    %531 = vmatpush1.msra.mxu0 0.0
    %532 = vmatprep.subr.mxu0 0.0
    %533 = vmatpush1.msra.mxu0 0.0
    %534 = vmatprep.mubr.f32.mxu0 0.0
    %535 = vmatmul.mubr.f32.gmra.mrb[0].mxu0 0.0
    %v536 = vpop.f32.mrb[0].mxu0
    %v537 = vadd.f32 0.0, %v536
    %v538 = vpop.f32.mrb[0].mxu0
    %v539 = vadd.f32 0.0, %v538
    %540 = vdwg.mxu0
    %541 = vmatprep.subr.mxu0 0.0
    %542 = vmatpush1.msra.mxu0 %v424
    %543 = vmatprep.subr.mxu0 0.0
    %544 = vmatpush1.msra.mxu0 %v427
    %545 = vmatprep.subr.mxu0 0.0
    %546 = vmatpush1.msra.mxu0 %v430
    %547 = vmatprep.subr.mxu0 0.0
    %548 = vmatpush1.msra.mxu0 %v433
    %549 = vmatprep.subr.mxu0 0.0
    %550 = vmatpush1.msra.mxu0 %v436
    %551 = vmatprep.subr.mxu0 0.0
    %552 = vmatpush1.msra.mxu0 %v439
    %553 = vmatprep.subr.mxu0 0.0
    %554 = vmatpush1.msra.mxu0 %v442
    %555 = vmatprep.subr.mxu0 0.0
    %556 = vmatpush1.msra.mxu0 %v445
    %557 = vmatprep.subr.mxu0 0.0
    %558 = vmatpush1.msra.mxu0 %v448
    %559 = vmatprep.subr.mxu0 0.0
    %560 = vmatpush1.msra.mxu0 %v451
    %561 = vmatprep.subr.mxu0 0.0
    %562 = vmatpush1.msra.mxu0 %v454
    %563 = vmatprep.subr.mxu0 0.0
    %564 = vmatpush1.msra.mxu0 %v457
    %565 = vmatprep.subr.mxu0 0.0
    %566 = vmatpush1.msra.mxu0 %v460
    %567 = vmatprep.subr.mxu0 0.0
    %568 = vmatpush1.msra.mxu0 %v463
    %569 = vmatprep.subr.mxu0 0.0
    %570 = vmatpush1.msra.mxu0 %v466
    %571 = vmatprep.subr.mxu0 0.0
    %572 = vmatpush1.msra.mxu0 %v469
    %573 = vmatprep.subr.mxu0 0.0
    %574 = vmatpush1.msra.mxu0 0.0
    %575 = vmatprep.subr.mxu0 0.0
    %576 = vmatpush1.msra.mxu0 0.0
    %577 = vmatprep.subr.mxu0 0.0
    %578 = vmatpush1.msra.mxu0 0.0
    %579 = vmatprep.subr.mxu0 0.0
    %580 = vmatpush1.msra.mxu0 0.0
    %581 = vmatprep.subr.mxu0 0.0
    %582 = vmatpush1.msra.mxu0 0.0
    %583 = vmatprep.subr.mxu0 0.0
    %584 = vmatpush1.msra.mxu0 0.0
    %585 = vmatprep.subr.mxu0 0.0
    %586 = vmatpush1.msra.mxu0 0.0
    %587 = vmatprep.subr.mxu0 0.0
    %588 = vmatpush1.msra.mxu0 0.0
    %589 = vmatprep.subr.mxu0 0.0
    %590 = vmatpush1.msra.mxu0 0.0
    %591 = vmatprep.subr.mxu0 0.0
    %592 = vmatpush1.msra.mxu0 0.0
    %593 = vmatprep.subr.mxu0 0.0
    %594 = vmatpush1.msra.mxu0 0.0
    %595 = vmatprep.subr.mxu0 0.0
    %596 = vmatpush1.msra.mxu0 0.0
    %597 = vmatprep.subr.mxu0 0.0
    %598 = vmatpush1.msra.mxu0 0.0
    %599 = vmatprep.subr.mxu0 0.0
    %600 = vmatpush1.msra.mxu0 0.0
    %601 = vmatprep.subr.mxu0 0.0
    %602 = vmatpush1.msra.mxu0 0.0
    %603 = vmatprep.subr.mxu0 0.0
    %604 = vmatpush1.msra.mxu0 0.0
    %605 = vmatprep.mubr.f32.mxu0 0.0
    %606 = vmatmul.mubr.f32.gmra.mrb[0].mxu0 0.0
    %v607 = vpop.f32.mrb[0].mxu0
    %v608 = vadd.f32 0.0, %v607
    %v609 = vpop.f32.mrb[0].mxu0
    %610 = vdwg.mxu0
    %v611 = vld [vmem:[#allocation2] sm:$0x3f]
    %v614 = vcombine.low %v537, %v539
    %v616 = vunpack.c.l.s4 1983009808
    %v617 = vunpack.c.0.s8 %v616
    %v618 = vlaneseq
    %v619 = vshrl.u32 %v618, 7
    %v620 = vsub.s32 %v617, %v619
    %v621 = vrot.slane %v614, %v620
    %v623 = vadd.f32 %v611, %v621
    %v624 = vxor.u32 %v623, 2147483648
    %v625 = vmul.f32 %v624, 1.442695
    %v626 = vpow.pop %v625
    %v627 = vadd.f32 %v626, 1.0
    %v628 = vrcp.pop %v627
    %v629 = vmul.f32 1.0, %v628
    %v630 = vmul.f32 %v629, %v608
    %v632 = vrot.slane %v611, 4
    %v634 = vadd.f32 %v632, %v630
    %v635 = vtanh.pop %v634
    %v636 = vsub.f32 0.0, %v635
    %v638 = vrot.slane %v629, 2
    %v640 = vmul.f32 %v638, %v636
    %v641 = vadd.f32 %v635, %v640
    %642 = vst [vmem:[#allocation3] sm:$0x3] %v641
    %643 = vmatprep.subr.mxu0 %v423
    %644 = vmatpush1.msra.mxu0 %v422
    %645 = vmatprep.subr.mxu0 %v426
    %646 = vmatpush1.msra.mxu0 %v425
    %647 = vmatprep.subr.mxu0 %v429
    %648 = vmatpush1.msra.mxu0 %v428
    %649 = vmatprep.subr.mxu0 %v432
    %650 = vmatpush1.msra.mxu0 %v431
    %651 = vmatprep.subr.mxu0 %v435
    %652 = vmatpush1.msra.mxu0 %v434
    %653 = vmatprep.subr.mxu0 %v438
    %654 = vmatpush1.msra.mxu0 %v437
    %655 = vmatprep.subr.mxu0 %v441
    %656 = vmatpush1.msra.mxu0 %v440
    %657 = vmatprep.subr.mxu0 %v444
    %658 = vmatpush1.msra.mxu0 %v443
    %659 = vmatprep.subr.mxu0 %v447
    %660 = vmatpush1.msra.mxu0 %v446
    %661 = vmatprep.subr.mxu0 %v450
    %662 = vmatpush1.msra.mxu0 %v449
    %663 = vmatprep.subr.mxu0 %v453
    %664 = vmatpush1.msra.mxu0 %v452
    %665 = vmatprep.subr.mxu0 %v456
    %666 = vmatpush1.msra.mxu0 %v455
    %667 = vmatprep.subr.mxu0 %v459
    %668 = vmatpush1.msra.mxu0 %v458
    %669 = vmatprep.subr.mxu0 %v462
    %670 = vmatpush1.msra.mxu0 %v461
    %671 = vmatprep.subr.mxu0 %v465
    %672 = vmatpush1.msra.mxu0 %v464
    %673 = vmatprep.subr.mxu0 %v468
    %674 = vmatpush1.msra.mxu0 %v467
    %675 = vmatprep.subr.mxu0 0.0
    %676 = vmatpush1.msra.mxu0 0.0
    %677 = vmatprep.subr.mxu0 0.0
    %678 = vmatpush1.msra.mxu0 0.0
    %679 = vmatprep.subr.mxu0 0.0
    %680 = vmatpush1.msra.mxu0 0.0
    %681 = vmatprep.subr.mxu0 0.0
    %682 = vmatpush1.msra.mxu0 0.0
    %683 = vmatprep.subr.mxu0 0.0
    %684 = vmatpush1.msra.mxu0 0.0
    %685 = vmatprep.subr.mxu0 0.0
    %686 = vmatpush1.msra.mxu0 0.0
    %687 = vmatprep.subr.mxu0 0.0
    %688 = vmatpush1.msra.mxu0 0.0
    %689 = vmatprep.subr.mxu0 0.0
    %690 = vmatpush1.msra.mxu0 0.0
    %691 = vmatprep.subr.mxu0 0.0
    %692 = vmatpush1.msra.mxu0 0.0
    %693 = vmatprep.subr.mxu0 0.0
    %694 = vmatpush1.msra.mxu0 0.0
    %695 = vmatprep.subr.mxu0 0.0
    %696 = vmatpush1.msra.mxu0 0.0
    %697 = vmatprep.subr.mxu0 0.0
    %698 = vmatpush1.msra.mxu0 0.0
    %699 = vmatprep.subr.mxu0 0.0
    %700 = vmatpush1.msra.mxu0 0.0
    %701 = vmatprep.subr.mxu0 0.0
    %702 = vmatpush1.msra.mxu0 0.0
    %703 = vmatprep.subr.mxu0 0.0
    %704 = vmatpush1.msra.mxu0 0.0
    %705 = vmatprep.subr.mxu0 0.0
    %706 = vmatpush1.msra.mxu0 0.0
    %707 = vmatprep.mubr.f32.mxu0 0.0
    %708 = vmatmul.mubr.f32.gmra.mrb[0].mxu0 %v641
    %v709 = vpop.f32.mrb[0].mxu0
    %v710 = vadd.f32 0.0, %v709
    %v711 = vpop.f32.mrb[0].mxu0
    %v712 = vadd.f32 0.0, %v711
    %713 = vdwg.mxu0
    %714 = vmatprep.subr.mxu0 0.0
    %715 = vmatpush1.msra.mxu0 %v424
    %716 = vmatprep.subr.mxu0 0.0
    %717 = vmatpush1.msra.mxu0 %v427
    %718 = vmatprep.subr.mxu0 0.0
    %719 = vmatpush1.msra.mxu0 %v430
    %720 = vmatprep.subr.mxu0 0.0
    %721 = vmatpush1.msra.mxu0 %v433
    %722 = vmatprep.subr.mxu0 0.0
    %723 = vmatpush1.msra.mxu0 %v436
    %724 = vmatprep.subr.mxu0 0.0
    %725 = vmatpush1.msra.mxu0 %v439
    %726 = vmatprep.subr.mxu0 0.0
    %727 = vmatpush1.msra.mxu0 %v442
    %728 = vmatprep.subr.mxu0 0.0
    %729 = vmatpush1.msra.mxu0 %v445
    %730 = vmatprep.subr.mxu0 0.0
    %731 = vmatpush1.msra.mxu0 %v448
    %732 = vmatprep.subr.mxu0 0.0
    %733 = vmatpush1.msra.mxu0 %v451
    %734 = vmatprep.subr.mxu0 0.0
    %735 = vmatpush1.msra.mxu0 %v454
    %736 = vmatprep.subr.mxu0 0.0
    %737 = vmatpush1.msra.mxu0 %v457
    %738 = vmatprep.subr.mxu0 0.0
    %739 = vmatpush1.msra.mxu0 %v460
    %740 = vmatprep.subr.mxu0 0.0
    %741 = vmatpush1.msra.mxu0 %v463
    %742 = vmatprep.subr.mxu0 0.0
    %743 = vmatpush1.msra.mxu0 %v466
    %744 = vmatprep.subr.mxu0 0.0
    %745 = vmatpush1.msra.mxu0 %v469
    %746 = vmatprep.subr.mxu0 0.0
    %747 = vmatpush1.msra.mxu0 0.0
    %748 = vmatprep.subr.mxu0 0.0
    %749 = vmatpush1.msra.mxu0 0.0
    %750 = vmatprep.subr.mxu0 0.0
    %751 = vmatpush1.msra.mxu0 0.0
    %752 = vmatprep.subr.mxu0 0.0
    %753 = vmatpush1.msra.mxu0 0.0
    %754 = vmatprep.subr.mxu0 0.0
    %755 = vmatpush1.msra.mxu0 0.0
    %756 = vmatprep.subr.mxu0 0.0
    %757 = vmatpush1.msra.mxu0 0.0
    %758 = vmatprep.subr.mxu0 0.0
    %759 = vmatpush1.msra.mxu0 0.0
    %760 = vmatprep.subr.mxu0 0.0
    %761 = vmatpush1.msra.mxu0 0.0
    %762 = vmatprep.subr.mxu0 0.0
    %763 = vmatpush1.msra.mxu0 0.0
    %764 = vmatprep.subr.mxu0 0.0
    %765 = vmatpush1.msra.mxu0 0.0
    %766 = vmatprep.subr.mxu0 0.0
    %767 = vmatpush1.msra.mxu0 0.0
    %768 = vmatprep.subr.mxu0 0.0
    %769 = vmatpush1.msra.mxu0 0.0
    %770 = vmatprep.subr.mxu0 0.0
    %771 = vmatpush1.msra.mxu0 0.0
    %772 = vmatprep.subr.mxu0 0.0
    %773 = vmatpush1.msra.mxu0 0.0
    %774 = vmatprep.subr.mxu0 0.0
    %775 = vmatpush1.msra.mxu0 0.0
    %776 = vmatprep.subr.mxu0 0.0
    %777 = vmatpush1.msra.mxu0 0.0
    %778 = vmatprep.mubr.f32.mxu0 0.0
    %779 = vmatmul.mubr.f32.gmra.mrb[0].mxu0 %v641
    %v780 = vpop.f32.mrb[0].mxu0
    %v781 = vadd.f32 0.0, %v780
    %v782 = vpop.f32.mrb[0].mxu0
    %783 = vdwg.mxu0
    %s784 = scalar_lea.vmem [#allocation2], 6
    %v785 = vld [vmem:[%s784] sm:$0x3f]
    %v788 = vcombine.low %v710, %v712
    %v790 = vunpack.c.l.s4 1983009808
    %v791 = vunpack.c.0.s8 %v790
    %v792 = vlaneseq
    %v793 = vshrl.u32 %v792, 7
    %v794 = vsub.s32 %v791, %v793
    %v795 = vrot.slane %v788, %v794
    %v797 = vadd.f32 %v785, %v795
    %v798 = vxor.u32 %v797, 2147483648
    %v799 = vmul.f32 %v798, 1.442695
    %v800 = vpow.pop %v799
    %v801 = vadd.f32 %v800, 1.0
    %v802 = vrcp.pop %v801
    %v803 = vmul.f32 1.0, %v802
    %v804 = vmul.f32 %v803, %v781
    %v806 = vrot.slane %v785, 4
    %v808 = vadd.f32 %v806, %v804
    %v809 = vtanh.pop %v808
    %v810 = vsub.f32 %v641, %v809
    %v812 = vrot.slane %v803, 2
    %v814 = vmul.f32 %v812, %v810
    %v815 = vadd.f32 %v809, %v814
    %s816 = scalar_lea.vmem [#allocation3], 2
    %817 = vst [vmem:[%s816] sm:$0x3] %v815
    %818 = vmatprep.subr.mxu0 %v423
    %819 = vmatpush1.msra.mxu0 %v422
    %820 = vmatprep.subr.mxu0 %v426
    %821 = vmatpush1.msra.mxu0 %v425
    %822 = vmatprep.subr.mxu0 %v429
    %823 = vmatpush1.msra.mxu0 %v428
    %824 = vmatprep.subr.mxu0 %v432
    %825 = vmatpush1.msra.mxu0 %v431
    %826 = vmatprep.subr.mxu0 %v435
    %827 = vmatpush1.msra.mxu0 %v434
    %828 = vmatprep.subr.mxu0 %v438
    %829 = vmatpush1.msra.mxu0 %v437
    %830 = vmatprep.subr.mxu0 %v441
    %831 = vmatpush1.msra.mxu0 %v440
    %832 = vmatprep.subr.mxu0 %v444
    %833 = vmatpush1.msra.mxu0 %v443
    %834 = vmatprep.subr.mxu0 %v447
    %835 = vmatpush1.msra.mxu0 %v446
    %836 = vmatprep.subr.mxu0 %v450
    %837 = vmatpush1.msra.mxu0 %v449
    %838 = vmatprep.subr.mxu0 %v453
    %839 = vmatpush1.msra.mxu0 %v452
    %840 = vmatprep.subr.mxu0 %v456
    %841 = vmatpush1.msra.mxu0 %v455
    %842 = vmatprep.subr.mxu0 %v459
    %843 = vmatpush1.msra.mxu0 %v458
    %844 = vmatprep.subr.mxu0 %v462
    %845 = vmatpush1.msra.mxu0 %v461
    %846 = vmatprep.subr.mxu0 %v465
    %847 = vmatpush1.msra.mxu0 %v464
    %848 = vmatprep.subr.mxu0 %v468
    %849 = vmatpush1.msra.mxu0 %v467
    %850 = vmatprep.subr.mxu0 0.0
    %851 = vmatpush1.msra.mxu0 0.0
    %852 = vmatprep.subr.mxu0 0.0
    %853 = vmatpush1.msra.mxu0 0.0
    %854 = vmatprep.subr.mxu0 0.0
    %855 = vmatpush1.msra.mxu0 0.0
    %856 = vmatprep.subr.mxu0 0.0
    %857 = vmatpush1.msra.mxu0 0.0
    %858 = vmatprep.subr.mxu0 0.0
    %859 = vmatpush1.msra.mxu0 0.0
    %860 = vmatprep.subr.mxu0 0.0
    %861 = vmatpush1.msra.mxu0 0.0
    %862 = vmatprep.subr.mxu0 0.0
    %863 = vmatpush1.msra.mxu0 0.0
    %864 = vmatprep.subr.mxu0 0.0
    %865 = vmatpush1.msra.mxu0 0.0
    %866 = vmatprep.subr.mxu0 0.0
    %867 = vmatpush1.msra.mxu0 0.0
    %868 = vmatprep.subr.mxu0 0.0
    %869 = vmatpush1.msra.mxu0 0.0
    %870 = vmatprep.subr.mxu0 0.0
    %871 = vmatpush1.msra.mxu0 0.0
    %872 = vmatprep.subr.mxu0 0.0
    %873 = vmatpush1.msra.mxu0 0.0
    %874 = vmatprep.subr.mxu0 0.0
    %875 = vmatpush1.msra.mxu0 0.0
    %876 = vmatprep.subr.mxu0 0.0
    %877 = vmatpush1.msra.mxu0 0.0
    %878 = vmatprep.subr.mxu0 0.0
    %879 = vmatpush1.msra.mxu0 0.0
    %880 = vmatprep.subr.mxu0 0.0
    %881 = vmatpush1.msra.mxu0 0.0
    %882 = vmatprep.mubr.f32.mxu0 0.0
    %883 = vmatmul.mubr.f32.gmra.mrb[0].mxu0 %v815
    %v884 = vpop.f32.mrb[0].mxu0
    %v885 = vadd.f32 0.0, %v884
    %v886 = vpop.f32.mrb[0].mxu0
    %v887 = vadd.f32 0.0, %v886
    %888 = vdwg.mxu0
    %889 = vmatprep.subr.mxu0 0.0
    %890 = vmatpush1.msra.mxu0 %v424
    %891 = vmatprep.subr.mxu0 0.0
    %892 = vmatpush1.msra.mxu0 %v427
    %893 = vmatprep.subr.mxu0 0.0
    %894 = vmatpush1.msra.mxu0 %v430
    %895 = vmatprep.subr.mxu0 0.0
    %896 = vmatpush1.msra.mxu0 %v433
    %897 = vmatprep.subr.mxu0 0.0
    %898 = vmatpush1.msra.mxu0 %v436
    %899 = vmatprep.subr.mxu0 0.0
    %900 = vmatpush1.msra.mxu0 %v439
    %901 = vmatprep.subr.mxu0 0.0
    %902 = vmatpush1.msra.mxu0 %v442
    %903 = vmatprep.subr.mxu0 0.0
    %904 = vmatpush1.msra.mxu0 %v445
    %905 = vmatprep.subr.mxu0 0.0
    %906 = vmatpush1.msra.mxu0 %v448
    %907 = vmatprep.subr.mxu0 0.0
    %908 = vmatpush1.msra.mxu0 %v451
    %909 = vmatprep.subr.mxu0 0.0
    %910 = vmatpush1.msra.mxu0 %v454
    %911 = vmatprep.subr.mxu0 0.0
    %912 = vmatpush1.msra.mxu0 %v457
    %913 = vmatprep.subr.mxu0 0.0
    %914 = vmatpush1.msra.mxu0 %v460
    %915 = vmatprep.subr.mxu0 0.0
    %916 = vmatpush1.msra.mxu0 %v463
    %917 = vmatprep.subr.mxu0 0.0
    %918 = vmatpush1.msra.mxu0 %v466
    %919 = vmatprep.subr.mxu0 0.0
    %920 = vmatpush1.msra.mxu0 %v469
    %921 = vmatprep.subr.mxu0 0.0
    %922 = vmatpush1.msra.mxu0 0.0
    %923 = vmatprep.subr.mxu0 0.0
    %924 = vmatpush1.msra.mxu0 0.0
    %925 = vmatprep.subr.mxu0 0.0
    %926 = vmatpush1.msra.mxu0 0.0
    %927 = vmatprep.subr.mxu0 0.0
    %928 = vmatpush1.msra.mxu0 0.0
    %929 = vmatprep.subr.mxu0 0.0
    %930 = vmatpush1.msra.mxu0 0.0
    %931 = vmatprep.subr.mxu0 0.0
    %932 = vmatpush1.msra.mxu0 0.0
    %933 = vmatprep.subr.mxu0 0.0
    %934 = vmatpush1.msra.mxu0 0.0
    %935 = vmatprep.subr.mxu0 0.0
    %936 = vmatpush1.msra.mxu0 0.0
    %937 = vmatprep.subr.mxu0 0.0
    %938 = vmatpush1.msra.mxu0 0.0
    %939 = vmatprep.subr.mxu0 0.0
    %940 = vmatpush1.msra.mxu0 0.0
    %941 = vmatprep.subr.mxu0 0.0
    %942 = vmatpush1.msra.mxu0 0.0
    %943 = vmatprep.subr.mxu0 0.0
    %944 = vmatpush1.msra.mxu0 0.0
    %945 = vmatprep.subr.mxu0 0.0
    %946 = vmatpush1.msra.mxu0 0.0
    %947 = vmatprep.subr.mxu0 0.0
    %948 = vmatpush1.msra.mxu0 0.0
    %949 = vmatprep.subr.mxu0 0.0
    %950 = vmatpush1.msra.mxu0 0.0
    %951 = vmatprep.subr.mxu0 0.0
    %952 = vmatpush1.msra.mxu0 0.0
    %953 = vmatprep.mubr.f32.mxu0 0.0
    %954 = vmatmul.mubr.f32.gmra.mrb[0].mxu0 %v815
    %v955 = vpop.f32.mrb[0].mxu0
    %v956 = vadd.f32 0.0, %v955
    %v957 = vpop.f32.mrb[0].mxu0
    %958 = vdwg.mxu0
    %s959 = scalar_lea.vmem [#allocation2], 12
    %v960 = vld [vmem:[%s959] sm:$0x3f]
    %v963 = vcombine.low %v885, %v887
    %v965 = vunpack.c.l.s4 1983009808
    %v966 = vunpack.c.0.s8 %v965
    %v967 = vlaneseq
    %v968 = vshrl.u32 %v967, 7
    %v969 = vsub.s32 %v966, %v968
    %v970 = vrot.slane %v963, %v969
    %v972 = vadd.f32 %v960, %v970
    %v973 = vxor.u32 %v972, 2147483648
    %v974 = vmul.f32 %v973, 1.442695
    %v975 = vpow.pop %v974
    %v976 = vadd.f32 %v975, 1.0
    %v977 = vrcp.pop %v976
    %v978 = vmul.f32 1.0, %v977
    %v979 = vmul.f32 %v978, %v956
    %v981 = vrot.slane %v960, 4
    %v983 = vadd.f32 %v981, %v979
    %v984 = vtanh.pop %v983
    %v985 = vsub.f32 %v815, %v984
    %v987 = vrot.slane %v978, 2
    %v989 = vmul.f32 %v987, %v985
    %v990 = vadd.f32 %v984, %v989
    %s991 = scalar_lea.vmem [#allocation3], 4
    %992 = vst [vmem:[%s991] sm:$0x3] %v990
    %993 = vmatprep.subr.mxu0 %v423
    %994 = vmatpush1.msra.mxu0 %v422
    %995 = vmatprep.subr.mxu0 %v426
    %996 = vmatpush1.msra.mxu0 %v425
    %997 = vmatprep.subr.mxu0 %v429
    %998 = vmatpush1.msra.mxu0 %v428
    %999 = vmatprep.subr.mxu0 %v432
    %1000 = vmatpush1.msra.mxu0 %v431
    %1001 = vmatprep.subr.mxu0 %v435
    %1002 = vmatpush1.msra.mxu0 %v434
    %1003 = vmatprep.subr.mxu0 %v438
    %1004 = vmatpush1.msra.mxu0 %v437
    %1005 = vmatprep.subr.mxu0 %v441
    %1006 = vmatpush1.msra.mxu0 %v440
    %1007 = vmatprep.subr.mxu0 %v444
    %1008 = vmatpush1.msra.mxu0 %v443
    %1009 = vmatprep.subr.mxu0 %v447
    %1010 = vmatpush1.msra.mxu0 %v446
    %1011 = vmatprep.subr.mxu0 %v450
    %1012 = vmatpush1.msra.mxu0 %v449
    %1013 = vmatprep.subr.mxu0 %v453
    %1014 = vmatpush1.msra.mxu0 %v452
    %1015 = vmatprep.subr.mxu0 %v456
    %1016 = vmatpush1.msra.mxu0 %v455
    %1017 = vmatprep.subr.mxu0 %v459
    %1018 = vmatpush1.msra.mxu0 %v458
    %1019 = vmatprep.subr.mxu0 %v462
    %1020 = vmatpush1.msra.mxu0 %v461
    %1021 = vmatprep.subr.mxu0 %v465
    %1022 = vmatpush1.msra.mxu0 %v464
    %1023 = vmatprep.subr.mxu0 %v468
    %1024 = vmatpush1.msra.mxu0 %v467
    %1025 = vmatprep.subr.mxu0 0.0
    %1026 = vmatpush1.msra.mxu0 0.0
    %1027 = vmatprep.subr.mxu0 0.0
    %1028 = vmatpush1.msra.mxu0 0.0
    %1029 = vmatprep.subr.mxu0 0.0
    %1030 = vmatpush1.msra.mxu0 0.0
    %1031 = vmatprep.subr.mxu0 0.0
    %1032 = vmatpush1.msra.mxu0 0.0
    %1033 = vmatprep.subr.mxu0 0.0
    %1034 = vmatpush1.msra.mxu0 0.0
    %1035 = vmatprep.subr.mxu0 0.0
    %1036 = vmatpush1.msra.mxu0 0.0
    %1037 = vmatprep.subr.mxu0 0.0
    %1038 = vmatpush1.msra.mxu0 0.0
    %1039 = vmatprep.subr.mxu0 0.0
    %1040 = vmatpush1.msra.mxu0 0.0
    %1041 = vmatprep.subr.mxu0 0.0
    %1042 = vmatpush1.msra.mxu0 0.0
    %1043 = vmatprep.subr.mxu0 0.0
    %1044 = vmatpush1.msra.mxu0 0.0
    %1045 = vmatprep.subr.mxu0 0.0
    %1046 = vmatpush1.msra.mxu0 0.0
    %1047 = vmatprep.subr.mxu0 0.0
    %1048 = vmatpush1.msra.mxu0 0.0
    %1049 = vmatprep.subr.mxu0 0.0
    %1050 = vmatpush1.msra.mxu0 0.0
    %1051 = vmatprep.subr.mxu0 0.0
    %1052 = vmatpush1.msra.mxu0 0.0
    %1053 = vmatprep.subr.mxu0 0.0
    %1054 = vmatpush1.msra.mxu0 0.0
    %1055 = vmatprep.subr.mxu0 0.0
    %1056 = vmatpush1.msra.mxu0 0.0
    %1057 = vmatprep.mubr.f32.mxu0 0.0
    %1058 = vmatmul.mubr.f32.gmra.mrb[0].mxu0 %v990
    %v1059 = vpop.f32.mrb[0].mxu0
    %v1060 = vadd.f32 0.0, %v1059
    %v1061 = vpop.f32.mrb[0].mxu0
    %v1062 = vadd.f32 0.0, %v1061
    %1063 = vdwg.mxu0
    %1064 = vmatprep.subr.mxu0 0.0
    %1065 = vmatpush1.msra.mxu0 %v424
    %1066 = vmatprep.subr.mxu0 0.0
    %1067 = vmatpush1.msra.mxu0 %v427
    %1068 = vmatprep.subr.mxu0 0.0
    %1069 = vmatpush1.msra.mxu0 %v430
    %1070 = vmatprep.subr.mxu0 0.0
    %1071 = vmatpush1.msra.mxu0 %v433
    %1072 = vmatprep.subr.mxu0 0.0
    %1073 = vmatpush1.msra.mxu0 %v436
    %1074 = vmatprep.subr.mxu0 0.0
    %1075 = vmatpush1.msra.mxu0 %v439
    %1076 = vmatprep.subr.mxu0 0.0
    %1077 = vmatpush1.msra.mxu0 %v442
    %1078 = vmatprep.subr.mxu0 0.0
    %1079 = vmatpush1.msra.mxu0 %v445
    %1080 = vmatprep.subr.mxu0 0.0
    %1081 = vmatpush1.msra.mxu0 %v448
    %1082 = vmatprep.subr.mxu0 0.0
    %1083 = vmatpush1.msra.mxu0 %v451
    %1084 = vmatprep.subr.mxu0 0.0
    %1085 = vmatpush1.msra.mxu0 %v454
    %1086 = vmatprep.subr.mxu0 0.0
    %1087 = vmatpush1.msra.mxu0 %v457
    %1088 = vmatprep.subr.mxu0 0.0
    %1089 = vmatpush1.msra.mxu0 %v460
    %1090 = vmatprep.subr.mxu0 0.0
    %1091 = vmatpush1.msra.mxu0 %v463
    %1092 = vmatprep.subr.mxu0 0.0
    %1093 = vmatpush1.msra.mxu0 %v466
    %1094 = vmatprep.subr.mxu0 0.0
    %1095 = vmatpush1.msra.mxu0 %v469
    %1096 = vmatprep.subr.mxu0 0.0
    %1097 = vmatpush1.msra.mxu0 0.0
    %1098 = vmatprep.subr.mxu0 0.0
    %1099 = vmatpush1.msra.mxu0 0.0
    %1100 = vmatprep.subr.mxu0 0.0
    %1101 = vmatpush1.msra.mxu0 0.0
    %1102 = vmatprep.subr.mxu0 0.0
    %1103 = vmatpush1.msra.mxu0 0.0
    %1104 = vmatprep.subr.mxu0 0.0
    %1105 = vmatpush1.msra.mxu0 0.0
    %1106 = vmatprep.subr.mxu0 0.0
    %1107 = vmatpush1.msra.mxu0 0.0
    %1108 = vmatprep.subr.mxu0 0.0
    %1109 = vmatpush1.msra.mxu0 0.0
    %1110 = vmatprep.subr.mxu0 0.0
    %1111 = vmatpush1.msra.mxu0 0.0
    %1112 = vmatprep.subr.mxu0 0.0
    %1113 = vmatpush1.msra.mxu0 0.0
    %1114 = vmatprep.subr.mxu0 0.0
    %1115 = vmatpush1.msra.mxu0 0.0
    %1116 = vmatprep.subr.mxu0 0.0
    %1117 = vmatpush1.msra.mxu0 0.0
    %1118 = vmatprep.subr.mxu0 0.0
    %1119 = vmatpush1.msra.mxu0 0.0
    %1120 = vmatprep.subr.mxu0 0.0
    %1121 = vmatpush1.msra.mxu0 0.0
    %1122 = vmatprep.subr.mxu0 0.0
    %1123 = vmatpush1.msra.mxu0 0.0
    %1124 = vmatprep.subr.mxu0 0.0
    %1125 = vmatpush1.msra.mxu0 0.0
    %1126 = vmatprep.subr.mxu0 0.0
    %1127 = vmatpush1.msra.mxu0 0.0
    %1128 = vmatprep.mubr.f32.mxu0 0.0
    %1129 = vmatmul.mubr.f32.gmra.mrb[0].mxu0 %v990
    %v1130 = vpop.f32.mrb[0].mxu0
    %v1131 = vadd.f32 0.0, %v1130
    %v1132 = vpop.f32.mrb[0].mxu0
    %1133 = vdwg.mxu0
    %s1134 = scalar_lea.vmem [#allocation2], 18
    %v1135 = vld [vmem:[%s1134] sm:$0x3f]
    %v1138 = vcombine.low %v1060, %v1062
    %v1140 = vunpack.c.l.s4 1983009808
    %v1141 = vunpack.c.0.s8 %v1140
    %v1142 = vlaneseq
    %v1143 = vshrl.u32 %v1142, 7
    %v1144 = vsub.s32 %v1141, %v1143
    %v1145 = vrot.slane %v1138, %v1144
    %v1147 = vadd.f32 %v1135, %v1145
    %v1148 = vxor.u32 %v1147, 2147483648
    %v1149 = vmul.f32 %v1148, 1.442695
    %v1150 = vpow.pop %v1149
    %v1151 = vadd.f32 %v1150, 1.0
    %v1152 = vrcp.pop %v1151
    %v1153 = vmul.f32 1.0, %v1152
    %v1154 = vmul.f32 %v1153, %v1131
    %v1156 = vrot.slane %v1135, 4
    %v1158 = vadd.f32 %v1156, %v1154
    %v1159 = vtanh.pop %v1158
    %v1160 = vsub.f32 %v990, %v1159
    %v1162 = vrot.slane %v1153, 2
    %v1164 = vmul.f32 %v1162, %v1160
    %v1165 = vadd.f32 %v1159, %v1164
    %s1166 = scalar_lea.vmem [#allocation3], 6
    %1167 = vst [vmem:[%s1166] sm:$0x3] %v1165
    %1168 = vmatprep.subr.mxu0 %v423
    %1169 = vmatpush1.msra.mxu0 %v422
    %1170 = vmatprep.subr.mxu0 %v426
    %1171 = vmatpush1.msra.mxu0 %v425
    %1172 = vmatprep.subr.mxu0 %v429
    %1173 = vmatpush1.msra.mxu0 %v428
    %1174 = vmatprep.subr.mxu0 %v432
    %1175 = vmatpush1.msra.mxu0 %v431
    %1176 = vmatprep.subr.mxu0 %v435
    %1177 = vmatpush1.msra.mxu0 %v434
    %1178 = vmatprep.subr.mxu0 %v438
    %1179 = vmatpush1.msra.mxu0 %v437
    %1180 = vmatprep.subr.mxu0 %v441
    %1181 = vmatpush1.msra.mxu0 %v440
    %1182 = vmatprep.subr.mxu0 %v444
    %1183 = vmatpush1.msra.mxu0 %v443
    %1184 = vmatprep.subr.mxu0 %v447
    %1185 = vmatpush1.msra.mxu0 %v446
    %1186 = vmatprep.subr.mxu0 %v450
    %1187 = vmatpush1.msra.mxu0 %v449
    %1188 = vmatprep.subr.mxu0 %v453
    %1189 = vmatpush1.msra.mxu0 %v452
    %1190 = vmatprep.subr.mxu0 %v456
    %1191 = vmatpush1.msra.mxu0 %v455
    %1192 = vmatprep.subr.mxu0 %v459
    %1193 = vmatpush1.msra.mxu0 %v458
    %1194 = vmatprep.subr.mxu0 %v462
    %1195 = vmatpush1.msra.mxu0 %v461
    %1196 = vmatprep.subr.mxu0 %v465
    %1197 = vmatpush1.msra.mxu0 %v464
    %1198 = vmatprep.subr.mxu0 %v468
    %1199 = vmatpush1.msra.mxu0 %v467
    %1200 = vmatprep.subr.mxu0 0.0
    %1201 = vmatpush1.msra.mxu0 0.0
    %1202 = vmatprep.subr.mxu0 0.0
    %1203 = vmatpush1.msra.mxu0 0.0
    %1204 = vmatprep.subr.mxu0 0.0
    %1205 = vmatpush1.msra.mxu0 0.0
    %1206 = vmatprep.subr.mxu0 0.0
    %1207 = vmatpush1.msra.mxu0 0.0
    %1208 = vmatprep.subr.mxu0 0.0
    %1209 = vmatpush1.msra.mxu0 0.0
    %1210 = vmatprep.subr.mxu0 0.0
    %1211 = vmatpush1.msra.mxu0 0.0
    %1212 = vmatprep.subr.mxu0 0.0
    %1213 = vmatpush1.msra.mxu0 0.0
    %1214 = vmatprep.subr.mxu0 0.0
    %1215 = vmatpush1.msra.mxu0 0.0
    %1216 = vmatprep.subr.mxu0 0.0
    %1217 = vmatpush1.msra.mxu0 0.0
    %1218 = vmatprep.subr.mxu0 0.0
    %1219 = vmatpush1.msra.mxu0 0.0
    %1220 = vmatprep.subr.mxu0 0.0
    %1221 = vmatpush1.msra.mxu0 0.0
    %1222 = vmatprep.subr.mxu0 0.0
    %1223 = vmatpush1.msra.mxu0 0.0
    %1224 = vmatprep.subr.mxu0 0.0
    %1225 = vmatpush1.msra.mxu0 0.0
    %1226 = vmatprep.subr.mxu0 0.0
    %1227 = vmatpush1.msra.mxu0 0.0
    %1228 = vmatprep.subr.mxu0 0.0
    %1229 = vmatpush1.msra.mxu0 0.0
    %1230 = vmatprep.subr.mxu0 0.0
    %1231 = vmatpush1.msra.mxu0 0.0
    %1232 = vmatprep.mubr.f32.mxu0 0.0
    %1233 = vmatmul.mubr.f32.gmra.mrb[0].mxu0 %v1165
    %v1234 = vpop.f32.mrb[0].mxu0
    %v1235 = vadd.f32 0.0, %v1234
    %v1236 = vpop.f32.mrb[0].mxu0
    %v1237 = vadd.f32 0.0, %v1236
    %1238 = vdwg.mxu0
    %1239 = vmatprep.subr.mxu0 0.0
    %1240 = vmatpush1.msra.mxu0 %v424
    %1241 = vmatprep.subr.mxu0 0.0
    %1242 = vmatpush1.msra.mxu0 %v427
    %1243 = vmatprep.subr.mxu0 0.0
    %1244 = vmatpush1.msra.mxu0 %v430
    %1245 = vmatprep.subr.mxu0 0.0
    %1246 = vmatpush1.msra.mxu0 %v433
    %1247 = vmatprep.subr.mxu0 0.0
    %1248 = vmatpush1.msra.mxu0 %v436
    %1249 = vmatprep.subr.mxu0 0.0
    %1250 = vmatpush1.msra.mxu0 %v439
    %1251 = vmatprep.subr.mxu0 0.0
    %1252 = vmatpush1.msra.mxu0 %v442
    %1253 = vmatprep.subr.mxu0 0.0
    %1254 = vmatpush1.msra.mxu0 %v445
    %1255 = vmatprep.subr.mxu0 0.0
    %1256 = vmatpush1.msra.mxu0 %v448
    %1257 = vmatprep.subr.mxu0 0.0
    %1258 = vmatpush1.msra.mxu0 %v451
    %1259 = vmatprep.subr.mxu0 0.0
    %1260 = vmatpush1.msra.mxu0 %v454
    %1261 = vmatprep.subr.mxu0 0.0
    %1262 = vmatpush1.msra.mxu0 %v457
    %1263 = vmatprep.subr.mxu0 0.0
    %1264 = vmatpush1.msra.mxu0 %v460
    %1265 = vmatprep.subr.mxu0 0.0
    %1266 = vmatpush1.msra.mxu0 %v463
    %1267 = vmatprep.subr.mxu0 0.0
    %1268 = vmatpush1.msra.mxu0 %v466
    %1269 = vmatprep.subr.mxu0 0.0
    %1270 = vmatpush1.msra.mxu0 %v469
    %1271 = vmatprep.subr.mxu0 0.0
    %1272 = vmatpush1.msra.mxu0 0.0
    %1273 = vmatprep.subr.mxu0 0.0
    %1274 = vmatpush1.msra.mxu0 0.0
    %1275 = vmatprep.subr.mxu0 0.0
    %1276 = vmatpush1.msra.mxu0 0.0
    %1277 = vmatprep.subr.mxu0 0.0
    %1278 = vmatpush1.msra.mxu0 0.0
    %1279 = vmatprep.subr.mxu0 0.0
    %1280 = vmatpush1.msra.mxu0 0.0
    %1281 = vmatprep.subr.mxu0 0.0
    %1282 = vmatpush1.msra.mxu0 0.0
    %1283 = vmatprep.subr.mxu0 0.0
    %1284 = vmatpush1.msra.mxu0 0.0
    %1285 = vmatprep.subr.mxu0 0.0
    %1286 = vmatpush1.msra.mxu0 0.0
    %1287 = vmatprep.subr.mxu0 0.0
    %1288 = vmatpush1.msra.mxu0 0.0
    %1289 = vmatprep.subr.mxu0 0.0
    %1290 = vmatpush1.msra.mxu0 0.0
    %1291 = vmatprep.subr.mxu0 0.0
    %1292 = vmatpush1.msra.mxu0 0.0
    %1293 = vmatprep.subr.mxu0 0.0
    %1294 = vmatpush1.msra.mxu0 0.0
    %1295 = vmatprep.subr.mxu0 0.0
    %1296 = vmatpush1.msra.mxu0 0.0
    %1297 = vmatprep.subr.mxu0 0.0
    %1298 = vmatpush1.msra.mxu0 0.0
    %1299 = vmatprep.subr.mxu0 0.0
    %1300 = vmatpush1.msra.mxu0 0.0
    %1301 = vmatprep.subr.mxu0 0.0
    %1302 = vmatpush1.msra.mxu0 0.0
    %1303 = vmatprep.mubr.f32.mxu0 0.0
    %1304 = vmatmul.mubr.f32.gmra.mrb[0].mxu0 %v1165
    %v1305 = vpop.f32.mrb[0].mxu0
    %v1306 = vadd.f32 0.0, %v1305
    %v1307 = vpop.f32.mrb[0].mxu0
    %1308 = vdwg.mxu0
    %s1309 = scalar_lea.vmem [#allocation2], 24
    %v1310 = vld [vmem:[%s1309] sm:$0x3f]
    %v1313 = vcombine.low %v1235, %v1237
    %v1315 = vunpack.c.l.s4 1983009808
    %v1316 = vunpack.c.0.s8 %v1315
    %v1317 = vlaneseq
    %v1318 = vshrl.u32 %v1317, 7
    %v1319 = vsub.s32 %v1316, %v1318
    %v1320 = vrot.slane %v1313, %v1319
    %v1322 = vadd.f32 %v1310, %v1320
    %v1323 = vxor.u32 %v1322, 2147483648
    %v1324 = vmul.f32 %v1323, 1.442695
    %v1325 = vpow.pop %v1324
    %v1326 = vadd.f32 %v1325, 1.0
    %v1327 = vrcp.pop %v1326
    %v1328 = vmul.f32 1.0, %v1327
    %v1329 = vmul.f32 %v1328, %v1306
    %v1331 = vrot.slane %v1310, 4
    %v1333 = vadd.f32 %v1331, %v1329
    %v1334 = vtanh.pop %v1333
    %v1335 = vsub.f32 %v1165, %v1334
    %v1337 = vrot.slane %v1328, 2
    %v1339 = vmul.f32 %v1337, %v1335
    %v1340 = vadd.f32 %v1334, %v1339
    %s1341 = scalar_lea.vmem [#allocation3], 8
    %1342 = vst [vmem:[%s1341] sm:$0x3] %v1340
    %1343 = vmatprep.subr.mxu0 %v423
    %1344 = vmatpush1.msra.mxu0 %v422
    %1345 = vmatprep.subr.mxu0 %v426
    %1346 = vmatpush1.msra.mxu0 %v425
    %1347 = vmatprep.subr.mxu0 %v429
    %1348 = vmatpush1.msra.mxu0 %v428
    %1349 = vmatprep.subr.mxu0 %v432
    %1350 = vmatpush1.msra.mxu0 %v431
    %1351 = vmatprep.subr.mxu0 %v435
    %1352 = vmatpush1.msra.mxu0 %v434
    %1353 = vmatprep.subr.mxu0 %v438
    %1354 = vmatpush1.msra.mxu0 %v437
    %1355 = vmatprep.subr.mxu0 %v441
    %1356 = vmatpush1.msra.mxu0 %v440
    %1357 = vmatprep.subr.mxu0 %v444
    %1358 = vmatpush1.msra.mxu0 %v443
    %1359 = vmatprep.subr.mxu0 %v447
    %1360 = vmatpush1.msra.mxu0 %v446
    %1361 = vmatprep.subr.mxu0 %v450
    %1362 = vmatpush1.msra.mxu0 %v449
    %1363 = vmatprep.subr.mxu0 %v453
    %1364 = vmatpush1.msra.mxu0 %v452
    %1365 = vmatprep.subr.mxu0 %v456
    %1366 = vmatpush1.msra.mxu0 %v455
    %1367 = vmatprep.subr.mxu0 %v459
    %1368 = vmatpush1.msra.mxu0 %v458
    %1369 = vmatprep.subr.mxu0 %v462
    %1370 = vmatpush1.msra.mxu0 %v461
    %1371 = vmatprep.subr.mxu0 %v465
    %1372 = vmatpush1.msra.mxu0 %v464
    %1373 = vmatprep.subr.mxu0 %v468
    %1374 = vmatpush1.msra.mxu0 %v467
    %1375 = vmatprep.subr.mxu0 0.0
    %1376 = vmatpush1.msra.mxu0 0.0
    %1377 = vmatprep.subr.mxu0 0.0
    %1378 = vmatpush1.msra.mxu0 0.0
    %1379 = vmatprep.subr.mxu0 0.0
    %1380 = vmatpush1.msra.mxu0 0.0
    %1381 = vmatprep.subr.mxu0 0.0
    %1382 = vmatpush1.msra.mxu0 0.0
    %1383 = vmatprep.subr.mxu0 0.0
    %1384 = vmatpush1.msra.mxu0 0.0
    %1385 = vmatprep.subr.mxu0 0.0
    %1386 = vmatpush1.msra.mxu0 0.0
    %1387 = vmatprep.subr.mxu0 0.0
    %1388 = vmatpush1.msra.mxu0 0.0
    %1389 = vmatprep.subr.mxu0 0.0
    %1390 = vmatpush1.msra.mxu0 0.0
    %1391 = vmatprep.subr.mxu0 0.0
    %1392 = vmatpush1.msra.mxu0 0.0
    %1393 = vmatprep.subr.mxu0 0.0
    %1394 = vmatpush1.msra.mxu0 0.0
    %1395 = vmatprep.subr.mxu0 0.0
    %1396 = vmatpush1.msra.mxu0 0.0
    %1397 = vmatprep.subr.mxu0 0.0
    %1398 = vmatpush1.msra.mxu0 0.0
    %1399 = vmatprep.subr.mxu0 0.0
    %1400 = vmatpush1.msra.mxu0 0.0
    %1401 = vmatprep.subr.mxu0 0.0
    %1402 = vmatpush1.msra.mxu0 0.0
    %1403 = vmatprep.subr.mxu0 0.0
    %1404 = vmatpush1.msra.mxu0 0.0
    %1405 = vmatprep.subr.mxu0 0.0
    %1406 = vmatpush1.msra.mxu0 0.0
    %1407 = vmatprep.mubr.f32.mxu0 0.0
    %1408 = vmatmul.mubr.f32.gmra.mrb[0].mxu0 %v1340
    %v1409 = vpop.f32.mrb[0].mxu0
    %v1410 = vadd.f32 0.0, %v1409
    %v1411 = vpop.f32.mrb[0].mxu0
    %v1412 = vadd.f32 0.0, %v1411
    %1413 = vdwg.mxu0
    %1414 = vmatprep.subr.mxu0 0.0
    %1415 = vmatpush1.msra.mxu0 %v424
    %1416 = vmatprep.subr.mxu0 0.0
    %1417 = vmatpush1.msra.mxu0 %v427
    %1418 = vmatprep.subr.mxu0 0.0
    %1419 = vmatpush1.msra.mxu0 %v430
    %1420 = vmatprep.subr.mxu0 0.0
    %1421 = vmatpush1.msra.mxu0 %v433
    %1422 = vmatprep.subr.mxu0 0.0
    %1423 = vmatpush1.msra.mxu0 %v436
    %1424 = vmatprep.subr.mxu0 0.0
    %1425 = vmatpush1.msra.mxu0 %v439
    %1426 = vmatprep.subr.mxu0 0.0
    %1427 = vmatpush1.msra.mxu0 %v442
    %1428 = vmatprep.subr.mxu0 0.0
    %1429 = vmatpush1.msra.mxu0 %v445
    %1430 = vmatprep.subr.mxu0 0.0
    %1431 = vmatpush1.msra.mxu0 %v448
    %1432 = vmatprep.subr.mxu0 0.0
    %1433 = vmatpush1.msra.mxu0 %v451
    %1434 = vmatprep.subr.mxu0 0.0
    %1435 = vmatpush1.msra.mxu0 %v454
    %1436 = vmatprep.subr.mxu0 0.0
    %1437 = vmatpush1.msra.mxu0 %v457
    %1438 = vmatprep.subr.mxu0 0.0
    %1439 = vmatpush1.msra.mxu0 %v460
    %1440 = vmatprep.subr.mxu0 0.0
    %1441 = vmatpush1.msra.mxu0 %v463
    %1442 = vmatprep.subr.mxu0 0.0
    %1443 = vmatpush1.msra.mxu0 %v466
    %1444 = vmatprep.subr.mxu0 0.0
    %1445 = vmatpush1.msra.mxu0 %v469
    %1446 = vmatprep.subr.mxu0 0.0
    %1447 = vmatpush1.msra.mxu0 0.0
    %1448 = vmatprep.subr.mxu0 0.0
    %1449 = vmatpush1.msra.mxu0 0.0
    %1450 = vmatprep.subr.mxu0 0.0
    %1451 = vmatpush1.msra.mxu0 0.0
    %1452 = vmatprep.subr.mxu0 0.0
    %1453 = vmatpush1.msra.mxu0 0.0
    %1454 = vmatprep.subr.mxu0 0.0
    %1455 = vmatpush1.msra.mxu0 0.0
    %1456 = vmatprep.subr.mxu0 0.0
    %1457 = vmatpush1.msra.mxu0 0.0
    %1458 = vmatprep.subr.mxu0 0.0
    %1459 = vmatpush1.msra.mxu0 0.0
    %1460 = vmatprep.subr.mxu0 0.0
    %1461 = vmatpush1.msra.mxu0 0.0
    %1462 = vmatprep.subr.mxu0 0.0
    %1463 = vmatpush1.msra.mxu0 0.0
    %1464 = vmatprep.subr.mxu0 0.0
    %1465 = vmatpush1.msra.mxu0 0.0
    %1466 = vmatprep.subr.mxu0 0.0
    %1467 = vmatpush1.msra.mxu0 0.0
    %1468 = vmatprep.subr.mxu0 0.0
    %1469 = vmatpush1.msra.mxu0 0.0
    %1470 = vmatprep.subr.mxu0 0.0
    %1471 = vmatpush1.msra.mxu0 0.0
    %1472 = vmatprep.subr.mxu0 0.0
    %1473 = vmatpush1.msra.mxu0 0.0
    %1474 = vmatprep.subr.mxu0 0.0
    %1475 = vmatpush1.msra.mxu0 0.0
    %1476 = vmatprep.subr.mxu0 0.0
    %1477 = vmatpush1.msra.mxu0 0.0
    %1478 = vmatprep.mubr.f32.mxu0 0.0
    %1479 = vmatmul.mubr.f32.gmra.mrb[0].mxu0 %v1340
    %v1480 = vpop.f32.mrb[0].mxu0
    %v1481 = vadd.f32 0.0, %v1480
    %v1482 = vpop.f32.mrb[0].mxu0
    %1483 = vdwg.mxu0
    %s1484 = scalar_lea.vmem [#allocation2], 30
    %v1485 = vld [vmem:[%s1484] sm:$0x3f]
    %v1488 = vcombine.low %v1410, %v1412
    %v1490 = vunpack.c.l.s4 1983009808
    %v1491 = vunpack.c.0.s8 %v1490
    %v1492 = vlaneseq
    %v1493 = vshrl.u32 %v1492, 7
    %v1494 = vsub.s32 %v1491, %v1493
    %v1495 = vrot.slane %v1488, %v1494
    %v1497 = vadd.f32 %v1485, %v1495
    %v1498 = vxor.u32 %v1497, 2147483648
    %v1499 = vmul.f32 %v1498, 1.442695
    %v1500 = vpow.pop %v1499
    %v1501 = vadd.f32 %v1500, 1.0
    %v1502 = vrcp.pop %v1501
    %v1503 = vmul.f32 1.0, %v1502
    %v1504 = vmul.f32 %v1503, %v1481
    %v1506 = vrot.slane %v1485, 4
    %v1508 = vadd.f32 %v1506, %v1504
    %v1509 = vtanh.pop %v1508
    %v1510 = vsub.f32 %v1340, %v1509
    %v1512 = vrot.slane %v1503, 2
    %v1514 = vmul.f32 %v1512, %v1510
    %v1515 = vadd.f32 %v1509, %v1514
    %s1516 = scalar_lea.vmem [#allocation3], 10
    %1517 = vst [vmem:[%s1516] sm:$0x3] %v1515
    %1518 = vmatprep.subr.mxu0 %v423
    %1519 = vmatpush1.msra.mxu0 %v422
    %1520 = vmatprep.subr.mxu0 %v426
    %1521 = vmatpush1.msra.mxu0 %v425
    %1522 = vmatprep.subr.mxu0 %v429
    %1523 = vmatpush1.msra.mxu0 %v428
    %1524 = vmatprep.subr.mxu0 %v432
    %1525 = vmatpush1.msra.mxu0 %v431
    %1526 = vmatprep.subr.mxu0 %v435
    %1527 = vmatpush1.msra.mxu0 %v434
    %1528 = vmatprep.subr.mxu0 %v438
    %1529 = vmatpush1.msra.mxu0 %v437
    %1530 = vmatprep.subr.mxu0 %v441
    %1531 = vmatpush1.msra.mxu0 %v440
    %1532 = vmatprep.subr.mxu0 %v444
    %1533 = vmatpush1.msra.mxu0 %v443
    %1534 = vmatprep.subr.mxu0 %v447
    %1535 = vmatpush1.msra.mxu0 %v446
    %1536 = vmatprep.subr.mxu0 %v450
    %1537 = vmatpush1.msra.mxu0 %v449
    %1538 = vmatprep.subr.mxu0 %v453
    %1539 = vmatpush1.msra.mxu0 %v452
    %1540 = vmatprep.subr.mxu0 %v456
    %1541 = vmatpush1.msra.mxu0 %v455
    %1542 = vmatprep.subr.mxu0 %v459
    %1543 = vmatpush1.msra.mxu0 %v458
    %1544 = vmatprep.subr.mxu0 %v462
    %1545 = vmatpush1.msra.mxu0 %v461
    %1546 = vmatprep.subr.mxu0 %v465
    %1547 = vmatpush1.msra.mxu0 %v464
    %1548 = vmatprep.subr.mxu0 %v468
    %1549 = vmatpush1.msra.mxu0 %v467
    %1550 = vmatprep.subr.mxu0 0.0
    %1551 = vmatpush1.msra.mxu0 0.0
    %1552 = vmatprep.subr.mxu0 0.0
    %1553 = vmatpush1.msra.mxu0 0.0
    %1554 = vmatprep.subr.mxu0 0.0
    %1555 = vmatpush1.msra.mxu0 0.0
    %1556 = vmatprep.subr.mxu0 0.0
    %1557 = vmatpush1.msra.mxu0 0.0
    %1558 = vmatprep.subr.mxu0 0.0
    %1559 = vmatpush1.msra.mxu0 0.0
    %1560 = vmatprep.subr.mxu0 0.0
    %1561 = vmatpush1.msra.mxu0 0.0
    %1562 = vmatprep.subr.mxu0 0.0
    %1563 = vmatpush1.msra.mxu0 0.0
    %1564 = vmatprep.subr.mxu0 0.0
    %1565 = vmatpush1.msra.mxu0 0.0
    %1566 = vmatprep.subr.mxu0 0.0
    %1567 = vmatpush1.msra.mxu0 0.0
    %1568 = vmatprep.subr.mxu0 0.0
    %1569 = vmatpush1.msra.mxu0 0.0
    %1570 = vmatprep.subr.mxu0 0.0
    %1571 = vmatpush1.msra.mxu0 0.0
    %1572 = vmatprep.subr.mxu0 0.0
    %1573 = vmatpush1.msra.mxu0 0.0
    %1574 = vmatprep.subr.mxu0 0.0
    %1575 = vmatpush1.msra.mxu0 0.0
    %1576 = vmatprep.subr.mxu0 0.0
    %1577 = vmatpush1.msra.mxu0 0.0
    %1578 = vmatprep.subr.mxu0 0.0
    %1579 = vmatpush1.msra.mxu0 0.0
    %1580 = vmatprep.subr.mxu0 0.0
    %1581 = vmatpush1.msra.mxu0 0.0
    %1582 = vmatprep.mubr.f32.mxu0 0.0
    %1583 = vmatmul.mubr.f32.gmra.mrb[0].mxu0 %v1515
    %v1584 = vpop.f32.mrb[0].mxu0
    %v1585 = vadd.f32 0.0, %v1584
    %v1586 = vpop.f32.mrb[0].mxu0
    %v1587 = vadd.f32 0.0, %v1586
    %1588 = vdwg.mxu0
    %1589 = vmatprep.subr.mxu0 0.0
    %1590 = vmatpush1.msra.mxu0 %v424
    %1591 = vmatprep.subr.mxu0 0.0
    %1592 = vmatpush1.msra.mxu0 %v427
    %1593 = vmatprep.subr.mxu0 0.0
    %1594 = vmatpush1.msra.mxu0 %v430
    %1595 = vmatprep.subr.mxu0 0.0
    %1596 = vmatpush1.msra.mxu0 %v433
    %1597 = vmatprep.subr.mxu0 0.0
    %1598 = vmatpush1.msra.mxu0 %v436
    %1599 = vmatprep.subr.mxu0 0.0
    %1600 = vmatpush1.msra.mxu0 %v439
    %1601 = vmatprep.subr.mxu0 0.0
    %1602 = vmatpush1.msra.mxu0 %v442
    %1603 = vmatprep.subr.mxu0 0.0
    %1604 = vmatpush1.msra.mxu0 %v445
    %1605 = vmatprep.subr.mxu0 0.0
    %1606 = vmatpush1.msra.mxu0 %v448
    %1607 = vmatprep.subr.mxu0 0.0
    %1608 = vmatpush1.msra.mxu0 %v451
    %1609 = vmatprep.subr.mxu0 0.0
    %1610 = vmatpush1.msra.mxu0 %v454
    %1611 = vmatprep.subr.mxu0 0.0
    %1612 = vmatpush1.msra.mxu0 %v457
    %1613 = vmatprep.subr.mxu0 0.0
    %1614 = vmatpush1.msra.mxu0 %v460
    %1615 = vmatprep.subr.mxu0 0.0
    %1616 = vmatpush1.msra.mxu0 %v463
    %1617 = vmatprep.subr.mxu0 0.0
    %1618 = vmatpush1.msra.mxu0 %v466
    %1619 = vmatprep.subr.mxu0 0.0
    %1620 = vmatpush1.msra.mxu0 %v469
    %1621 = vmatprep.subr.mxu0 0.0
    %1622 = vmatpush1.msra.mxu0 0.0
    %1623 = vmatprep.subr.mxu0 0.0
    %1624 = vmatpush1.msra.mxu0 0.0
    %1625 = vmatprep.subr.mxu0 0.0
    %1626 = vmatpush1.msra.mxu0 0.0
    %1627 = vmatprep.subr.mxu0 0.0
    %1628 = vmatpush1.msra.mxu0 0.0
    %1629 = vmatprep.subr.mxu0 0.0
    %1630 = vmatpush1.msra.mxu0 0.0
    %1631 = vmatprep.subr.mxu0 0.0
    %1632 = vmatpush1.msra.mxu0 0.0
    %1633 = vmatprep.subr.mxu0 0.0
    %1634 = vmatpush1.msra.mxu0 0.0
    %1635 = vmatprep.subr.mxu0 0.0
    %1636 = vmatpush1.msra.mxu0 0.0
    %1637 = vmatprep.subr.mxu0 0.0
    %1638 = vmatpush1.msra.mxu0 0.0
    %1639 = vmatprep.subr.mxu0 0.0
    %1640 = vmatpush1.msra.mxu0 0.0
    %1641 = vmatprep.subr.mxu0 0.0
    %1642 = vmatpush1.msra.mxu0 0.0
    %1643 = vmatprep.subr.mxu0 0.0
    %1644 = vmatpush1.msra.mxu0 0.0
    %1645 = vmatprep.subr.mxu0 0.0
    %1646 = vmatpush1.msra.mxu0 0.0
    %1647 = vmatprep.subr.mxu0 0.0
    %1648 = vmatpush1.msra.mxu0 0.0
    %1649 = vmatprep.subr.mxu0 0.0
    %1650 = vmatpush1.msra.mxu0 0.0
    %1651 = vmatprep.subr.mxu0 0.0
    %1652 = vmatpush1.msra.mxu0 0.0
    %1653 = vmatprep.mubr.f32.mxu0 0.0
    %1654 = vmatmul.mubr.f32.gmra.mrb[0].mxu0 %v1515
    %v1655 = vpop.f32.mrb[0].mxu0
    %v1656 = vadd.f32 0.0, %v1655
    %v1657 = vpop.f32.mrb[0].mxu0
    %1658 = vdwg.mxu0
    %s1659 = scalar_lea.vmem [#allocation2], 36
    %v1660 = vld [vmem:[%s1659] sm:$0x3f]
    %v1663 = vcombine.low %v1585, %v1587
    %v1665 = vunpack.c.l.s4 1983009808
    %v1666 = vunpack.c.0.s8 %v1665
    %v1667 = vlaneseq
    %v1668 = vshrl.u32 %v1667, 7
    %v1669 = vsub.s32 %v1666, %v1668
    %v1670 = vrot.slane %v1663, %v1669
    %v1672 = vadd.f32 %v1660, %v1670
    %v1673 = vxor.u32 %v1672, 2147483648
    %v1674 = vmul.f32 %v1673, 1.442695
    %v1675 = vpow.pop %v1674
    %v1676 = vadd.f32 %v1675, 1.0
    %v1677 = vrcp.pop %v1676
    %v1678 = vmul.f32 1.0, %v1677
    %v1679 = vmul.f32 %v1678, %v1656
    %v1681 = vrot.slane %v1660, 4
    %v1683 = vadd.f32 %v1681, %v1679
    %v1684 = vtanh.pop %v1683
    %v1685 = vsub.f32 %v1515, %v1684
    %v1687 = vrot.slane %v1678, 2
    %v1689 = vmul.f32 %v1687, %v1685
    %v1690 = vadd.f32 %v1684, %v1689
    %s1691 = scalar_lea.vmem [#allocation3], 12
    %1692 = vst [vmem:[%s1691] sm:$0x3] %v1690
    %1693 = vmatprep.subr.mxu0 %v423
    %1694 = vmatpush1.msra.mxu0 %v422
    %1695 = vmatprep.subr.mxu0 %v426
    %1696 = vmatpush1.msra.mxu0 %v425
    %1697 = vmatprep.subr.mxu0 %v429
    %1698 = vmatpush1.msra.mxu0 %v428
    %1699 = vmatprep.subr.mxu0 %v432
    %1700 = vmatpush1.msra.mxu0 %v431
    %1701 = vmatprep.subr.mxu0 %v435
    %1702 = vmatpush1.msra.mxu0 %v434
    %1703 = vmatprep.subr.mxu0 %v438
    %1704 = vmatpush1.msra.mxu0 %v437
    %1705 = vmatprep.subr.mxu0 %v441
    %1706 = vmatpush1.msra.mxu0 %v440
    %1707 = vmatprep.subr.mxu0 %v444
    %1708 = vmatpush1.msra.mxu0 %v443
    %1709 = vmatprep.subr.mxu0 %v447
    %1710 = vmatpush1.msra.mxu0 %v446
    %1711 = vmatprep.subr.mxu0 %v450
    %1712 = vmatpush1.msra.mxu0 %v449
    %1713 = vmatprep.subr.mxu0 %v453
    %1714 = vmatpush1.msra.mxu0 %v452
    %1715 = vmatprep.subr.mxu0 %v456
    %1716 = vmatpush1.msra.mxu0 %v455
    %1717 = vmatprep.subr.mxu0 %v459
    %1718 = vmatpush1.msra.mxu0 %v458
    %1719 = vmatprep.subr.mxu0 %v462
    %1720 = vmatpush1.msra.mxu0 %v461
    %1721 = vmatprep.subr.mxu0 %v465
    %1722 = vmatpush1.msra.mxu0 %v464
    %1723 = vmatprep.subr.mxu0 %v468
    %1724 = vmatpush1.msra.mxu0 %v467
    %1725 = vmatprep.subr.mxu0 0.0
    %1726 = vmatpush1.msra.mxu0 0.0
    %1727 = vmatprep.subr.mxu0 0.0
    %1728 = vmatpush1.msra.mxu0 0.0
    %1729 = vmatprep.subr.mxu0 0.0
    %1730 = vmatpush1.msra.mxu0 0.0
    %1731 = vmatprep.subr.mxu0 0.0
    %1732 = vmatpush1.msra.mxu0 0.0
    %1733 = vmatprep.subr.mxu0 0.0
    %1734 = vmatpush1.msra.mxu0 0.0
    %1735 = vmatprep.subr.mxu0 0.0
    %1736 = vmatpush1.msra.mxu0 0.0
    %1737 = vmatprep.subr.mxu0 0.0
    %1738 = vmatpush1.msra.mxu0 0.0
    %1739 = vmatprep.subr.mxu0 0.0
    %1740 = vmatpush1.msra.mxu0 0.0
    %1741 = vmatprep.subr.mxu0 0.0
    %1742 = vmatpush1.msra.mxu0 0.0
    %1743 = vmatprep.subr.mxu0 0.0
    %1744 = vmatpush1.msra.mxu0 0.0
    %1745 = vmatprep.subr.mxu0 0.0
    %1746 = vmatpush1.msra.mxu0 0.0
    %1747 = vmatprep.subr.mxu0 0.0
    %1748 = vmatpush1.msra.mxu0 0.0
    %1749 = vmatprep.subr.mxu0 0.0
    %1750 = vmatpush1.msra.mxu0 0.0
    %1751 = vmatprep.subr.mxu0 0.0
    %1752 = vmatpush1.msra.mxu0 0.0
    %1753 = vmatprep.subr.mxu0 0.0
    %1754 = vmatpush1.msra.mxu0 0.0
    %1755 = vmatprep.subr.mxu0 0.0
    %1756 = vmatpush1.msra.mxu0 0.0
    %1757 = vmatprep.mubr.f32.mxu0 0.0
    %1758 = vmatmul.mubr.f32.gmra.mrb[0].mxu0 %v1690
    %v1759 = vpop.f32.mrb[0].mxu0
    %v1760 = vadd.f32 0.0, %v1759
    %v1761 = vpop.f32.mrb[0].mxu0
    %v1762 = vadd.f32 0.0, %v1761
    %1763 = vdwg.mxu0
    %1764 = vmatprep.subr.mxu0 0.0
    %1765 = vmatpush1.msra.mxu0 %v424
    %1766 = vmatprep.subr.mxu0 0.0
    %1767 = vmatpush1.msra.mxu0 %v427
    %1768 = vmatprep.subr.mxu0 0.0
    %1769 = vmatpush1.msra.mxu0 %v430
    %1770 = vmatprep.subr.mxu0 0.0
    %1771 = vmatpush1.msra.mxu0 %v433
    %1772 = vmatprep.subr.mxu0 0.0
    %1773 = vmatpush1.msra.mxu0 %v436
    %1774 = vmatprep.subr.mxu0 0.0
    %1775 = vmatpush1.msra.mxu0 %v439
    %1776 = vmatprep.subr.mxu0 0.0
    %1777 = vmatpush1.msra.mxu0 %v442
    %1778 = vmatprep.subr.mxu0 0.0
    %1779 = vmatpush1.msra.mxu0 %v445
    %1780 = vmatprep.subr.mxu0 0.0
    %1781 = vmatpush1.msra.mxu0 %v448
    %1782 = vmatprep.subr.mxu0 0.0
    %1783 = vmatpush1.msra.mxu0 %v451
    %1784 = vmatprep.subr.mxu0 0.0
    %1785 = vmatpush1.msra.mxu0 %v454
    %1786 = vmatprep.subr.mxu0 0.0
    %1787 = vmatpush1.msra.mxu0 %v457
    %1788 = vmatprep.subr.mxu0 0.0
    %1789 = vmatpush1.msra.mxu0 %v460
    %1790 = vmatprep.subr.mxu0 0.0
    %1791 = vmatpush1.msra.mxu0 %v463
    %1792 = vmatprep.subr.mxu0 0.0
    %1793 = vmatpush1.msra.mxu0 %v466
    %1794 = vmatprep.subr.mxu0 0.0
    %1795 = vmatpush1.msra.mxu0 %v469
    %1796 = vmatprep.subr.mxu0 0.0
    %1797 = vmatpush1.msra.mxu0 0.0
    %1798 = vmatprep.subr.mxu0 0.0
    %1799 = vmatpush1.msra.mxu0 0.0
    %1800 = vmatprep.subr.mxu0 0.0
    %1801 = vmatpush1.msra.mxu0 0.0
    %1802 = vmatprep.subr.mxu0 0.0
    %1803 = vmatpush1.msra.mxu0 0.0
    %1804 = vmatprep.subr.mxu0 0.0
    %1805 = vmatpush1.msra.mxu0 0.0
    %1806 = vmatprep.subr.mxu0 0.0
    %1807 = vmatpush1.msra.mxu0 0.0
    %1808 = vmatprep.subr.mxu0 0.0
    %1809 = vmatpush1.msra.mxu0 0.0
    %1810 = vmatprep.subr.mxu0 0.0
    %1811 = vmatpush1.msra.mxu0 0.0
    %1812 = vmatprep.subr.mxu0 0.0
    %1813 = vmatpush1.msra.mxu0 0.0
    %1814 = vmatprep.subr.mxu0 0.0
    %1815 = vmatpush1.msra.mxu0 0.0
    %1816 = vmatprep.subr.mxu0 0.0
    %1817 = vmatpush1.msra.mxu0 0.0
    %1818 = vmatprep.subr.mxu0 0.0
    %1819 = vmatpush1.msra.mxu0 0.0
    %1820 = vmatprep.subr.mxu0 0.0
    %1821 = vmatpush1.msra.mxu0 0.0
    %1822 = vmatprep.subr.mxu0 0.0
    %1823 = vmatpush1.msra.mxu0 0.0
    %1824 = vmatprep.subr.mxu0 0.0
    %1825 = vmatpush1.msra.mxu0 0.0
    %1826 = vmatprep.subr.mxu0 0.0
    %1827 = vmatpush1.msra.mxu0 0.0
    %1828 = vmatprep.mubr.f32.mxu0 0.0
    %1829 = vmatmul.mubr.f32.gmra.mrb[0].mxu0 %v1690
    %v1830 = vpop.f32.mrb[0].mxu0
    %v1831 = vadd.f32 0.0, %v1830
    %v1832 = vpop.f32.mrb[0].mxu0
    %1833 = vdwg.mxu0
    %s1834 = scalar_lea.vmem [#allocation2], 42
    %v1835 = vld [vmem:[%s1834] sm:$0x3f]
    %v1838 = vcombine.low %v1760, %v1762
    %v1840 = vunpack.c.l.s4 1983009808
    %v1841 = vunpack.c.0.s8 %v1840
    %v1842 = vlaneseq
    %v1843 = vshrl.u32 %v1842, 7
    %v1844 = vsub.s32 %v1841, %v1843
    %v1845 = vrot.slane %v1838, %v1844
    %v1847 = vadd.f32 %v1835, %v1845
    %v1848 = vxor.u32 %v1847, 2147483648
    %v1849 = vmul.f32 %v1848, 1.442695
    %v1850 = vpow.pop %v1849
    %v1851 = vadd.f32 %v1850, 1.0
    %v1852 = vrcp.pop %v1851
    %v1853 = vmul.f32 1.0, %v1852
    %v1854 = vmul.f32 %v1853, %v1831
    %v1856 = vrot.slane %v1835, 4
    %v1858 = vadd.f32 %v1856, %v1854
    %v1859 = vtanh.pop %v1858
    %v1860 = vsub.f32 %v1690, %v1859
    %v1862 = vrot.slane %v1853, 2
    %v1864 = vmul.f32 %v1862, %v1860
    %v1865 = vadd.f32 %v1859, %v1864
    %s1866 = scalar_lea.vmem [#allocation3], 14
    %1867 = vst [vmem:[%s1866] sm:$0x3] %v1865
    %v1868 = vld [vmem:[#allocation3] sm:$0x3]
    %v1869 = vld [vmem:[#allocation3 + $0x2] sm:$0x3]
    %v1870 = vld [vmem:[#allocation3 + $0x4] sm:$0x3]
    %v1871 = vld [vmem:[#allocation3 + $0x6] sm:$0x3]
    %v1872 = vld [vmem:[#allocation3 + $0x8] sm:$0x3]
    %v1873 = vld [vmem:[#allocation3 + $0xa] sm:$0x3]
    %v1874 = vld [vmem:[#allocation3 + $0xc] sm:$0x3]
    %v1875 = vld [vmem:[#allocation3 + $0xe] sm:$0x3]
    %s1876 = scalar_lea.vmem [#allocation4], 384
    %v1877 = vld [vmem:[%s1876] sm:$0xff]
    %v1878 = vld [vmem:[%s1876 + $0x8] sm:$0xff]
    %v1879 = vld [vmem:[%s1876 + $0x10] sm:$0xff]
    %v1880 = vld [vmem:[%s1876 + $0x18] sm:$0xff]
    %v1881 = vld [vmem:[%s1876 + $0x20] sm:$0xff]
    %v1882 = vld [vmem:[%s1876 + $0x28] sm:$0xff]
    %v1883 = vld [vmem:[%s1876 + $0x30] sm:$0xff]
    %v1884 = vld [vmem:[%s1876 + $0x38] sm:$0xff]
    %v1885 = vld [vmem:[%s1876 + $0x40] sm:$0xff]
    %v1886 = vld [vmem:[%s1876 + $0x48] sm:$0xff]
    %v1887 = vld [vmem:[%s1876 + $0x50] sm:$0xff]
    %v1888 = vld [vmem:[%s1876 + $0x58] sm:$0xff]
    %v1889 = vld [vmem:[%s1876 + $0x60] sm:$0xff]
    %v1890 = vld [vmem:[%s1876 + $0x68] sm:$0xff]
    %v1891 = vld [vmem:[%s1876 + $0x70] sm:$0xff]
    %v1892 = vld [vmem:[%s1876 + $0x78] sm:$0xff]
    %v1893 = vld [vmem:[%s1876 + $0x80] sm:$0xff]
    %v1894 = vld [vmem:[%s1876 + $0x88] sm:$0xff]
    %v1895 = vld [vmem:[%s1876 + $0x90] sm:$0xff]
    %v1896 = vld [vmem:[%s1876 + $0x98] sm:$0xff]
    %v1897 = vld [vmem:[%s1876 + $0xa0] sm:$0xff]
    %v1898 = vld [vmem:[%s1876 + $0xa8] sm:$0xff]
    %v1899 = vld [vmem:[%s1876 + $0xb0] sm:$0xff]
    %v1900 = vld [vmem:[%s1876 + $0xb8] sm:$0xff]
    %v1901 = vld [vmem:[%s1876 + $0xc0] sm:$0xff]
    %v1902 = vld [vmem:[%s1876 + $0xc8] sm:$0xff]
    %v1903 = vld [vmem:[%s1876 + $0xd0] sm:$0xff]
    %v1904 = vld [vmem:[%s1876 + $0xd8] sm:$0xff]
    %v1905 = vld [vmem:[%s1876 + $0xe0] sm:$0xff]
    %v1906 = vld [vmem:[%s1876 + $0xe8] sm:$0xff]
    %v1907 = vld [vmem:[%s1876 + $0xf0] sm:$0xff]
    %v1908 = vld [vmem:[%s1876 + $0xf8] sm:$0xff]
    %v1909 = vld [vmem:[%s1876 + $0x100] sm:$0xff]
    %v1910 = vld [vmem:[%s1876 + $0x108] sm:$0xff]
    %v1911 = vld [vmem:[%s1876 + $0x110] sm:$0xff]
    %v1912 = vld [vmem:[%s1876 + $0x118] sm:$0xff]
    %v1913 = vld [vmem:[%s1876 + $0x120] sm:$0xff]
    %v1914 = vld [vmem:[%s1876 + $0x128] sm:$0xff]
    %v1915 = vld [vmem:[%s1876 + $0x130] sm:$0xff]
    %v1916 = vld [vmem:[%s1876 + $0x138] sm:$0xff]
    %v1917 = vld [vmem:[%s1876 + $0x140] sm:$0xff]
    %v1918 = vld [vmem:[%s1876 + $0x148] sm:$0xff]
    %v1919 = vld [vmem:[%s1876 + $0x150] sm:$0xff]
    %v1920 = vld [vmem:[%s1876 + $0x158] sm:$0xff]
    %v1921 = vld [vmem:[%s1876 + $0x160] sm:$0xff]
    %v1922 = vld [vmem:[%s1876 + $0x168] sm:$0xff]
    %v1923 = vld [vmem:[%s1876 + $0x170] sm:$0xff]
    %v1924 = vld [vmem:[%s1876 + $0x178] sm:$0xff]
    %v1933 = vcombine.low %v1868, %v1869
    %v1934 = vcombine.low %v1870, %v1871
    %v1936 = vunpack.c.l.s4 1983009808
    %v1937 = vunpack.c.0.s8 %v1936
    %v1938 = vlaneseq
    %v1939 = vshrl.u32 %v1938, 7
    %v1940 = vsub.s32 %v1937, %v1939
    %v1941 = vrot.slane %v1933, %v1940
    %v1943 = vunpack.c.l.s4 1983009808
    %v1944 = vunpack.c.0.s8 %v1943
    %v1945 = vlaneseq
    %v1946 = vshrl.u32 %v1945, 7
    %v1947 = vsub.s32 %v1944, %v1946
    %v1948 = vrot.slane %v1934, %v1947
    %v1949 = vcombine.low %v1941, %v1948
    %v1950 = vcombine.low %v1872, %v1873
    %v1951 = vcombine.low %v1874, %v1875
    %v1953 = vunpack.c.l.s4 1983009808
    %v1954 = vunpack.c.0.s8 %v1953
    %v1955 = vlaneseq
    %v1956 = vshrl.u32 %v1955, 7
    %v1957 = vsub.s32 %v1954, %v1956
    %v1958 = vrot.slane %v1950, %v1957
    %v1960 = vunpack.c.l.s4 1983009808
    %v1961 = vunpack.c.0.s8 %v1960
    %v1962 = vlaneseq
    %v1963 = vshrl.u32 %v1962, 7
    %v1964 = vsub.s32 %v1961, %v1963
    %v1965 = vrot.slane %v1951, %v1964
    %v1966 = vcombine.low %v1958, %v1965
    %1969 = vmatprep.subr.mxu0 %v1878
    %1970 = vmatpush1.msra.mxu0 %v1877
    %1971 = vmatprep.subr.mxu0 %v1881
    %1972 = vmatpush1.msra.mxu0 %v1880
    %1973 = vmatprep.subr.mxu0 %v1884
    %1974 = vmatpush1.msra.mxu0 %v1883
    %1975 = vmatprep.subr.mxu0 %v1887
    %1976 = vmatpush1.msra.mxu0 %v1886
    %1977 = vmatprep.subr.mxu0 %v1890
    %1978 = vmatpush1.msra.mxu0 %v1889
    %1979 = vmatprep.subr.mxu0 %v1893
    %1980 = vmatpush1.msra.mxu0 %v1892
    %1981 = vmatprep.subr.mxu0 %v1896
    %1982 = vmatpush1.msra.mxu0 %v1895
    %1983 = vmatprep.subr.mxu0 %v1899
    %1984 = vmatpush1.msra.mxu0 %v1898
    %1985 = vmatprep.subr.mxu0 %v1902
    %1986 = vmatpush1.msra.mxu0 %v1901
    %1987 = vmatprep.subr.mxu0 %v1905
    %1988 = vmatpush1.msra.mxu0 %v1904
    %1989 = vmatprep.subr.mxu0 %v1908
    %1990 = vmatpush1.msra.mxu0 %v1907
    %1991 = vmatprep.subr.mxu0 %v1911
    %1992 = vmatpush1.msra.mxu0 %v1910
    %1993 = vmatprep.subr.mxu0 %v1914
    %1994 = vmatpush1.msra.mxu0 %v1913
    %1995 = vmatprep.subr.mxu0 %v1917
    %1996 = vmatpush1.msra.mxu0 %v1916
    %1997 = vmatprep.subr.mxu0 %v1920
    %1998 = vmatpush1.msra.mxu0 %v1919
    %1999 = vmatprep.subr.mxu0 %v1923
    %2000 = vmatpush1.msra.mxu0 %v1922
    %2001 = vmatprep.subr.mxu0 0.0
    %2002 = vmatpush1.msra.mxu0 0.0
    %2003 = vmatprep.subr.mxu0 0.0
    %2004 = vmatpush1.msra.mxu0 0.0
    %2005 = vmatprep.subr.mxu0 0.0
    %2006 = vmatpush1.msra.mxu0 0.0
    %2007 = vmatprep.subr.mxu0 0.0
    %2008 = vmatpush1.msra.mxu0 0.0
    %2009 = vmatprep.subr.mxu0 0.0
    %2010 = vmatpush1.msra.mxu0 0.0
    %2011 = vmatprep.subr.mxu0 0.0
    %2012 = vmatpush1.msra.mxu0 0.0
    %2013 = vmatprep.subr.mxu0 0.0
    %2014 = vmatpush1.msra.mxu0 0.0
    %2015 = vmatprep.subr.mxu0 0.0
    %2016 = vmatpush1.msra.mxu0 0.0
    %2017 = vmatprep.subr.mxu0 0.0
    %2018 = vmatpush1.msra.mxu0 0.0
    %2019 = vmatprep.subr.mxu0 0.0
    %2020 = vmatpush1.msra.mxu0 0.0
    %2021 = vmatprep.subr.mxu0 0.0
    %2022 = vmatpush1.msra.mxu0 0.0
    %2023 = vmatprep.subr.mxu0 0.0
    %2024 = vmatpush1.msra.mxu0 0.0
    %2025 = vmatprep.subr.mxu0 0.0
    %2026 = vmatpush1.msra.mxu0 0.0
    %2027 = vmatprep.subr.mxu0 0.0
    %2028 = vmatpush1.msra.mxu0 0.0
    %2029 = vmatprep.subr.mxu0 0.0
    %2030 = vmatpush1.msra.mxu0 0.0
    %2031 = vmatprep.subr.mxu0 0.0
    %2032 = vmatpush1.msra.mxu0 0.0
    %2033 = vmatprep.mubr.f32.mxu0 0.0
    %2034 = vmatmul.mubr.f32.gmra.mrb[0].mxu0 %v1949
    %v2035 = vpop.f32.mrb[0].mxu0
    %v2036 = vadd.f32 0.0, %v2035
    %v2037 = vpop.f32.mrb[0].mxu0
    %v2038 = vadd.f32 0.0, %v2037
    %2039 = vmatprep.mubr.f32.mxu0 0.0
    %2040 = vmatmul.mubr.f32.gmra.mrb[0].mxu0 %v1966
    %v2041 = vpop.f32.mrb[0].mxu0
    %v2042 = vadd.f32 0.0, %v2041
    %v2043 = vpop.f32.mrb[0].mxu0
    %v2044 = vadd.f32 0.0, %v2043
    %2045 = vdwg.mxu0
    %2046 = vmatprep.subr.mxu0 0.0
    %2047 = vmatpush1.msra.mxu0 %v1879
    %2048 = vmatprep.subr.mxu0 0.0
    %2049 = vmatpush1.msra.mxu0 %v1882
    %2050 = vmatprep.subr.mxu0 0.0
    %2051 = vmatpush1.msra.mxu0 %v1885
    %2052 = vmatprep.subr.mxu0 0.0
    %2053 = vmatpush1.msra.mxu0 %v1888
    %2054 = vmatprep.subr.mxu0 0.0
    %2055 = vmatpush1.msra.mxu0 %v1891
    %2056 = vmatprep.subr.mxu0 0.0
    %2057 = vmatpush1.msra.mxu0 %v1894
    %2058 = vmatprep.subr.mxu0 0.0
    %2059 = vmatpush1.msra.mxu0 %v1897
    %2060 = vmatprep.subr.mxu0 0.0
    %2061 = vmatpush1.msra.mxu0 %v1900
    %2062 = vmatprep.subr.mxu0 0.0
    %2063 = vmatpush1.msra.mxu0 %v1903
    %2064 = vmatprep.subr.mxu0 0.0
    %2065 = vmatpush1.msra.mxu0 %v1906
    %2066 = vmatprep.subr.mxu0 0.0
    %2067 = vmatpush1.msra.mxu0 %v1909
    %2068 = vmatprep.subr.mxu0 0.0
    %2069 = vmatpush1.msra.mxu0 %v1912
    %2070 = vmatprep.subr.mxu0 0.0
    %2071 = vmatpush1.msra.mxu0 %v1915
    %2072 = vmatprep.subr.mxu0 0.0
    %2073 = vmatpush1.msra.mxu0 %v1918
    %2074 = vmatprep.subr.mxu0 0.0
    %2075 = vmatpush1.msra.mxu0 %v1921
    %2076 = vmatprep.subr.mxu0 0.0
    %2077 = vmatpush1.msra.mxu0 %v1924
    %2078 = vmatprep.subr.mxu0 0.0
    %2079 = vmatpush1.msra.mxu0 0.0
    %2080 = vmatprep.subr.mxu0 0.0
    %2081 = vmatpush1.msra.mxu0 0.0
    %2082 = vmatprep.subr.mxu0 0.0
    %2083 = vmatpush1.msra.mxu0 0.0
    %2084 = vmatprep.subr.mxu0 0.0
    %2085 = vmatpush1.msra.mxu0 0.0
    %2086 = vmatprep.subr.mxu0 0.0
    %2087 = vmatpush1.msra.mxu0 0.0
    %2088 = vmatprep.subr.mxu0 0.0
    %2089 = vmatpush1.msra.mxu0 0.0
    %2090 = vmatprep.subr.mxu0 0.0
    %2091 = vmatpush1.msra.mxu0 0.0
    %2092 = vmatprep.subr.mxu0 0.0
    %2093 = vmatpush1.msra.mxu0 0.0
    %2094 = vmatprep.subr.mxu0 0.0
    %2095 = vmatpush1.msra.mxu0 0.0
    %2096 = vmatprep.subr.mxu0 0.0
    %2097 = vmatpush1.msra.mxu0 0.0
    %2098 = vmatprep.subr.mxu0 0.0
    %2099 = vmatpush1.msra.mxu0 0.0
    %2100 = vmatprep.subr.mxu0 0.0
    %2101 = vmatpush1.msra.mxu0 0.0
    %2102 = vmatprep.subr.mxu0 0.0
    %2103 = vmatpush1.msra.mxu0 0.0
    %2104 = vmatprep.subr.mxu0 0.0
    %2105 = vmatpush1.msra.mxu0 0.0
    %2106 = vmatprep.subr.mxu0 0.0
    %2107 = vmatpush1.msra.mxu0 0.0
    %2108 = vmatprep.subr.mxu0 0.0
    %2109 = vmatpush1.msra.mxu0 0.0
    %2110 = vmatprep.mubr.f32.mxu0 0.0
    %2111 = vmatmul.mubr.f32.gmra.mrb[0].mxu0 %v1949
    %v2112 = vpop.f32.mrb[0].mxu0
    %v2113 = vadd.f32 0.0, %v2112
    %v2114 = vpop.f32.mrb[0].mxu0
    %2115 = vmatprep.mubr.f32.mxu0 0.0
    %2116 = vmatmul.mubr.f32.gmra.mrb[0].mxu0 %v1966
    %v2117 = vpop.f32.mrb[0].mxu0
    %v2118 = vadd.f32 0.0, %v2117
    %v2119 = vpop.f32.mrb[0].mxu0
    %2120 = vdwg.mxu0
    %v2127 = vcombine.low %v2036, %v2038
    %v2128 = vcombine.high %v2036, %v2038
    %v2129 = vcombine.high %v2113, %v2113
    %v2131 = vunpack.c.l.s4 1983009808
    %v2132 = vunpack.c.0.s8 %v2131
    %v2133 = vlaneseq
    %v2134 = vshrl.u32 %v2133, 7
    %v2135 = vsub.s32 %v2132, %v2134
    %v2136 = vrot.slane %v2127, %v2135
    %v2138 = vunpack.c.l.s4 1983009808
    %v2139 = vunpack.c.0.s8 %v2138
    %v2140 = vlaneseq
    %v2141 = vshrl.u32 %v2140, 7
    %v2142 = vsub.s32 %v2139, %v2141
    %v2143 = vrot.slane %v2128, %v2142
    %v2145 = vunpack.c.l.s4 1983009808
    %v2146 = vunpack.c.0.s8 %v2145
    %v2147 = vlaneseq
    %v2148 = vshrl.u32 %v2147, 7
    %v2149 = vsub.s32 %v2146, %v2148
    %v2150 = vrot.slane %v2113, %v2149
    %v2152 = vunpack.c.l.s4 1983009808
    %v2153 = vunpack.c.0.s8 %v2152
    %v2154 = vlaneseq
    %v2155 = vshrl.u32 %v2154, 7
    %v2156 = vsub.s32 %v2153, %v2155
    %v2157 = vrot.slane %v2129, %v2156
    %v2158 = vcombine.low %v2136, %v2150
    %v2159 = vcombine.high %v2136, %v2150
    %v2160 = vcombine.low %v2143, %v2157
    %v2161 = vcombine.high %v2143, %v2157
    %v2162 = vcombine.low %v2042, %v2044
    %v2163 = vcombine.high %v2042, %v2044
    %v2164 = vcombine.high %v2118, %v2118
    %v2166 = vunpack.c.l.s4 1983009808
    %v2167 = vunpack.c.0.s8 %v2166
    %v2168 = vlaneseq
    %v2169 = vshrl.u32 %v2168, 7
    %v2170 = vsub.s32 %v2167, %v2169
    %v2171 = vrot.slane %v2162, %v2170
    %v2173 = vunpack.c.l.s4 1983009808
    %v2174 = vunpack.c.0.s8 %v2173
    %v2175 = vlaneseq
    %v2176 = vshrl.u32 %v2175, 7
    %v2177 = vsub.s32 %v2174, %v2176
    %v2178 = vrot.slane %v2163, %v2177
    %v2180 = vunpack.c.l.s4 1983009808
    %v2181 = vunpack.c.0.s8 %v2180
    %v2182 = vlaneseq
    %v2183 = vshrl.u32 %v2182, 7
    %v2184 = vsub.s32 %v2181, %v2183
    %v2185 = vrot.slane %v2118, %v2184
    %v2187 = vunpack.c.l.s4 1983009808
    %v2188 = vunpack.c.0.s8 %v2187
    %v2189 = vlaneseq
    %v2190 = vshrl.u32 %v2189, 7
    %v2191 = vsub.s32 %v2188, %v2190
    %v2192 = vrot.slane %v2164, %v2191
    %v2193 = vcombine.low %v2171, %v2185
    %v2194 = vcombine.high %v2171, %v2185
    %v2195 = vcombine.low %v2178, %v2192
    %v2196 = vcombine.high %v2178, %v2192
    %2205 = vst [vmem:[#allocation2] sm:$0x3f] %v2158
    %2206 = vst [vmem:[#allocation2 + $0x6] sm:$0x3f] %v2159
    %2207 = vst [vmem:[#allocation2 + $0xc] sm:$0x3f] %v2160
    %2208 = vst [vmem:[#allocation2 + $0x12] sm:$0x3f] %v2161
    %2209 = vst [vmem:[#allocation2 + $0x18] sm:$0x3f] %v2193
    %2210 = vst [vmem:[#allocation2 + $0x1e] sm:$0x3f] %v2194
    %2211 = vst [vmem:[#allocation2 + $0x24] sm:$0x3f] %v2195
    %2212 = vst [vmem:[#allocation2 + $0x2a] sm:$0x3f] %v2196
    %s2213 = scalar_lea.vmem [#allocation6], 384
    %v2214 = vld [vmem:[%s2213] sm:$0xff]
    %v2215 = vld [vmem:[%s2213 + $0x8] sm:$0xff]
    %v2216 = vld [vmem:[%s2213 + $0x10] sm:$0xff]
    %v2217 = vld [vmem:[%s2213 + $0x18] sm:$0xff]
    %v2218 = vld [vmem:[%s2213 + $0x20] sm:$0xff]
    %v2219 = vld [vmem:[%s2213 + $0x28] sm:$0xff]
    %v2220 = vld [vmem:[%s2213 + $0x30] sm:$0xff]
    %v2221 = vld [vmem:[%s2213 + $0x38] sm:$0xff]
    %v2222 = vld [vmem:[%s2213 + $0x40] sm:$0xff]
    %v2223 = vld [vmem:[%s2213 + $0x48] sm:$0xff]
    %v2224 = vld [vmem:[%s2213 + $0x50] sm:$0xff]
    %v2225 = vld [vmem:[%s2213 + $0x58] sm:$0xff]
    %v2226 = vld [vmem:[%s2213 + $0x60] sm:$0xff]
    %v2227 = vld [vmem:[%s2213 + $0x68] sm:$0xff]
    %v2228 = vld [vmem:[%s2213 + $0x70] sm:$0xff]
    %v2229 = vld [vmem:[%s2213 + $0x78] sm:$0xff]
    %v2230 = vld [vmem:[%s2213 + $0x80] sm:$0xff]
    %v2231 = vld [vmem:[%s2213 + $0x88] sm:$0xff]
    %v2232 = vld [vmem:[%s2213 + $0x90] sm:$0xff]
    %v2233 = vld [vmem:[%s2213 + $0x98] sm:$0xff]
    %v2234 = vld [vmem:[%s2213 + $0xa0] sm:$0xff]
    %v2235 = vld [vmem:[%s2213 + $0xa8] sm:$0xff]
    %v2236 = vld [vmem:[%s2213 + $0xb0] sm:$0xff]
    %v2237 = vld [vmem:[%s2213 + $0xb8] sm:$0xff]
    %v2238 = vld [vmem:[%s2213 + $0xc0] sm:$0xff]
    %v2239 = vld [vmem:[%s2213 + $0xc8] sm:$0xff]
    %v2240 = vld [vmem:[%s2213 + $0xd0] sm:$0xff]
    %v2241 = vld [vmem:[%s2213 + $0xd8] sm:$0xff]
    %v2242 = vld [vmem:[%s2213 + $0xe0] sm:$0xff]
    %v2243 = vld [vmem:[%s2213 + $0xe8] sm:$0xff]
    %v2244 = vld [vmem:[%s2213 + $0xf0] sm:$0xff]
    %v2245 = vld [vmem:[%s2213 + $0xf8] sm:$0xff]
    %v2246 = vld [vmem:[%s2213 + $0x100] sm:$0xff]
    %v2247 = vld [vmem:[%s2213 + $0x108] sm:$0xff]
    %v2248 = vld [vmem:[%s2213 + $0x110] sm:$0xff]
    %v2249 = vld [vmem:[%s2213 + $0x118] sm:$0xff]
    %v2250 = vld [vmem:[%s2213 + $0x120] sm:$0xff]
    %v2251 = vld [vmem:[%s2213 + $0x128] sm:$0xff]
    %v2252 = vld [vmem:[%s2213 + $0x130] sm:$0xff]
    %v2253 = vld [vmem:[%s2213 + $0x138] sm:$0xff]
    %v2254 = vld [vmem:[%s2213 + $0x140] sm:$0xff]
    %v2255 = vld [vmem:[%s2213 + $0x148] sm:$0xff]
    %v2256 = vld [vmem:[%s2213 + $0x150] sm:$0xff]
    %v2257 = vld [vmem:[%s2213 + $0x158] sm:$0xff]
    %v2258 = vld [vmem:[%s2213 + $0x160] sm:$0xff]
    %v2259 = vld [vmem:[%s2213 + $0x168] sm:$0xff]
    %v2260 = vld [vmem:[%s2213 + $0x170] sm:$0xff]
    %v2261 = vld [vmem:[%s2213 + $0x178] sm:$0xff]
    %2262 = vmatprep.subr.mxu0 %v2215
    %2263 = vmatpush1.msra.mxu0 %v2214
    %2264 = vmatprep.subr.mxu0 %v2218
    %2265 = vmatpush1.msra.mxu0 %v2217
    %2266 = vmatprep.subr.mxu0 %v2221
    %2267 = vmatpush1.msra.mxu0 %v2220
    %2268 = vmatprep.subr.mxu0 %v2224
    %2269 = vmatpush1.msra.mxu0 %v2223
    %2270 = vmatprep.subr.mxu0 %v2227
    %2271 = vmatpush1.msra.mxu0 %v2226
    %2272 = vmatprep.subr.mxu0 %v2230
    %2273 = vmatpush1.msra.mxu0 %v2229
    %2274 = vmatprep.subr.mxu0 %v2233
    %2275 = vmatpush1.msra.mxu0 %v2232
    %2276 = vmatprep.subr.mxu0 %v2236
    %2277 = vmatpush1.msra.mxu0 %v2235
    %2278 = vmatprep.subr.mxu0 %v2239
    %2279 = vmatpush1.msra.mxu0 %v2238
    %2280 = vmatprep.subr.mxu0 %v2242
    %2281 = vmatpush1.msra.mxu0 %v2241
    %2282 = vmatprep.subr.mxu0 %v2245
    %2283 = vmatpush1.msra.mxu0 %v2244
    %2284 = vmatprep.subr.mxu0 %v2248
    %2285 = vmatpush1.msra.mxu0 %v2247
    %2286 = vmatprep.subr.mxu0 %v2251
    %2287 = vmatpush1.msra.mxu0 %v2250
    %2288 = vmatprep.subr.mxu0 %v2254
    %2289 = vmatpush1.msra.mxu0 %v2253
    %2290 = vmatprep.subr.mxu0 %v2257
    %2291 = vmatpush1.msra.mxu0 %v2256
    %2292 = vmatprep.subr.mxu0 %v2260
    %2293 = vmatpush1.msra.mxu0 %v2259
    %2294 = vmatprep.subr.mxu0 0.0
    %2295 = vmatpush1.msra.mxu0 0.0
    %2296 = vmatprep.subr.mxu0 0.0
    %2297 = vmatpush1.msra.mxu0 0.0
    %2298 = vmatprep.subr.mxu0 0.0
    %2299 = vmatpush1.msra.mxu0 0.0
    %2300 = vmatprep.subr.mxu0 0.0
    %2301 = vmatpush1.msra.mxu0 0.0
    %2302 = vmatprep.subr.mxu0 0.0
    %2303 = vmatpush1.msra.mxu0 0.0
    %2304 = vmatprep.subr.mxu0 0.0
    %2305 = vmatpush1.msra.mxu0 0.0
    %2306 = vmatprep.subr.mxu0 0.0
    %2307 = vmatpush1.msra.mxu0 0.0
    %2308 = vmatprep.subr.mxu0 0.0
    %2309 = vmatpush1.msra.mxu0 0.0
    %2310 = vmatprep.subr.mxu0 0.0
    %2311 = vmatpush1.msra.mxu0 0.0
    %2312 = vmatprep.subr.mxu0 0.0
    %2313 = vmatpush1.msra.mxu0 0.0
    %2314 = vmatprep.subr.mxu0 0.0
    %2315 = vmatpush1.msra.mxu0 0.0
    %2316 = vmatprep.subr.mxu0 0.0
    %2317 = vmatpush1.msra.mxu0 0.0
    %2318 = vmatprep.subr.mxu0 0.0
    %2319 = vmatpush1.msra.mxu0 0.0
    %2320 = vmatprep.subr.mxu0 0.0
    %2321 = vmatpush1.msra.mxu0 0.0
    %2322 = vmatprep.subr.mxu0 0.0
    %2323 = vmatpush1.msra.mxu0 0.0
    %2324 = vmatprep.subr.mxu0 0.0
    %2325 = vmatpush1.msra.mxu0 0.0
    %2326 = vmatprep.mubr.f32.mxu0 0.0
    %2327 = vmatmul.mubr.f32.gmra.mrb[0].mxu0 0.0
    %v2328 = vpop.f32.mrb[0].mxu0
    %v2329 = vadd.f32 0.0, %v2328
    %v2330 = vpop.f32.mrb[0].mxu0
    %v2331 = vadd.f32 0.0, %v2330
    %2332 = vdwg.mxu0
    %2333 = vmatprep.subr.mxu0 0.0
    %2334 = vmatpush1.msra.mxu0 %v2216
    %2335 = vmatprep.subr.mxu0 0.0
    %2336 = vmatpush1.msra.mxu0 %v2219
    %2337 = vmatprep.subr.mxu0 0.0
    %2338 = vmatpush1.msra.mxu0 %v2222
    %2339 = vmatprep.subr.mxu0 0.0
    %2340 = vmatpush1.msra.mxu0 %v2225
    %2341 = vmatprep.subr.mxu0 0.0
    %2342 = vmatpush1.msra.mxu0 %v2228
    %2343 = vmatprep.subr.mxu0 0.0
    %2344 = vmatpush1.msra.mxu0 %v2231
    %2345 = vmatprep.subr.mxu0 0.0
    %2346 = vmatpush1.msra.mxu0 %v2234
    %2347 = vmatprep.subr.mxu0 0.0
    %2348 = vmatpush1.msra.mxu0 %v2237
    %2349 = vmatprep.subr.mxu0 0.0
    %2350 = vmatpush1.msra.mxu0 %v2240
    %2351 = vmatprep.subr.mxu0 0.0
    %2352 = vmatpush1.msra.mxu0 %v2243
    %2353 = vmatprep.subr.mxu0 0.0
    %2354 = vmatpush1.msra.mxu0 %v2246
    %2355 = vmatprep.subr.mxu0 0.0
    %2356 = vmatpush1.msra.mxu0 %v2249
    %2357 = vmatprep.subr.mxu0 0.0
    %2358 = vmatpush1.msra.mxu0 %v2252
    %2359 = vmatprep.subr.mxu0 0.0
    %2360 = vmatpush1.msra.mxu0 %v2255
    %2361 = vmatprep.subr.mxu0 0.0
    %2362 = vmatpush1.msra.mxu0 %v2258
    %2363 = vmatprep.subr.mxu0 0.0
    %2364 = vmatpush1.msra.mxu0 %v2261
    %2365 = vmatprep.subr.mxu0 0.0
    %2366 = vmatpush1.msra.mxu0 0.0
    %2367 = vmatprep.subr.mxu0 0.0
    %2368 = vmatpush1.msra.mxu0 0.0
    %2369 = vmatprep.subr.mxu0 0.0
    %2370 = vmatpush1.msra.mxu0 0.0
    %2371 = vmatprep.subr.mxu0 0.0
    %2372 = vmatpush1.msra.mxu0 0.0
    %2373 = vmatprep.subr.mxu0 0.0
    %2374 = vmatpush1.msra.mxu0 0.0
    %2375 = vmatprep.subr.mxu0 0.0
    %2376 = vmatpush1.msra.mxu0 0.0
    %2377 = vmatprep.subr.mxu0 0.0
    %2378 = vmatpush1.msra.mxu0 0.0
    %2379 = vmatprep.subr.mxu0 0.0
    %2380 = vmatpush1.msra.mxu0 0.0
    %2381 = vmatprep.subr.mxu0 0.0
    %2382 = vmatpush1.msra.mxu0 0.0
    %2383 = vmatprep.subr.mxu0 0.0
    %2384 = vmatpush1.msra.mxu0 0.0
    %2385 = vmatprep.subr.mxu0 0.0
    %2386 = vmatpush1.msra.mxu0 0.0
    %2387 = vmatprep.subr.mxu0 0.0
    %2388 = vmatpush1.msra.mxu0 0.0
    %2389 = vmatprep.subr.mxu0 0.0
    %2390 = vmatpush1.msra.mxu0 0.0
    %2391 = vmatprep.subr.mxu0 0.0
    %2392 = vmatpush1.msra.mxu0 0.0
    %2393 = vmatprep.subr.mxu0 0.0
    %2394 = vmatpush1.msra.mxu0 0.0
    %2395 = vmatprep.subr.mxu0 0.0
    %2396 = vmatpush1.msra.mxu0 0.0
    %2397 = vmatprep.mubr.f32.mxu0 0.0
    %2398 = vmatmul.mubr.f32.gmra.mrb[0].mxu0 0.0
    %v2399 = vpop.f32.mrb[0].mxu0
    %v2400 = vadd.f32 0.0, %v2399
    %v2401 = vpop.f32.mrb[0].mxu0
    %2402 = vdwg.mxu0
    %v2403 = vld [vmem:[#allocation2] sm:$0x3f]
    %v2406 = vcombine.low %v2329, %v2331
    %v2408 = vunpack.c.l.s4 1983009808
    %v2409 = vunpack.c.0.s8 %v2408
    %v2410 = vlaneseq
    %v2411 = vshrl.u32 %v2410, 7
    %v2412 = vsub.s32 %v2409, %v2411
    %v2413 = vrot.slane %v2406, %v2412
    %v2415 = vadd.f32 %v2403, %v2413
    %v2416 = vxor.u32 %v2415, 2147483648
    %v2417 = vmul.f32 %v2416, 1.442695
    %v2418 = vpow.pop %v2417
    %v2419 = vadd.f32 %v2418, 1.0
    %v2420 = vrcp.pop %v2419
    %v2421 = vmul.f32 1.0, %v2420
    %v2422 = vmul.f32 %v2421, %v2400
    %v2424 = vrot.slane %v2403, 4
    %v2426 = vadd.f32 %v2424, %v2422
    %v2427 = vtanh.pop %v2426
    %v2428 = vsub.f32 0.0, %v2427
    %v2430 = vrot.slane %v2421, 2
    %v2432 = vmul.f32 %v2430, %v2428
    %v2433 = vadd.f32 %v2427, %v2432
    %v2435 = vlaneseq
    %v2436 = vshrl.u32 %v2435, 7
    %v2437 = vsub.s32 0, %v2436
    %v2438 = vrot.slane %v77, %v2437
    %2440 = vmatprep.subr.mxu0 0.0
    %2441 = vmatpush1.msra.mxu0 %v61
    %2442 = vmatprep.subr.mxu0 0.0
    %2443 = vmatpush1.msra.mxu0 %v62
    %2444 = vmatprep.subr.mxu0 0.0
    %2445 = vmatpush1.msra.mxu0 %v63
    %2446 = vmatprep.subr.mxu0 0.0
    %2447 = vmatpush1.msra.mxu0 %v64
    %2448 = vmatprep.subr.mxu0 0.0
    %2449 = vmatpush1.msra.mxu0 %v65
    %2450 = vmatprep.subr.mxu0 0.0
    %2451 = vmatpush1.msra.mxu0 %v66
    %2452 = vmatprep.subr.mxu0 0.0
    %2453 = vmatpush1.msra.mxu0 %v67
    %2454 = vmatprep.subr.mxu0 0.0
    %2455 = vmatpush1.msra.mxu0 %v68
    %2456 = vmatprep.subr.mxu0 0.0
    %2457 = vmatpush1.msra.mxu0 %v69
    %2458 = vmatprep.subr.mxu0 0.0
    %2459 = vmatpush1.msra.mxu0 %v70
    %2460 = vmatprep.subr.mxu0 0.0
    %2461 = vmatpush1.msra.mxu0 %v71
    %2462 = vmatprep.subr.mxu0 0.0
    %2463 = vmatpush1.msra.mxu0 %v72
    %2464 = vmatprep.subr.mxu0 0.0
    %2465 = vmatpush1.msra.mxu0 %v73
    %2466 = vmatprep.subr.mxu0 0.0
    %2467 = vmatpush1.msra.mxu0 %v74
    %2468 = vmatprep.subr.mxu0 0.0
    %2469 = vmatpush1.msra.mxu0 %v75
    %2470 = vmatprep.subr.mxu0 0.0
    %2471 = vmatpush1.msra.mxu0 %v76
    %2472 = vmatprep.subr.mxu0 0.0
    %2473 = vmatpush1.msra.mxu0 0.0
    %2474 = vmatprep.subr.mxu0 0.0
    %2475 = vmatpush1.msra.mxu0 0.0
    %2476 = vmatprep.subr.mxu0 0.0
    %2477 = vmatpush1.msra.mxu0 0.0
    %2478 = vmatprep.subr.mxu0 0.0
    %2479 = vmatpush1.msra.mxu0 0.0
    %2480 = vmatprep.subr.mxu0 0.0
    %2481 = vmatpush1.msra.mxu0 0.0
    %2482 = vmatprep.subr.mxu0 0.0
    %2483 = vmatpush1.msra.mxu0 0.0
    %2484 = vmatprep.subr.mxu0 0.0
    %2485 = vmatpush1.msra.mxu0 0.0
    %2486 = vmatprep.subr.mxu0 0.0
    %2487 = vmatpush1.msra.mxu0 0.0
    %2488 = vmatprep.subr.mxu0 0.0
    %2489 = vmatpush1.msra.mxu0 0.0
    %2490 = vmatprep.subr.mxu0 0.0
    %2491 = vmatpush1.msra.mxu0 0.0
    %2492 = vmatprep.subr.mxu0 0.0
    %2493 = vmatpush1.msra.mxu0 0.0
    %2494 = vmatprep.subr.mxu0 0.0
    %2495 = vmatpush1.msra.mxu0 0.0
    %2496 = vmatprep.subr.mxu0 0.0
    %2497 = vmatpush1.msra.mxu0 0.0
    %2498 = vmatprep.subr.mxu0 0.0
    %2499 = vmatpush1.msra.mxu0 0.0
    %2500 = vmatprep.subr.mxu0 0.0
    %2501 = vmatpush1.msra.mxu0 0.0
    %2502 = vmatprep.subr.mxu0 0.0
    %2503 = vmatpush1.msra.mxu0 0.0
    %2504 = vmatprep.mubr.f32.mxu0 0.0
    %2505 = vmatmul.mubr.f32.gmra.mrb[0].mxu0 %v2433
    %v2506 = vpop.f32.mrb[0].mxu0
    %v2507 = vadd.f32 %v2438, %v2506
    %v2508 = vpop.f32.mrb[0].mxu0
    %2509 = vdwg.mxu0
    %vm2510 = vcmask 254976
    %2511 = vst.msk [vmem:[%s5] sm:$0x3] %vm2510, %v2507
    %2512 = vmatprep.subr.mxu0 %v2215
    %2513 = vmatpush1.msra.mxu0 %v2214
    %2514 = vmatprep.subr.mxu0 %v2218
    %2515 = vmatpush1.msra.mxu0 %v2217
    %2516 = vmatprep.subr.mxu0 %v2221
    %2517 = vmatpush1.msra.mxu0 %v2220
    %2518 = vmatprep.subr.mxu0 %v2224
    %2519 = vmatpush1.msra.mxu0 %v2223
    %2520 = vmatprep.subr.mxu0 %v2227
    %2521 = vmatpush1.msra.mxu0 %v2226
    %2522 = vmatprep.subr.mxu0 %v2230
    %2523 = vmatpush1.msra.mxu0 %v2229
    %2524 = vmatprep.subr.mxu0 %v2233
    %2525 = vmatpush1.msra.mxu0 %v2232
    %2526 = vmatprep.subr.mxu0 %v2236
    %2527 = vmatpush1.msra.mxu0 %v2235
    %2528 = vmatprep.subr.mxu0 %v2239
    %2529 = vmatpush1.msra.mxu0 %v2238
    %2530 = vmatprep.subr.mxu0 %v2242
    %2531 = vmatpush1.msra.mxu0 %v2241
    %2532 = vmatprep.subr.mxu0 %v2245
    %2533 = vmatpush1.msra.mxu0 %v2244
    %2534 = vmatprep.subr.mxu0 %v2248
    %2535 = vmatpush1.msra.mxu0 %v2247
    %2536 = vmatprep.subr.mxu0 %v2251
    %2537 = vmatpush1.msra.mxu0 %v2250
    %2538 = vmatprep.subr.mxu0 %v2254
    %2539 = vmatpush1.msra.mxu0 %v2253
    %2540 = vmatprep.subr.mxu0 %v2257
    %2541 = vmatpush1.msra.mxu0 %v2256
    %2542 = vmatprep.subr.mxu0 %v2260
    %2543 = vmatpush1.msra.mxu0 %v2259
    %2544 = vmatprep.subr.mxu0 0.0
    %2545 = vmatpush1.msra.mxu0 0.0
    %2546 = vmatprep.subr.mxu0 0.0
    %2547 = vmatpush1.msra.mxu0 0.0
    %2548 = vmatprep.subr.mxu0 0.0
    %2549 = vmatpush1.msra.mxu0 0.0
    %2550 = vmatprep.subr.mxu0 0.0
    %2551 = vmatpush1.msra.mxu0 0.0
    %2552 = vmatprep.subr.mxu0 0.0
    %2553 = vmatpush1.msra.mxu0 0.0
    %2554 = vmatprep.subr.mxu0 0.0
    %2555 = vmatpush1.msra.mxu0 0.0
    %2556 = vmatprep.subr.mxu0 0.0
    %2557 = vmatpush1.msra.mxu0 0.0
    %2558 = vmatprep.subr.mxu0 0.0
    %2559 = vmatpush1.msra.mxu0 0.0
    %2560 = vmatprep.subr.mxu0 0.0
    %2561 = vmatpush1.msra.mxu0 0.0
    %2562 = vmatprep.subr.mxu0 0.0
    %2563 = vmatpush1.msra.mxu0 0.0
    %2564 = vmatprep.subr.mxu0 0.0
    %2565 = vmatpush1.msra.mxu0 0.0
    %2566 = vmatprep.subr.mxu0 0.0
    %2567 = vmatpush1.msra.mxu0 0.0
    %2568 = vmatprep.subr.mxu0 0.0
    %2569 = vmatpush1.msra.mxu0 0.0
    %2570 = vmatprep.subr.mxu0 0.0
    %2571 = vmatpush1.msra.mxu0 0.0
    %2572 = vmatprep.subr.mxu0 0.0
    %2573 = vmatpush1.msra.mxu0 0.0
    %2574 = vmatprep.subr.mxu0 0.0
    %2575 = vmatpush1.msra.mxu0 0.0
    %2576 = vmatprep.mubr.f32.mxu0 0.0
    %2577 = vmatmul.mubr.f32.gmra.mrb[0].mxu0 %v2433
    %v2578 = vpop.f32.mrb[0].mxu0
    %v2579 = vadd.f32 0.0, %v2578
    %v2580 = vpop.f32.mrb[0].mxu0
    %v2581 = vadd.f32 0.0, %v2580
    %2582 = vdwg.mxu0
    %2583 = vmatprep.subr.mxu0 0.0
    %2584 = vmatpush1.msra.mxu0 %v2216
    %2585 = vmatprep.subr.mxu0 0.0
    %2586 = vmatpush1.msra.mxu0 %v2219
    %2587 = vmatprep.subr.mxu0 0.0
    %2588 = vmatpush1.msra.mxu0 %v2222
    %2589 = vmatprep.subr.mxu0 0.0
    %2590 = vmatpush1.msra.mxu0 %v2225
    %2591 = vmatprep.subr.mxu0 0.0
    %2592 = vmatpush1.msra.mxu0 %v2228
    %2593 = vmatprep.subr.mxu0 0.0
    %2594 = vmatpush1.msra.mxu0 %v2231
    %2595 = vmatprep.subr.mxu0 0.0
    %2596 = vmatpush1.msra.mxu0 %v2234
    %2597 = vmatprep.subr.mxu0 0.0
    %2598 = vmatpush1.msra.mxu0 %v2237
    %2599 = vmatprep.subr.mxu0 0.0
    %2600 = vmatpush1.msra.mxu0 %v2240
    %2601 = vmatprep.subr.mxu0 0.0
    %2602 = vmatpush1.msra.mxu0 %v2243
    %2603 = vmatprep.subr.mxu0 0.0
    %2604 = vmatpush1.msra.mxu0 %v2246
    %2605 = vmatprep.subr.mxu0 0.0
    %2606 = vmatpush1.msra.mxu0 %v2249
    %2607 = vmatprep.subr.mxu0 0.0
    %2608 = vmatpush1.msra.mxu0 %v2252
    %2609 = vmatprep.subr.mxu0 0.0
    %2610 = vmatpush1.msra.mxu0 %v2255
    %2611 = vmatprep.subr.mxu0 0.0
    %2612 = vmatpush1.msra.mxu0 %v2258
    %2613 = vmatprep.subr.mxu0 0.0
    %2614 = vmatpush1.msra.mxu0 %v2261
    %2615 = vmatprep.subr.mxu0 0.0
    %2616 = vmatpush1.msra.mxu0 0.0
    %2617 = vmatprep.subr.mxu0 0.0
    %2618 = vmatpush1.msra.mxu0 0.0
    %2619 = vmatprep.subr.mxu0 0.0
    %2620 = vmatpush1.msra.mxu0 0.0
    %2621 = vmatprep.subr.mxu0 0.0
    %2622 = vmatpush1.msra.mxu0 0.0
    %2623 = vmatprep.subr.mxu0 0.0
    %2624 = vmatpush1.msra.mxu0 0.0
    %2625 = vmatprep.subr.mxu0 0.0
    %2626 = vmatpush1.msra.mxu0 0.0
    %2627 = vmatprep.subr.mxu0 0.0
    %2628 = vmatpush1.msra.mxu0 0.0
    %2629 = vmatprep.subr.mxu0 0.0
    %2630 = vmatpush1.msra.mxu0 0.0
    %2631 = vmatprep.subr.mxu0 0.0
    %2632 = vmatpush1.msra.mxu0 0.0
    %2633 = vmatprep.subr.mxu0 0.0
    %2634 = vmatpush1.msra.mxu0 0.0
    %2635 = vmatprep.subr.mxu0 0.0
    %2636 = vmatpush1.msra.mxu0 0.0
    %2637 = vmatprep.subr.mxu0 0.0
    %2638 = vmatpush1.msra.mxu0 0.0
    %2639 = vmatprep.subr.mxu0 0.0
    %2640 = vmatpush1.msra.mxu0 0.0
    %2641 = vmatprep.subr.mxu0 0.0
    %2642 = vmatpush1.msra.mxu0 0.0
    %2643 = vmatprep.subr.mxu0 0.0
    %2644 = vmatpush1.msra.mxu0 0.0
    %2645 = vmatprep.subr.mxu0 0.0
    %2646 = vmatpush1.msra.mxu0 0.0
    %2647 = vmatprep.mubr.f32.mxu0 0.0
    %2648 = vmatmul.mubr.f32.gmra.mrb[0].mxu0 %v2433
    %v2649 = vpop.f32.mrb[0].mxu0
    %v2650 = vadd.f32 0.0, %v2649
    %v2651 = vpop.f32.mrb[0].mxu0
    %2652 = vdwg.mxu0
    %v2653 = vld [vmem:[%s784] sm:$0x3f]
    %v2656 = vcombine.low %v2579, %v2581
    %v2658 = vunpack.c.l.s4 1983009808
    %v2659 = vunpack.c.0.s8 %v2658
    %v2660 = vlaneseq
    %v2661 = vshrl.u32 %v2660, 7
    %v2662 = vsub.s32 %v2659, %v2661
    %v2663 = vrot.slane %v2656, %v2662
    %v2665 = vadd.f32 %v2653, %v2663
    %v2666 = vxor.u32 %v2665, 2147483648
    %v2667 = vmul.f32 %v2666, 1.442695
    %v2668 = vpow.pop %v2667
    %v2669 = vadd.f32 %v2668, 1.0
    %v2670 = vrcp.pop %v2669
    %v2671 = vmul.f32 1.0, %v2670
    %v2672 = vmul.f32 %v2671, %v2650
    %v2674 = vrot.slane %v2653, 4
    %v2676 = vadd.f32 %v2674, %v2672
    %v2677 = vtanh.pop %v2676
    %v2678 = vsub.f32 %v2433, %v2677
    %v2680 = vrot.slane %v2671, 2
    %v2682 = vmul.f32 %v2680, %v2678
    %v2683 = vadd.f32 %v2677, %v2682
    %2684 = vmatprep.subr.mxu0 0.0
    %2685 = vmatpush1.msra.mxu0 %v61
    %2686 = vmatprep.subr.mxu0 0.0
    %2687 = vmatpush1.msra.mxu0 %v62
    %2688 = vmatprep.subr.mxu0 0.0
    %2689 = vmatpush1.msra.mxu0 %v63
    %2690 = vmatprep.subr.mxu0 0.0
    %2691 = vmatpush1.msra.mxu0 %v64
    %2692 = vmatprep.subr.mxu0 0.0
    %2693 = vmatpush1.msra.mxu0 %v65
    %2694 = vmatprep.subr.mxu0 0.0
    %2695 = vmatpush1.msra.mxu0 %v66
    %2696 = vmatprep.subr.mxu0 0.0
    %2697 = vmatpush1.msra.mxu0 %v67
    %2698 = vmatprep.subr.mxu0 0.0
    %2699 = vmatpush1.msra.mxu0 %v68
    %2700 = vmatprep.subr.mxu0 0.0
    %2701 = vmatpush1.msra.mxu0 %v69
    %2702 = vmatprep.subr.mxu0 0.0
    %2703 = vmatpush1.msra.mxu0 %v70
    %2704 = vmatprep.subr.mxu0 0.0
    %2705 = vmatpush1.msra.mxu0 %v71
    %2706 = vmatprep.subr.mxu0 0.0
    %2707 = vmatpush1.msra.mxu0 %v72
    %2708 = vmatprep.subr.mxu0 0.0
    %2709 = vmatpush1.msra.mxu0 %v73
    %2710 = vmatprep.subr.mxu0 0.0
    %2711 = vmatpush1.msra.mxu0 %v74
    %2712 = vmatprep.subr.mxu0 0.0
    %2713 = vmatpush1.msra.mxu0 %v75
    %2714 = vmatprep.subr.mxu0 0.0
    %2715 = vmatpush1.msra.mxu0 %v76
    %2716 = vmatprep.subr.mxu0 0.0
    %2717 = vmatpush1.msra.mxu0 0.0
    %2718 = vmatprep.subr.mxu0 0.0
    %2719 = vmatpush1.msra.mxu0 0.0
    %2720 = vmatprep.subr.mxu0 0.0
    %2721 = vmatpush1.msra.mxu0 0.0
    %2722 = vmatprep.subr.mxu0 0.0
    %2723 = vmatpush1.msra.mxu0 0.0
    %2724 = vmatprep.subr.mxu0 0.0
    %2725 = vmatpush1.msra.mxu0 0.0
    %2726 = vmatprep.subr.mxu0 0.0
    %2727 = vmatpush1.msra.mxu0 0.0
    %2728 = vmatprep.subr.mxu0 0.0
    %2729 = vmatpush1.msra.mxu0 0.0
    %2730 = vmatprep.subr.mxu0 0.0
    %2731 = vmatpush1.msra.mxu0 0.0
    %2732 = vmatprep.subr.mxu0 0.0
    %2733 = vmatpush1.msra.mxu0 0.0
    %2734 = vmatprep.subr.mxu0 0.0
    %2735 = vmatpush1.msra.mxu0 0.0
    %2736 = vmatprep.subr.mxu0 0.0
    %2737 = vmatpush1.msra.mxu0 0.0
    %2738 = vmatprep.subr.mxu0 0.0
    %2739 = vmatpush1.msra.mxu0 0.0
    %2740 = vmatprep.subr.mxu0 0.0
    %2741 = vmatpush1.msra.mxu0 0.0
    %2742 = vmatprep.subr.mxu0 0.0
    %2743 = vmatpush1.msra.mxu0 0.0
    %2744 = vmatprep.subr.mxu0 0.0
    %2745 = vmatpush1.msra.mxu0 0.0
    %2746 = vmatprep.subr.mxu0 0.0
    %2747 = vmatpush1.msra.mxu0 0.0
    %2748 = vmatprep.mubr.f32.mxu0 0.0
    %2749 = vmatmul.mubr.f32.gmra.mrb[0].mxu0 %v2683
    %v2750 = vpop.f32.mrb[0].mxu0
    %v2751 = vadd.f32 %v2438, %v2750
    %v2752 = vpop.f32.mrb[0].mxu0
    %2753 = vdwg.mxu0
    %s2754 = scalar_lea.vmem %s5, 2
    %2755 = vst.msk [vmem:[%s2754] sm:$0x3] %vm2510, %v2751
    %2756 = vmatprep.subr.mxu0 %v2215
    %2757 = vmatpush1.msra.mxu0 %v2214
    %2758 = vmatprep.subr.mxu0 %v2218
    %2759 = vmatpush1.msra.mxu0 %v2217
    %2760 = vmatprep.subr.mxu0 %v2221
    %2761 = vmatpush1.msra.mxu0 %v2220
    %2762 = vmatprep.subr.mxu0 %v2224
    %2763 = vmatpush1.msra.mxu0 %v2223
    %2764 = vmatprep.subr.mxu0 %v2227
    %2765 = vmatpush1.msra.mxu0 %v2226
    %2766 = vmatprep.subr.mxu0 %v2230
    %2767 = vmatpush1.msra.mxu0 %v2229
    %2768 = vmatprep.subr.mxu0 %v2233
    %2769 = vmatpush1.msra.mxu0 %v2232
    %2770 = vmatprep.subr.mxu0 %v2236
    %2771 = vmatpush1.msra.mxu0 %v2235
    %2772 = vmatprep.subr.mxu0 %v2239
    %2773 = vmatpush1.msra.mxu0 %v2238
    %2774 = vmatprep.subr.mxu0 %v2242
    %2775 = vmatpush1.msra.mxu0 %v2241
    %2776 = vmatprep.subr.mxu0 %v2245
    %2777 = vmatpush1.msra.mxu0 %v2244
    %2778 = vmatprep.subr.mxu0 %v2248
    %2779 = vmatpush1.msra.mxu0 %v2247
    %2780 = vmatprep.subr.mxu0 %v2251
    %2781 = vmatpush1.msra.mxu0 %v2250
    %2782 = vmatprep.subr.mxu0 %v2254
    %2783 = vmatpush1.msra.mxu0 %v2253
    %2784 = vmatprep.subr.mxu0 %v2257
    %2785 = vmatpush1.msra.mxu0 %v2256
    %2786 = vmatprep.subr.mxu0 %v2260
    %2787 = vmatpush1.msra.mxu0 %v2259
    %2788 = vmatprep.subr.mxu0 0.0
    %2789 = vmatpush1.msra.mxu0 0.0
    %2790 = vmatprep.subr.mxu0 0.0
    %2791 = vmatpush1.msra.mxu0 0.0
    %2792 = vmatprep.subr.mxu0 0.0
    %2793 = vmatpush1.msra.mxu0 0.0
    %2794 = vmatprep.subr.mxu0 0.0
    %2795 = vmatpush1.msra.mxu0 0.0
    %2796 = vmatprep.subr.mxu0 0.0
    %2797 = vmatpush1.msra.mxu0 0.0
    %2798 = vmatprep.subr.mxu0 0.0
    %2799 = vmatpush1.msra.mxu0 0.0
    %2800 = vmatprep.subr.mxu0 0.0
    %2801 = vmatpush1.msra.mxu0 0.0
    %2802 = vmatprep.subr.mxu0 0.0
    %2803 = vmatpush1.msra.mxu0 0.0
    %2804 = vmatprep.subr.mxu0 0.0
    %2805 = vmatpush1.msra.mxu0 0.0
    %2806 = vmatprep.subr.mxu0 0.0
    %2807 = vmatpush1.msra.mxu0 0.0
    %2808 = vmatprep.subr.mxu0 0.0
    %2809 = vmatpush1.msra.mxu0 0.0
    %2810 = vmatprep.subr.mxu0 0.0
    %2811 = vmatpush1.msra.mxu0 0.0
    %2812 = vmatprep.subr.mxu0 0.0
    %2813 = vmatpush1.msra.mxu0 0.0
    %2814 = vmatprep.subr.mxu0 0.0
    %2815 = vmatpush1.msra.mxu0 0.0
    %2816 = vmatprep.subr.mxu0 0.0
    %2817 = vmatpush1.msra.mxu0 0.0
    %2818 = vmatprep.subr.mxu0 0.0
    %2819 = vmatpush1.msra.mxu0 0.0
    %2820 = vmatprep.mubr.f32.mxu0 0.0
    %2821 = vmatmul.mubr.f32.gmra.mrb[0].mxu0 %v2683
    %v2822 = vpop.f32.mrb[0].mxu0
    %v2823 = vadd.f32 0.0, %v2822
    %v2824 = vpop.f32.mrb[0].mxu0
    %v2825 = vadd.f32 0.0, %v2824
    %2826 = vdwg.mxu0
    %2827 = vmatprep.subr.mxu0 0.0
    %2828 = vmatpush1.msra.mxu0 %v2216
    %2829 = vmatprep.subr.mxu0 0.0
    %2830 = vmatpush1.msra.mxu0 %v2219
    %2831 = vmatprep.subr.mxu0 0.0
    %2832 = vmatpush1.msra.mxu0 %v2222
    %2833 = vmatprep.subr.mxu0 0.0
    %2834 = vmatpush1.msra.mxu0 %v2225
    %2835 = vmatprep.subr.mxu0 0.0
    %2836 = vmatpush1.msra.mxu0 %v2228
    %2837 = vmatprep.subr.mxu0 0.0
    %2838 = vmatpush1.msra.mxu0 %v2231
    %2839 = vmatprep.subr.mxu0 0.0
    %2840 = vmatpush1.msra.mxu0 %v2234
    %2841 = vmatprep.subr.mxu0 0.0
    %2842 = vmatpush1.msra.mxu0 %v2237
    %2843 = vmatprep.subr.mxu0 0.0
    %2844 = vmatpush1.msra.mxu0 %v2240
    %2845 = vmatprep.subr.mxu0 0.0
    %2846 = vmatpush1.msra.mxu0 %v2243
    %2847 = vmatprep.subr.mxu0 0.0
    %2848 = vmatpush1.msra.mxu0 %v2246
    %2849 = vmatprep.subr.mxu0 0.0
    %2850 = vmatpush1.msra.mxu0 %v2249
    %2851 = vmatprep.subr.mxu0 0.0
    %2852 = vmatpush1.msra.mxu0 %v2252
    %2853 = vmatprep.subr.mxu0 0.0
    %2854 = vmatpush1.msra.mxu0 %v2255
    %2855 = vmatprep.subr.mxu0 0.0
    %2856 = vmatpush1.msra.mxu0 %v2258
    %2857 = vmatprep.subr.mxu0 0.0
    %2858 = vmatpush1.msra.mxu0 %v2261
    %2859 = vmatprep.subr.mxu0 0.0
    %2860 = vmatpush1.msra.mxu0 0.0
    %2861 = vmatprep.subr.mxu0 0.0
    %2862 = vmatpush1.msra.mxu0 0.0
    %2863 = vmatprep.subr.mxu0 0.0
    %2864 = vmatpush1.msra.mxu0 0.0
    %2865 = vmatprep.subr.mxu0 0.0
    %2866 = vmatpush1.msra.mxu0 0.0
    %2867 = vmatprep.subr.mxu0 0.0
    %2868 = vmatpush1.msra.mxu0 0.0
    %2869 = vmatprep.subr.mxu0 0.0
    %2870 = vmatpush1.msra.mxu0 0.0
    %2871 = vmatprep.subr.mxu0 0.0
    %2872 = vmatpush1.msra.mxu0 0.0
    %2873 = vmatprep.subr.mxu0 0.0
    %2874 = vmatpush1.msra.mxu0 0.0
    %2875 = vmatprep.subr.mxu0 0.0
    %2876 = vmatpush1.msra.mxu0 0.0
    %2877 = vmatprep.subr.mxu0 0.0
    %2878 = vmatpush1.msra.mxu0 0.0
    %2879 = vmatprep.subr.mxu0 0.0
    %2880 = vmatpush1.msra.mxu0 0.0
    %2881 = vmatprep.subr.mxu0 0.0
    %2882 = vmatpush1.msra.mxu0 0.0
    %2883 = vmatprep.subr.mxu0 0.0
    %2884 = vmatpush1.msra.mxu0 0.0
    %2885 = vmatprep.subr.mxu0 0.0
    %2886 = vmatpush1.msra.mxu0 0.0
    %2887 = vmatprep.subr.mxu0 0.0
    %2888 = vmatpush1.msra.mxu0 0.0
    %2889 = vmatprep.subr.mxu0 0.0
    %2890 = vmatpush1.msra.mxu0 0.0
    %2891 = vmatprep.mubr.f32.mxu0 0.0
    %2892 = vmatmul.mubr.f32.gmra.mrb[0].mxu0 %v2683
    %v2893 = vpop.f32.mrb[0].mxu0
    %v2894 = vadd.f32 0.0, %v2893
    %v2895 = vpop.f32.mrb[0].mxu0
    %2896 = vdwg.mxu0
    %v2897 = vld [vmem:[%s959] sm:$0x3f]
    %v2900 = vcombine.low %v2823, %v2825
    %v2902 = vunpack.c.l.s4 1983009808
    %v2903 = vunpack.c.0.s8 %v2902
    %v2904 = vlaneseq
    %v2905 = vshrl.u32 %v2904, 7
    %v2906 = vsub.s32 %v2903, %v2905
    %v2907 = vrot.slane %v2900, %v2906
    %v2909 = vadd.f32 %v2897, %v2907
    %v2910 = vxor.u32 %v2909, 2147483648
    %v2911 = vmul.f32 %v2910, 1.442695
    %v2912 = vpow.pop %v2911
    %v2913 = vadd.f32 %v2912, 1.0
    %v2914 = vrcp.pop %v2913
    %v2915 = vmul.f32 1.0, %v2914
    %v2916 = vmul.f32 %v2915, %v2894
    %v2918 = vrot.slane %v2897, 4
    %v2920 = vadd.f32 %v2918, %v2916
    %v2921 = vtanh.pop %v2920
    %v2922 = vsub.f32 %v2683, %v2921
    %v2924 = vrot.slane %v2915, 2
    %v2926 = vmul.f32 %v2924, %v2922
    %v2927 = vadd.f32 %v2921, %v2926
    %2928 = vmatprep.subr.mxu0 0.0
    %2929 = vmatpush1.msra.mxu0 %v61
    %2930 = vmatprep.subr.mxu0 0.0
    %2931 = vmatpush1.msra.mxu0 %v62
    %2932 = vmatprep.subr.mxu0 0.0
    %2933 = vmatpush1.msra.mxu0 %v63
    %2934 = vmatprep.subr.mxu0 0.0
    %2935 = vmatpush1.msra.mxu0 %v64
    %2936 = vmatprep.subr.mxu0 0.0
    %2937 = vmatpush1.msra.mxu0 %v65
    %2938 = vmatprep.subr.mxu0 0.0
    %2939 = vmatpush1.msra.mxu0 %v66
    %2940 = vmatprep.subr.mxu0 0.0
    %2941 = vmatpush1.msra.mxu0 %v67
    %2942 = vmatprep.subr.mxu0 0.0
    %2943 = vmatpush1.msra.mxu0 %v68
    %2944 = vmatprep.subr.mxu0 0.0
    %2945 = vmatpush1.msra.mxu0 %v69
    %2946 = vmatprep.subr.mxu0 0.0
    %2947 = vmatpush1.msra.mxu0 %v70
    %2948 = vmatprep.subr.mxu0 0.0
    %2949 = vmatpush1.msra.mxu0 %v71
    %2950 = vmatprep.subr.mxu0 0.0
    %2951 = vmatpush1.msra.mxu0 %v72
    %2952 = vmatprep.subr.mxu0 0.0
    %2953 = vmatpush1.msra.mxu0 %v73
    %2954 = vmatprep.subr.mxu0 0.0
    %2955 = vmatpush1.msra.mxu0 %v74
    %2956 = vmatprep.subr.mxu0 0.0
    %2957 = vmatpush1.msra.mxu0 %v75
    %2958 = vmatprep.subr.mxu0 0.0
    %2959 = vmatpush1.msra.mxu0 %v76
    %2960 = vmatprep.subr.mxu0 0.0
    %2961 = vmatpush1.msra.mxu0 0.0
    %2962 = vmatprep.subr.mxu0 0.0
    %2963 = vmatpush1.msra.mxu0 0.0
    %2964 = vmatprep.subr.mxu0 0.0
    %2965 = vmatpush1.msra.mxu0 0.0
    %2966 = vmatprep.subr.mxu0 0.0
    %2967 = vmatpush1.msra.mxu0 0.0
    %2968 = vmatprep.subr.mxu0 0.0
    %2969 = vmatpush1.msra.mxu0 0.0
    %2970 = vmatprep.subr.mxu0 0.0
    %2971 = vmatpush1.msra.mxu0 0.0
    %2972 = vmatprep.subr.mxu0 0.0
    %2973 = vmatpush1.msra.mxu0 0.0
    %2974 = vmatprep.subr.mxu0 0.0
    %2975 = vmatpush1.msra.mxu0 0.0
    %2976 = vmatprep.subr.mxu0 0.0
    %2977 = vmatpush1.msra.mxu0 0.0
    %2978 = vmatprep.subr.mxu0 0.0
    %2979 = vmatpush1.msra.mxu0 0.0
    %2980 = vmatprep.subr.mxu0 0.0
    %2981 = vmatpush1.msra.mxu0 0.0
    %2982 = vmatprep.subr.mxu0 0.0
    %2983 = vmatpush1.msra.mxu0 0.0
    %2984 = vmatprep.subr.mxu0 0.0
    %2985 = vmatpush1.msra.mxu0 0.0
    %2986 = vmatprep.subr.mxu0 0.0
    %2987 = vmatpush1.msra.mxu0 0.0
    %2988 = vmatprep.subr.mxu0 0.0
    %2989 = vmatpush1.msra.mxu0 0.0
    %2990 = vmatprep.subr.mxu0 0.0
    %2991 = vmatpush1.msra.mxu0 0.0
    %2992 = vmatprep.mubr.f32.mxu0 0.0
    %2993 = vmatmul.mubr.f32.gmra.mrb[0].mxu0 %v2927
    %v2994 = vpop.f32.mrb[0].mxu0
    %v2995 = vadd.f32 %v2438, %v2994
    %v2996 = vpop.f32.mrb[0].mxu0
    %2997 = vdwg.mxu0
    %s2998 = scalar_lea.vmem %s5, 4
    %2999 = vst.msk [vmem:[%s2998] sm:$0x3] %vm2510, %v2995
    %3000 = vmatprep.subr.mxu0 %v2215
    %3001 = vmatpush1.msra.mxu0 %v2214
    %3002 = vmatprep.subr.mxu0 %v2218
    %3003 = vmatpush1.msra.mxu0 %v2217
    %3004 = vmatprep.subr.mxu0 %v2221
    %3005 = vmatpush1.msra.mxu0 %v2220
    %3006 = vmatprep.subr.mxu0 %v2224
    %3007 = vmatpush1.msra.mxu0 %v2223
    %3008 = vmatprep.subr.mxu0 %v2227
    %3009 = vmatpush1.msra.mxu0 %v2226
    %3010 = vmatprep.subr.mxu0 %v2230
    %3011 = vmatpush1.msra.mxu0 %v2229
    %3012 = vmatprep.subr.mxu0 %v2233
    %3013 = vmatpush1.msra.mxu0 %v2232
    %3014 = vmatprep.subr.mxu0 %v2236
    %3015 = vmatpush1.msra.mxu0 %v2235
    %3016 = vmatprep.subr.mxu0 %v2239
    %3017 = vmatpush1.msra.mxu0 %v2238
    %3018 = vmatprep.subr.mxu0 %v2242
    %3019 = vmatpush1.msra.mxu0 %v2241
    %3020 = vmatprep.subr.mxu0 %v2245
    %3021 = vmatpush1.msra.mxu0 %v2244
    %3022 = vmatprep.subr.mxu0 %v2248
    %3023 = vmatpush1.msra.mxu0 %v2247
    %3024 = vmatprep.subr.mxu0 %v2251
    %3025 = vmatpush1.msra.mxu0 %v2250
    %3026 = vmatprep.subr.mxu0 %v2254
    %3027 = vmatpush1.msra.mxu0 %v2253
    %3028 = vmatprep.subr.mxu0 %v2257
    %3029 = vmatpush1.msra.mxu0 %v2256
    %3030 = vmatprep.subr.mxu0 %v2260
    %3031 = vmatpush1.msra.mxu0 %v2259
    %3032 = vmatprep.subr.mxu0 0.0
    %3033 = vmatpush1.msra.mxu0 0.0
    %3034 = vmatprep.subr.mxu0 0.0
    %3035 = vmatpush1.msra.mxu0 0.0
    %3036 = vmatprep.subr.mxu0 0.0
    %3037 = vmatpush1.msra.mxu0 0.0
    %3038 = vmatprep.subr.mxu0 0.0
    %3039 = vmatpush1.msra.mxu0 0.0
    %3040 = vmatprep.subr.mxu0 0.0
    %3041 = vmatpush1.msra.mxu0 0.0
    %3042 = vmatprep.subr.mxu0 0.0
    %3043 = vmatpush1.msra.mxu0 0.0
    %3044 = vmatprep.subr.mxu0 0.0
    %3045 = vmatpush1.msra.mxu0 0.0
    %3046 = vmatprep.subr.mxu0 0.0
    %3047 = vmatpush1.msra.mxu0 0.0
    %3048 = vmatprep.subr.mxu0 0.0
    %3049 = vmatpush1.msra.mxu0 0.0
    %3050 = vmatprep.subr.mxu0 0.0
    %3051 = vmatpush1.msra.mxu0 0.0
    %3052 = vmatprep.subr.mxu0 0.0
    %3053 = vmatpush1.msra.mxu0 0.0
    %3054 = vmatprep.subr.mxu0 0.0
    %3055 = vmatpush1.msra.mxu0 0.0
    %3056 = vmatprep.subr.mxu0 0.0
    %3057 = vmatpush1.msra.mxu0 0.0
    %3058 = vmatprep.subr.mxu0 0.0
    %3059 = vmatpush1.msra.mxu0 0.0
    %3060 = vmatprep.subr.mxu0 0.0
    %3061 = vmatpush1.msra.mxu0 0.0
    %3062 = vmatprep.subr.mxu0 0.0
    %3063 = vmatpush1.msra.mxu0 0.0
    %3064 = vmatprep.mubr.f32.mxu0 0.0
    %3065 = vmatmul.mubr.f32.gmra.mrb[0].mxu0 %v2927
    %v3066 = vpop.f32.mrb[0].mxu0
    %v3067 = vadd.f32 0.0, %v3066
    %v3068 = vpop.f32.mrb[0].mxu0
    %v3069 = vadd.f32 0.0, %v3068
    %3070 = vdwg.mxu0
    %3071 = vmatprep.subr.mxu0 0.0
    %3072 = vmatpush1.msra.mxu0 %v2216
    %3073 = vmatprep.subr.mxu0 0.0
    %3074 = vmatpush1.msra.mxu0 %v2219
    %3075 = vmatprep.subr.mxu0 0.0
    %3076 = vmatpush1.msra.mxu0 %v2222
    %3077 = vmatprep.subr.mxu0 0.0
    %3078 = vmatpush1.msra.mxu0 %v2225
    %3079 = vmatprep.subr.mxu0 0.0
    %3080 = vmatpush1.msra.mxu0 %v2228
    %3081 = vmatprep.subr.mxu0 0.0
    %3082 = vmatpush1.msra.mxu0 %v2231
    %3083 = vmatprep.subr.mxu0 0.0
    %3084 = vmatpush1.msra.mxu0 %v2234
    %3085 = vmatprep.subr.mxu0 0.0
    %3086 = vmatpush1.msra.mxu0 %v2237
    %3087 = vmatprep.subr.mxu0 0.0
    %3088 = vmatpush1.msra.mxu0 %v2240
    %3089 = vmatprep.subr.mxu0 0.0
    %3090 = vmatpush1.msra.mxu0 %v2243
    %3091 = vmatprep.subr.mxu0 0.0
    %3092 = vmatpush1.msra.mxu0 %v2246
    %3093 = vmatprep.subr.mxu0 0.0
    %3094 = vmatpush1.msra.mxu0 %v2249
    %3095 = vmatprep.subr.mxu0 0.0
    %3096 = vmatpush1.msra.mxu0 %v2252
    %3097 = vmatprep.subr.mxu0 0.0
    %3098 = vmatpush1.msra.mxu0 %v2255
    %3099 = vmatprep.subr.mxu0 0.0
    %3100 = vmatpush1.msra.mxu0 %v2258
    %3101 = vmatprep.subr.mxu0 0.0
    %3102 = vmatpush1.msra.mxu0 %v2261
    %3103 = vmatprep.subr.mxu0 0.0
    %3104 = vmatpush1.msra.mxu0 0.0
    %3105 = vmatprep.subr.mxu0 0.0
    %3106 = vmatpush1.msra.mxu0 0.0
    %3107 = vmatprep.subr.mxu0 0.0
    %3108 = vmatpush1.msra.mxu0 0.0
    %3109 = vmatprep.subr.mxu0 0.0
    %3110 = vmatpush1.msra.mxu0 0.0
    %3111 = vmatprep.subr.mxu0 0.0
    %3112 = vmatpush1.msra.mxu0 0.0
    %3113 = vmatprep.subr.mxu0 0.0
    %3114 = vmatpush1.msra.mxu0 0.0
    %3115 = vmatprep.subr.mxu0 0.0
    %3116 = vmatpush1.msra.mxu0 0.0
    %3117 = vmatprep.subr.mxu0 0.0
    %3118 = vmatpush1.msra.mxu0 0.0
    %3119 = vmatprep.subr.mxu0 0.0
    %3120 = vmatpush1.msra.mxu0 0.0
    %3121 = vmatprep.subr.mxu0 0.0
    %3122 = vmatpush1.msra.mxu0 0.0
    %3123 = vmatprep.subr.mxu0 0.0
    %3124 = vmatpush1.msra.mxu0 0.0
    %3125 = vmatprep.subr.mxu0 0.0
    %3126 = vmatpush1.msra.mxu0 0.0
    %3127 = vmatprep.subr.mxu0 0.0
    %3128 = vmatpush1.msra.mxu0 0.0
    %3129 = vmatprep.subr.mxu0 0.0
    %3130 = vmatpush1.msra.mxu0 0.0
    %3131 = vmatprep.subr.mxu0 0.0
    %3132 = vmatpush1.msra.mxu0 0.0
    %3133 = vmatprep.subr.mxu0 0.0
    %3134 = vmatpush1.msra.mxu0 0.0
    %3135 = vmatprep.mubr.f32.mxu0 0.0
    %3136 = vmatmul.mubr.f32.gmra.mrb[0].mxu0 %v2927
    %v3137 = vpop.f32.mrb[0].mxu0
    %v3138 = vadd.f32 0.0, %v3137
    %v3139 = vpop.f32.mrb[0].mxu0
    %3140 = vdwg.mxu0
    %v3141 = vld [vmem:[%s1134] sm:$0x3f]
    %v3144 = vcombine.low %v3067, %v3069
    %v3146 = vunpack.c.l.s4 1983009808
    %v3147 = vunpack.c.0.s8 %v3146
    %v3148 = vlaneseq
    %v3149 = vshrl.u32 %v3148, 7
    %v3150 = vsub.s32 %v3147, %v3149
    %v3151 = vrot.slane %v3144, %v3150
    %v3153 = vadd.f32 %v3141, %v3151
    %v3154 = vxor.u32 %v3153, 2147483648
    %v3155 = vmul.f32 %v3154, 1.442695
    %v3156 = vpow.pop %v3155
    %v3157 = vadd.f32 %v3156, 1.0
    %v3158 = vrcp.pop %v3157
    %v3159 = vmul.f32 1.0, %v3158
    %v3160 = vmul.f32 %v3159, %v3138
    %v3162 = vrot.slane %v3141, 4
    %v3164 = vadd.f32 %v3162, %v3160
    %v3165 = vtanh.pop %v3164
    %v3166 = vsub.f32 %v2927, %v3165
    %v3168 = vrot.slane %v3159, 2
    %v3170 = vmul.f32 %v3168, %v3166
    %v3171 = vadd.f32 %v3165, %v3170
    %3172 = vmatprep.subr.mxu0 0.0
    %3173 = vmatpush1.msra.mxu0 %v61
    %3174 = vmatprep.subr.mxu0 0.0
    %3175 = vmatpush1.msra.mxu0 %v62
    %3176 = vmatprep.subr.mxu0 0.0
    %3177 = vmatpush1.msra.mxu0 %v63
    %3178 = vmatprep.subr.mxu0 0.0
    %3179 = vmatpush1.msra.mxu0 %v64
    %3180 = vmatprep.subr.mxu0 0.0
    %3181 = vmatpush1.msra.mxu0 %v65
    %3182 = vmatprep.subr.mxu0 0.0
    %3183 = vmatpush1.msra.mxu0 %v66
    %3184 = vmatprep.subr.mxu0 0.0
    %3185 = vmatpush1.msra.mxu0 %v67
    %3186 = vmatprep.subr.mxu0 0.0
    %3187 = vmatpush1.msra.mxu0 %v68
    %3188 = vmatprep.subr.mxu0 0.0
    %3189 = vmatpush1.msra.mxu0 %v69
    %3190 = vmatprep.subr.mxu0 0.0
    %3191 = vmatpush1.msra.mxu0 %v70
    %3192 = vmatprep.subr.mxu0 0.0
    %3193 = vmatpush1.msra.mxu0 %v71
    %3194 = vmatprep.subr.mxu0 0.0
    %3195 = vmatpush1.msra.mxu0 %v72
    %3196 = vmatprep.subr.mxu0 0.0
    %3197 = vmatpush1.msra.mxu0 %v73
    %3198 = vmatprep.subr.mxu0 0.0
    %3199 = vmatpush1.msra.mxu0 %v74
    %3200 = vmatprep.subr.mxu0 0.0
    %3201 = vmatpush1.msra.mxu0 %v75
    %3202 = vmatprep.subr.mxu0 0.0
    %3203 = vmatpush1.msra.mxu0 %v76
    %3204 = vmatprep.subr.mxu0 0.0
    %3205 = vmatpush1.msra.mxu0 0.0
    %3206 = vmatprep.subr.mxu0 0.0
    %3207 = vmatpush1.msra.mxu0 0.0
    %3208 = vmatprep.subr.mxu0 0.0
    %3209 = vmatpush1.msra.mxu0 0.0
    %3210 = vmatprep.subr.mxu0 0.0
    %3211 = vmatpush1.msra.mxu0 0.0
    %3212 = vmatprep.subr.mxu0 0.0
    %3213 = vmatpush1.msra.mxu0 0.0
    %3214 = vmatprep.subr.mxu0 0.0
    %3215 = vmatpush1.msra.mxu0 0.0
    %3216 = vmatprep.subr.mxu0 0.0
    %3217 = vmatpush1.msra.mxu0 0.0
    %3218 = vmatprep.subr.mxu0 0.0
    %3219 = vmatpush1.msra.mxu0 0.0
    %3220 = vmatprep.subr.mxu0 0.0
    %3221 = vmatpush1.msra.mxu0 0.0
    %3222 = vmatprep.subr.mxu0 0.0
    %3223 = vmatpush1.msra.mxu0 0.0
    %3224 = vmatprep.subr.mxu0 0.0
    %3225 = vmatpush1.msra.mxu0 0.0
    %3226 = vmatprep.subr.mxu0 0.0
    %3227 = vmatpush1.msra.mxu0 0.0
    %3228 = vmatprep.subr.mxu0 0.0
    %3229 = vmatpush1.msra.mxu0 0.0
    %3230 = vmatprep.subr.mxu0 0.0
    %3231 = vmatpush1.msra.mxu0 0.0
    %3232 = vmatprep.subr.mxu0 0.0
    %3233 = vmatpush1.msra.mxu0 0.0
    %3234 = vmatprep.subr.mxu0 0.0
    %3235 = vmatpush1.msra.mxu0 0.0
    %3236 = vmatprep.mubr.f32.mxu0 0.0
    %3237 = vmatmul.mubr.f32.gmra.mrb[0].mxu0 %v3171
    %v3238 = vpop.f32.mrb[0].mxu0
    %v3239 = vadd.f32 %v2438, %v3238
    %v3240 = vpop.f32.mrb[0].mxu0
    %3241 = vdwg.mxu0
    %s3242 = scalar_lea.vmem %s5, 6
    %3243 = vst.msk [vmem:[%s3242] sm:$0x3] %vm2510, %v3239
    %3244 = vmatprep.subr.mxu0 %v2215
    %3245 = vmatpush1.msra.mxu0 %v2214
    %3246 = vmatprep.subr.mxu0 %v2218
    %3247 = vmatpush1.msra.mxu0 %v2217
    %3248 = vmatprep.subr.mxu0 %v2221
    %3249 = vmatpush1.msra.mxu0 %v2220
    %3250 = vmatprep.subr.mxu0 %v2224
    %3251 = vmatpush1.msra.mxu0 %v2223
    %3252 = vmatprep.subr.mxu0 %v2227
    %3253 = vmatpush1.msra.mxu0 %v2226
    %3254 = vmatprep.subr.mxu0 %v2230
    %3255 = vmatpush1.msra.mxu0 %v2229
    %3256 = vmatprep.subr.mxu0 %v2233
    %3257 = vmatpush1.msra.mxu0 %v2232
    %3258 = vmatprep.subr.mxu0 %v2236
    %3259 = vmatpush1.msra.mxu0 %v2235
    %3260 = vmatprep.subr.mxu0 %v2239
    %3261 = vmatpush1.msra.mxu0 %v2238
    %3262 = vmatprep.subr.mxu0 %v2242
    %3263 = vmatpush1.msra.mxu0 %v2241
    %3264 = vmatprep.subr.mxu0 %v2245
    %3265 = vmatpush1.msra.mxu0 %v2244
    %3266 = vmatprep.subr.mxu0 %v2248
    %3267 = vmatpush1.msra.mxu0 %v2247
    %3268 = vmatprep.subr.mxu0 %v2251
    %3269 = vmatpush1.msra.mxu0 %v2250
    %3270 = vmatprep.subr.mxu0 %v2254
    %3271 = vmatpush1.msra.mxu0 %v2253
    %3272 = vmatprep.subr.mxu0 %v2257
    %3273 = vmatpush1.msra.mxu0 %v2256
    %3274 = vmatprep.subr.mxu0 %v2260
    %3275 = vmatpush1.msra.mxu0 %v2259
    %3276 = vmatprep.subr.mxu0 0.0
    %3277 = vmatpush1.msra.mxu0 0.0
    %3278 = vmatprep.subr.mxu0 0.0
    %3279 = vmatpush1.msra.mxu0 0.0
    %3280 = vmatprep.subr.mxu0 0.0
    %3281 = vmatpush1.msra.mxu0 0.0
    %3282 = vmatprep.subr.mxu0 0.0
    %3283 = vmatpush1.msra.mxu0 0.0
    %3284 = vmatprep.subr.mxu0 0.0
    %3285 = vmatpush1.msra.mxu0 0.0
    %3286 = vmatprep.subr.mxu0 0.0
    %3287 = vmatpush1.msra.mxu0 0.0
    %3288 = vmatprep.subr.mxu0 0.0
    %3289 = vmatpush1.msra.mxu0 0.0
    %3290 = vmatprep.subr.mxu0 0.0
    %3291 = vmatpush1.msra.mxu0 0.0
    %3292 = vmatprep.subr.mxu0 0.0
    %3293 = vmatpush1.msra.mxu0 0.0
    %3294 = vmatprep.subr.mxu0 0.0
    %3295 = vmatpush1.msra.mxu0 0.0
    %3296 = vmatprep.subr.mxu0 0.0
    %3297 = vmatpush1.msra.mxu0 0.0
    %3298 = vmatprep.subr.mxu0 0.0
    %3299 = vmatpush1.msra.mxu0 0.0
    %3300 = vmatprep.subr.mxu0 0.0
    %3301 = vmatpush1.msra.mxu0 0.0
    %3302 = vmatprep.subr.mxu0 0.0
    %3303 = vmatpush1.msra.mxu0 0.0
    %3304 = vmatprep.subr.mxu0 0.0
    %3305 = vmatpush1.msra.mxu0 0.0
    %3306 = vmatprep.subr.mxu0 0.0
    %3307 = vmatpush1.msra.mxu0 0.0
    %3308 = vmatprep.mubr.f32.mxu0 0.0
    %3309 = vmatmul.mubr.f32.gmra.mrb[0].mxu0 %v3171
    %v3310 = vpop.f32.mrb[0].mxu0
    %v3311 = vadd.f32 0.0, %v3310
    %v3312 = vpop.f32.mrb[0].mxu0
    %v3313 = vadd.f32 0.0, %v3312
    %3314 = vdwg.mxu0
    %3315 = vmatprep.subr.mxu0 0.0
    %3316 = vmatpush1.msra.mxu0 %v2216
    %3317 = vmatprep.subr.mxu0 0.0
    %3318 = vmatpush1.msra.mxu0 %v2219
    %3319 = vmatprep.subr.mxu0 0.0
    %3320 = vmatpush1.msra.mxu0 %v2222
    %3321 = vmatprep.subr.mxu0 0.0
    %3322 = vmatpush1.msra.mxu0 %v2225
    %3323 = vmatprep.subr.mxu0 0.0
    %3324 = vmatpush1.msra.mxu0 %v2228
    %3325 = vmatprep.subr.mxu0 0.0
    %3326 = vmatpush1.msra.mxu0 %v2231
    %3327 = vmatprep.subr.mxu0 0.0
    %3328 = vmatpush1.msra.mxu0 %v2234
    %3329 = vmatprep.subr.mxu0 0.0
    %3330 = vmatpush1.msra.mxu0 %v2237
    %3331 = vmatprep.subr.mxu0 0.0
    %3332 = vmatpush1.msra.mxu0 %v2240
    %3333 = vmatprep.subr.mxu0 0.0
    %3334 = vmatpush1.msra.mxu0 %v2243
    %3335 = vmatprep.subr.mxu0 0.0
    %3336 = vmatpush1.msra.mxu0 %v2246
    %3337 = vmatprep.subr.mxu0 0.0
    %3338 = vmatpush1.msra.mxu0 %v2249
    %3339 = vmatprep.subr.mxu0 0.0
    %3340 = vmatpush1.msra.mxu0 %v2252
    %3341 = vmatprep.subr.mxu0 0.0
    %3342 = vmatpush1.msra.mxu0 %v2255
    %3343 = vmatprep.subr.mxu0 0.0
    %3344 = vmatpush1.msra.mxu0 %v2258
    %3345 = vmatprep.subr.mxu0 0.0
    %3346 = vmatpush1.msra.mxu0 %v2261
    %3347 = vmatprep.subr.mxu0 0.0
    %3348 = vmatpush1.msra.mxu0 0.0
    %3349 = vmatprep.subr.mxu0 0.0
    %3350 = vmatpush1.msra.mxu0 0.0
    %3351 = vmatprep.subr.mxu0 0.0
    %3352 = vmatpush1.msra.mxu0 0.0
    %3353 = vmatprep.subr.mxu0 0.0
    %3354 = vmatpush1.msra.mxu0 0.0
    %3355 = vmatprep.subr.mxu0 0.0
    %3356 = vmatpush1.msra.mxu0 0.0
    %3357 = vmatprep.subr.mxu0 0.0
    %3358 = vmatpush1.msra.mxu0 0.0
    %3359 = vmatprep.subr.mxu0 0.0
    %3360 = vmatpush1.msra.mxu0 0.0
    %3361 = vmatprep.subr.mxu0 0.0
    %3362 = vmatpush1.msra.mxu0 0.0
    %3363 = vmatprep.subr.mxu0 0.0
    %3364 = vmatpush1.msra.mxu0 0.0
    %3365 = vmatprep.subr.mxu0 0.0
    %3366 = vmatpush1.msra.mxu0 0.0
    %3367 = vmatprep.subr.mxu0 0.0
    %3368 = vmatpush1.msra.mxu0 0.0
    %3369 = vmatprep.subr.mxu0 0.0
    %3370 = vmatpush1.msra.mxu0 0.0
    %3371 = vmatprep.subr.mxu0 0.0
    %3372 = vmatpush1.msra.mxu0 0.0
    %3373 = vmatprep.subr.mxu0 0.0
    %3374 = vmatpush1.msra.mxu0 0.0
    %3375 = vmatprep.subr.mxu0 0.0
    %3376 = vmatpush1.msra.mxu0 0.0
    %3377 = vmatprep.subr.mxu0 0.0
    %3378 = vmatpush1.msra.mxu0 0.0
    %3379 = vmatprep.mubr.f32.mxu0 0.0
    %3380 = vmatmul.mubr.f32.gmra.mrb[0].mxu0 %v3171
    %v3381 = vpop.f32.mrb[0].mxu0
    %v3382 = vadd.f32 0.0, %v3381
    %v3383 = vpop.f32.mrb[0].mxu0
    %3384 = vdwg.mxu0
    %v3385 = vld [vmem:[%s1309] sm:$0x3f]
    %v3388 = vcombine.low %v3311, %v3313
    %v3390 = vunpack.c.l.s4 1983009808
    %v3391 = vunpack.c.0.s8 %v3390
    %v3392 = vlaneseq
    %v3393 = vshrl.u32 %v3392, 7
    %v3394 = vsub.s32 %v3391, %v3393
    %v3395 = vrot.slane %v3388, %v3394
    %v3397 = vadd.f32 %v3385, %v3395
    %v3398 = vxor.u32 %v3397, 2147483648
    %v3399 = vmul.f32 %v3398, 1.442695
    %v3400 = vpow.pop %v3399
    %v3401 = vadd.f32 %v3400, 1.0
    %v3402 = vrcp.pop %v3401
    %v3403 = vmul.f32 1.0, %v3402
    %v3404 = vmul.f32 %v3403, %v3382
    %v3406 = vrot.slane %v3385, 4
    %v3408 = vadd.f32 %v3406, %v3404
    %v3409 = vtanh.pop %v3408
    %v3410 = vsub.f32 %v3171, %v3409
    %v3412 = vrot.slane %v3403, 2
    %v3414 = vmul.f32 %v3412, %v3410
    %v3415 = vadd.f32 %v3409, %v3414
    %3416 = vmatprep.subr.mxu0 0.0
    %3417 = vmatpush1.msra.mxu0 %v61
    %3418 = vmatprep.subr.mxu0 0.0
    %3419 = vmatpush1.msra.mxu0 %v62
    %3420 = vmatprep.subr.mxu0 0.0
    %3421 = vmatpush1.msra.mxu0 %v63
    %3422 = vmatprep.subr.mxu0 0.0
    %3423 = vmatpush1.msra.mxu0 %v64
    %3424 = vmatprep.subr.mxu0 0.0
    %3425 = vmatpush1.msra.mxu0 %v65
    %3426 = vmatprep.subr.mxu0 0.0
    %3427 = vmatpush1.msra.mxu0 %v66
    %3428 = vmatprep.subr.mxu0 0.0
    %3429 = vmatpush1.msra.mxu0 %v67
    %3430 = vmatprep.subr.mxu0 0.0
    %3431 = vmatpush1.msra.mxu0 %v68
    %3432 = vmatprep.subr.mxu0 0.0
    %3433 = vmatpush1.msra.mxu0 %v69
    %3434 = vmatprep.subr.mxu0 0.0
    %3435 = vmatpush1.msra.mxu0 %v70
    %3436 = vmatprep.subr.mxu0 0.0
    %3437 = vmatpush1.msra.mxu0 %v71
    %3438 = vmatprep.subr.mxu0 0.0
    %3439 = vmatpush1.msra.mxu0 %v72
    %3440 = vmatprep.subr.mxu0 0.0
    %3441 = vmatpush1.msra.mxu0 %v73
    %3442 = vmatprep.subr.mxu0 0.0
    %3443 = vmatpush1.msra.mxu0 %v74
    %3444 = vmatprep.subr.mxu0 0.0
    %3445 = vmatpush1.msra.mxu0 %v75
    %3446 = vmatprep.subr.mxu0 0.0
    %3447 = vmatpush1.msra.mxu0 %v76
    %3448 = vmatprep.subr.mxu0 0.0
    %3449 = vmatpush1.msra.mxu0 0.0
    %3450 = vmatprep.subr.mxu0 0.0
    %3451 = vmatpush1.msra.mxu0 0.0
    %3452 = vmatprep.subr.mxu0 0.0
    %3453 = vmatpush1.msra.mxu0 0.0
    %3454 = vmatprep.subr.mxu0 0.0
    %3455 = vmatpush1.msra.mxu0 0.0
    %3456 = vmatprep.subr.mxu0 0.0
    %3457 = vmatpush1.msra.mxu0 0.0
    %3458 = vmatprep.subr.mxu0 0.0
    %3459 = vmatpush1.msra.mxu0 0.0
    %3460 = vmatprep.subr.mxu0 0.0
    %3461 = vmatpush1.msra.mxu0 0.0
    %3462 = vmatprep.subr.mxu0 0.0
    %3463 = vmatpush1.msra.mxu0 0.0
    %3464 = vmatprep.subr.mxu0 0.0
    %3465 = vmatpush1.msra.mxu0 0.0
    %3466 = vmatprep.subr.mxu0 0.0
    %3467 = vmatpush1.msra.mxu0 0.0
    %3468 = vmatprep.subr.mxu0 0.0
    %3469 = vmatpush1.msra.mxu0 0.0
    %3470 = vmatprep.subr.mxu0 0.0
    %3471 = vmatpush1.msra.mxu0 0.0
    %3472 = vmatprep.subr.mxu0 0.0
    %3473 = vmatpush1.msra.mxu0 0.0
    %3474 = vmatprep.subr.mxu0 0.0
    %3475 = vmatpush1.msra.mxu0 0.0
    %3476 = vmatprep.subr.mxu0 0.0
    %3477 = vmatpush1.msra.mxu0 0.0
    %3478 = vmatprep.subr.mxu0 0.0
    %3479 = vmatpush1.msra.mxu0 0.0
    %3480 = vmatprep.mubr.f32.mxu0 0.0
    %3481 = vmatmul.mubr.f32.gmra.mrb[0].mxu0 %v3415
    %v3482 = vpop.f32.mrb[0].mxu0
    %v3483 = vadd.f32 %v2438, %v3482
    %v3484 = vpop.f32.mrb[0].mxu0
    %3485 = vdwg.mxu0
    %s3486 = scalar_lea.vmem %s5, 8
    %3487 = vst.msk [vmem:[%s3486] sm:$0x3] %vm2510, %v3483
    %3488 = vmatprep.subr.mxu0 %v2215
    %3489 = vmatpush1.msra.mxu0 %v2214
    %3490 = vmatprep.subr.mxu0 %v2218
    %3491 = vmatpush1.msra.mxu0 %v2217
    %3492 = vmatprep.subr.mxu0 %v2221
    %3493 = vmatpush1.msra.mxu0 %v2220
    %3494 = vmatprep.subr.mxu0 %v2224
    %3495 = vmatpush1.msra.mxu0 %v2223
    %3496 = vmatprep.subr.mxu0 %v2227
    %3497 = vmatpush1.msra.mxu0 %v2226
    %3498 = vmatprep.subr.mxu0 %v2230
    %3499 = vmatpush1.msra.mxu0 %v2229
    %3500 = vmatprep.subr.mxu0 %v2233
    %3501 = vmatpush1.msra.mxu0 %v2232
    %3502 = vmatprep.subr.mxu0 %v2236
    %3503 = vmatpush1.msra.mxu0 %v2235
    %3504 = vmatprep.subr.mxu0 %v2239
    %3505 = vmatpush1.msra.mxu0 %v2238
    %3506 = vmatprep.subr.mxu0 %v2242
    %3507 = vmatpush1.msra.mxu0 %v2241
    %3508 = vmatprep.subr.mxu0 %v2245
    %3509 = vmatpush1.msra.mxu0 %v2244
    %3510 = vmatprep.subr.mxu0 %v2248
    %3511 = vmatpush1.msra.mxu0 %v2247
    %3512 = vmatprep.subr.mxu0 %v2251
    %3513 = vmatpush1.msra.mxu0 %v2250
    %3514 = vmatprep.subr.mxu0 %v2254
    %3515 = vmatpush1.msra.mxu0 %v2253
    %3516 = vmatprep.subr.mxu0 %v2257
    %3517 = vmatpush1.msra.mxu0 %v2256
    %3518 = vmatprep.subr.mxu0 %v2260
    %3519 = vmatpush1.msra.mxu0 %v2259
    %3520 = vmatprep.subr.mxu0 0.0
    %3521 = vmatpush1.msra.mxu0 0.0
    %3522 = vmatprep.subr.mxu0 0.0
    %3523 = vmatpush1.msra.mxu0 0.0
    %3524 = vmatprep.subr.mxu0 0.0
    %3525 = vmatpush1.msra.mxu0 0.0
    %3526 = vmatprep.subr.mxu0 0.0
    %3527 = vmatpush1.msra.mxu0 0.0
    %3528 = vmatprep.subr.mxu0 0.0
    %3529 = vmatpush1.msra.mxu0 0.0
    %3530 = vmatprep.subr.mxu0 0.0
    %3531 = vmatpush1.msra.mxu0 0.0
    %3532 = vmatprep.subr.mxu0 0.0
    %3533 = vmatpush1.msra.mxu0 0.0
    %3534 = vmatprep.subr.mxu0 0.0
    %3535 = vmatpush1.msra.mxu0 0.0
    %3536 = vmatprep.subr.mxu0 0.0
    %3537 = vmatpush1.msra.mxu0 0.0
    %3538 = vmatprep.subr.mxu0 0.0
    %3539 = vmatpush1.msra.mxu0 0.0
    %3540 = vmatprep.subr.mxu0 0.0
    %3541 = vmatpush1.msra.mxu0 0.0
    %3542 = vmatprep.subr.mxu0 0.0
    %3543 = vmatpush1.msra.mxu0 0.0
    %3544 = vmatprep.subr.mxu0 0.0
    %3545 = vmatpush1.msra.mxu0 0.0
    %3546 = vmatprep.subr.mxu0 0.0
    %3547 = vmatpush1.msra.mxu0 0.0
    %3548 = vmatprep.subr.mxu0 0.0
    %3549 = vmatpush1.msra.mxu0 0.0
    %3550 = vmatprep.subr.mxu0 0.0
    %3551 = vmatpush1.msra.mxu0 0.0
    %3552 = vmatprep.mubr.f32.mxu0 0.0
    %3553 = vmatmul.mubr.f32.gmra.mrb[0].mxu0 %v3415
    %v3554 = vpop.f32.mrb[0].mxu0
    %v3555 = vadd.f32 0.0, %v3554
    %v3556 = vpop.f32.mrb[0].mxu0
    %v3557 = vadd.f32 0.0, %v3556
    %3558 = vdwg.mxu0
    %3559 = vmatprep.subr.mxu0 0.0
    %3560 = vmatpush1.msra.mxu0 %v2216
    %3561 = vmatprep.subr.mxu0 0.0
    %3562 = vmatpush1.msra.mxu0 %v2219
    %3563 = vmatprep.subr.mxu0 0.0
    %3564 = vmatpush1.msra.mxu0 %v2222
    %3565 = vmatprep.subr.mxu0 0.0
    %3566 = vmatpush1.msra.mxu0 %v2225
    %3567 = vmatprep.subr.mxu0 0.0
    %3568 = vmatpush1.msra.mxu0 %v2228
    %3569 = vmatprep.subr.mxu0 0.0
    %3570 = vmatpush1.msra.mxu0 %v2231
    %3571 = vmatprep.subr.mxu0 0.0
    %3572 = vmatpush1.msra.mxu0 %v2234
    %3573 = vmatprep.subr.mxu0 0.0
    %3574 = vmatpush1.msra.mxu0 %v2237
    %3575 = vmatprep.subr.mxu0 0.0
    %3576 = vmatpush1.msra.mxu0 %v2240
    %3577 = vmatprep.subr.mxu0 0.0
    %3578 = vmatpush1.msra.mxu0 %v2243
    %3579 = vmatprep.subr.mxu0 0.0
    %3580 = vmatpush1.msra.mxu0 %v2246
    %3581 = vmatprep.subr.mxu0 0.0
    %3582 = vmatpush1.msra.mxu0 %v2249
    %3583 = vmatprep.subr.mxu0 0.0
    %3584 = vmatpush1.msra.mxu0 %v2252
    %3585 = vmatprep.subr.mxu0 0.0
    %3586 = vmatpush1.msra.mxu0 %v2255
    %3587 = vmatprep.subr.mxu0 0.0
    %3588 = vmatpush1.msra.mxu0 %v2258
    %3589 = vmatprep.subr.mxu0 0.0
    %3590 = vmatpush1.msra.mxu0 %v2261
    %3591 = vmatprep.subr.mxu0 0.0
    %3592 = vmatpush1.msra.mxu0 0.0
    %3593 = vmatprep.subr.mxu0 0.0
    %3594 = vmatpush1.msra.mxu0 0.0
    %3595 = vmatprep.subr.mxu0 0.0
    %3596 = vmatpush1.msra.mxu0 0.0
    %3597 = vmatprep.subr.mxu0 0.0
    %3598 = vmatpush1.msra.mxu0 0.0
    %3599 = vmatprep.subr.mxu0 0.0
    %3600 = vmatpush1.msra.mxu0 0.0
    %3601 = vmatprep.subr.mxu0 0.0
    %3602 = vmatpush1.msra.mxu0 0.0
    %3603 = vmatprep.subr.mxu0 0.0
    %3604 = vmatpush1.msra.mxu0 0.0
    %3605 = vmatprep.subr.mxu0 0.0
    %3606 = vmatpush1.msra.mxu0 0.0
    %3607 = vmatprep.subr.mxu0 0.0
    %3608 = vmatpush1.msra.mxu0 0.0
    %3609 = vmatprep.subr.mxu0 0.0
    %3610 = vmatpush1.msra.mxu0 0.0
    %3611 = vmatprep.subr.mxu0 0.0
    %3612 = vmatpush1.msra.mxu0 0.0
    %3613 = vmatprep.subr.mxu0 0.0
    %3614 = vmatpush1.msra.mxu0 0.0
    %3615 = vmatprep.subr.mxu0 0.0
    %3616 = vmatpush1.msra.mxu0 0.0
    %3617 = vmatprep.subr.mxu0 0.0
    %3618 = vmatpush1.msra.mxu0 0.0
    %3619 = vmatprep.subr.mxu0 0.0
    %3620 = vmatpush1.msra.mxu0 0.0
    %3621 = vmatprep.subr.mxu0 0.0
    %3622 = vmatpush1.msra.mxu0 0.0
    %3623 = vmatprep.mubr.f32.mxu0 0.0
    %3624 = vmatmul.mubr.f32.gmra.mrb[0].mxu0 %v3415
    %v3625 = vpop.f32.mrb[0].mxu0
    %v3626 = vadd.f32 0.0, %v3625
    %v3627 = vpop.f32.mrb[0].mxu0
    %3628 = vdwg.mxu0
    %v3629 = vld [vmem:[%s1484] sm:$0x3f]
    %v3632 = vcombine.low %v3555, %v3557
    %v3634 = vunpack.c.l.s4 1983009808
    %v3635 = vunpack.c.0.s8 %v3634
    %v3636 = vlaneseq
    %v3637 = vshrl.u32 %v3636, 7
    %v3638 = vsub.s32 %v3635, %v3637
    %v3639 = vrot.slane %v3632, %v3638
    %v3641 = vadd.f32 %v3629, %v3639
    %v3642 = vxor.u32 %v3641, 2147483648
    %v3643 = vmul.f32 %v3642, 1.442695
    %v3644 = vpow.pop %v3643
    %v3645 = vadd.f32 %v3644, 1.0
    %v3646 = vrcp.pop %v3645
    %v3647 = vmul.f32 1.0, %v3646
    %v3648 = vmul.f32 %v3647, %v3626
    %v3650 = vrot.slane %v3629, 4
    %v3652 = vadd.f32 %v3650, %v3648
    %v3653 = vtanh.pop %v3652
    %v3654 = vsub.f32 %v3415, %v3653
    %v3656 = vrot.slane %v3647, 2
    %v3658 = vmul.f32 %v3656, %v3654
    %v3659 = vadd.f32 %v3653, %v3658
    %3660 = vmatprep.subr.mxu0 0.0
    %3661 = vmatpush1.msra.mxu0 %v61
    %3662 = vmatprep.subr.mxu0 0.0
    %3663 = vmatpush1.msra.mxu0 %v62
    %3664 = vmatprep.subr.mxu0 0.0
    %3665 = vmatpush1.msra.mxu0 %v63
    %3666 = vmatprep.subr.mxu0 0.0
    %3667 = vmatpush1.msra.mxu0 %v64
    %3668 = vmatprep.subr.mxu0 0.0
    %3669 = vmatpush1.msra.mxu0 %v65
    %3670 = vmatprep.subr.mxu0 0.0
    %3671 = vmatpush1.msra.mxu0 %v66
    %3672 = vmatprep.subr.mxu0 0.0
    %3673 = vmatpush1.msra.mxu0 %v67
    %3674 = vmatprep.subr.mxu0 0.0
    %3675 = vmatpush1.msra.mxu0 %v68
    %3676 = vmatprep.subr.mxu0 0.0
    %3677 = vmatpush1.msra.mxu0 %v69
    %3678 = vmatprep.subr.mxu0 0.0
    %3679 = vmatpush1.msra.mxu0 %v70
    %3680 = vmatprep.subr.mxu0 0.0
    %3681 = vmatpush1.msra.mxu0 %v71
    %3682 = vmatprep.subr.mxu0 0.0
    %3683 = vmatpush1.msra.mxu0 %v72
    %3684 = vmatprep.subr.mxu0 0.0
    %3685 = vmatpush1.msra.mxu0 %v73
    %3686 = vmatprep.subr.mxu0 0.0
    %3687 = vmatpush1.msra.mxu0 %v74
    %3688 = vmatprep.subr.mxu0 0.0
    %3689 = vmatpush1.msra.mxu0 %v75
    %3690 = vmatprep.subr.mxu0 0.0
    %3691 = vmatpush1.msra.mxu0 %v76
    %3692 = vmatprep.subr.mxu0 0.0
    %3693 = vmatpush1.msra.mxu0 0.0
    %3694 = vmatprep.subr.mxu0 0.0
    %3695 = vmatpush1.msra.mxu0 0.0
    %3696 = vmatprep.subr.mxu0 0.0
    %3697 = vmatpush1.msra.mxu0 0.0
    %3698 = vmatprep.subr.mxu0 0.0
    %3699 = vmatpush1.msra.mxu0 0.0
    %3700 = vmatprep.subr.mxu0 0.0
    %3701 = vmatpush1.msra.mxu0 0.0
    %3702 = vmatprep.subr.mxu0 0.0
    %3703 = vmatpush1.msra.mxu0 0.0
    %3704 = vmatprep.subr.mxu0 0.0
    %3705 = vmatpush1.msra.mxu0 0.0
    %3706 = vmatprep.subr.mxu0 0.0
    %3707 = vmatpush1.msra.mxu0 0.0
    %3708 = vmatprep.subr.mxu0 0.0
    %3709 = vmatpush1.msra.mxu0 0.0
    %3710 = vmatprep.subr.mxu0 0.0
    %3711 = vmatpush1.msra.mxu0 0.0
    %3712 = vmatprep.subr.mxu0 0.0
    %3713 = vmatpush1.msra.mxu0 0.0
    %3714 = vmatprep.subr.mxu0 0.0
    %3715 = vmatpush1.msra.mxu0 0.0
    %3716 = vmatprep.subr.mxu0 0.0
    %3717 = vmatpush1.msra.mxu0 0.0
    %3718 = vmatprep.subr.mxu0 0.0
    %3719 = vmatpush1.msra.mxu0 0.0
    %3720 = vmatprep.subr.mxu0 0.0
    %3721 = vmatpush1.msra.mxu0 0.0
    %3722 = vmatprep.subr.mxu0 0.0
    %3723 = vmatpush1.msra.mxu0 0.0
    %3724 = vmatprep.mubr.f32.mxu0 0.0
    %3725 = vmatmul.mubr.f32.gmra.mrb[0].mxu0 %v3659
    %v3726 = vpop.f32.mrb[0].mxu0
    %v3727 = vadd.f32 %v2438, %v3726
    %v3728 = vpop.f32.mrb[0].mxu0
    %3729 = vdwg.mxu0
    %s3730 = scalar_lea.vmem %s5, 10
    %3731 = vst.msk [vmem:[%s3730] sm:$0x3] %vm2510, %v3727
    %3732 = vmatprep.subr.mxu0 %v2215
    %3733 = vmatpush1.msra.mxu0 %v2214
    %3734 = vmatprep.subr.mxu0 %v2218
    %3735 = vmatpush1.msra.mxu0 %v2217
    %3736 = vmatprep.subr.mxu0 %v2221
    %3737 = vmatpush1.msra.mxu0 %v2220
    %3738 = vmatprep.subr.mxu0 %v2224
    %3739 = vmatpush1.msra.mxu0 %v2223
    %3740 = vmatprep.subr.mxu0 %v2227
    %3741 = vmatpush1.msra.mxu0 %v2226
    %3742 = vmatprep.subr.mxu0 %v2230
    %3743 = vmatpush1.msra.mxu0 %v2229
    %3744 = vmatprep.subr.mxu0 %v2233
    %3745 = vmatpush1.msra.mxu0 %v2232
    %3746 = vmatprep.subr.mxu0 %v2236
    %3747 = vmatpush1.msra.mxu0 %v2235
    %3748 = vmatprep.subr.mxu0 %v2239
    %3749 = vmatpush1.msra.mxu0 %v2238
    %3750 = vmatprep.subr.mxu0 %v2242
    %3751 = vmatpush1.msra.mxu0 %v2241
    %3752 = vmatprep.subr.mxu0 %v2245
    %3753 = vmatpush1.msra.mxu0 %v2244
    %3754 = vmatprep.subr.mxu0 %v2248
    %3755 = vmatpush1.msra.mxu0 %v2247
    %3756 = vmatprep.subr.mxu0 %v2251
    %3757 = vmatpush1.msra.mxu0 %v2250
    %3758 = vmatprep.subr.mxu0 %v2254
    %3759 = vmatpush1.msra.mxu0 %v2253
    %3760 = vmatprep.subr.mxu0 %v2257
    %3761 = vmatpush1.msra.mxu0 %v2256
    %3762 = vmatprep.subr.mxu0 %v2260
    %3763 = vmatpush1.msra.mxu0 %v2259
    %3764 = vmatprep.subr.mxu0 0.0
    %3765 = vmatpush1.msra.mxu0 0.0
    %3766 = vmatprep.subr.mxu0 0.0
    %3767 = vmatpush1.msra.mxu0 0.0
    %3768 = vmatprep.subr.mxu0 0.0
    %3769 = vmatpush1.msra.mxu0 0.0
    %3770 = vmatprep.subr.mxu0 0.0
    %3771 = vmatpush1.msra.mxu0 0.0
    %3772 = vmatprep.subr.mxu0 0.0
    %3773 = vmatpush1.msra.mxu0 0.0
    %3774 = vmatprep.subr.mxu0 0.0
    %3775 = vmatpush1.msra.mxu0 0.0
    %3776 = vmatprep.subr.mxu0 0.0
    %3777 = vmatpush1.msra.mxu0 0.0
    %3778 = vmatprep.subr.mxu0 0.0
    %3779 = vmatpush1.msra.mxu0 0.0
    %3780 = vmatprep.subr.mxu0 0.0
    %3781 = vmatpush1.msra.mxu0 0.0
    %3782 = vmatprep.subr.mxu0 0.0
    %3783 = vmatpush1.msra.mxu0 0.0
    %3784 = vmatprep.subr.mxu0 0.0
    %3785 = vmatpush1.msra.mxu0 0.0
    %3786 = vmatprep.subr.mxu0 0.0
    %3787 = vmatpush1.msra.mxu0 0.0
    %3788 = vmatprep.subr.mxu0 0.0
    %3789 = vmatpush1.msra.mxu0 0.0
    %3790 = vmatprep.subr.mxu0 0.0
    %3791 = vmatpush1.msra.mxu0 0.0
    %3792 = vmatprep.subr.mxu0 0.0
    %3793 = vmatpush1.msra.mxu0 0.0
    %3794 = vmatprep.subr.mxu0 0.0
    %3795 = vmatpush1.msra.mxu0 0.0
    %3796 = vmatprep.mubr.f32.mxu0 0.0
    %3797 = vmatmul.mubr.f32.gmra.mrb[0].mxu0 %v3659
    %v3798 = vpop.f32.mrb[0].mxu0
    %v3799 = vadd.f32 0.0, %v3798
    %v3800 = vpop.f32.mrb[0].mxu0
    %v3801 = vadd.f32 0.0, %v3800
    %3802 = vdwg.mxu0
    %3803 = vmatprep.subr.mxu0 0.0
    %3804 = vmatpush1.msra.mxu0 %v2216
    %3805 = vmatprep.subr.mxu0 0.0
    %3806 = vmatpush1.msra.mxu0 %v2219
    %3807 = vmatprep.subr.mxu0 0.0
    %3808 = vmatpush1.msra.mxu0 %v2222
    %3809 = vmatprep.subr.mxu0 0.0
    %3810 = vmatpush1.msra.mxu0 %v2225
    %3811 = vmatprep.subr.mxu0 0.0
    %3812 = vmatpush1.msra.mxu0 %v2228
    %3813 = vmatprep.subr.mxu0 0.0
    %3814 = vmatpush1.msra.mxu0 %v2231
    %3815 = vmatprep.subr.mxu0 0.0
    %3816 = vmatpush1.msra.mxu0 %v2234
    %3817 = vmatprep.subr.mxu0 0.0
    %3818 = vmatpush1.msra.mxu0 %v2237
    %3819 = vmatprep.subr.mxu0 0.0
    %3820 = vmatpush1.msra.mxu0 %v2240
    %3821 = vmatprep.subr.mxu0 0.0
    %3822 = vmatpush1.msra.mxu0 %v2243
    %3823 = vmatprep.subr.mxu0 0.0
    %3824 = vmatpush1.msra.mxu0 %v2246
    %3825 = vmatprep.subr.mxu0 0.0
    %3826 = vmatpush1.msra.mxu0 %v2249
    %3827 = vmatprep.subr.mxu0 0.0
    %3828 = vmatpush1.msra.mxu0 %v2252
    %3829 = vmatprep.subr.mxu0 0.0
    %3830 = vmatpush1.msra.mxu0 %v2255
    %3831 = vmatprep.subr.mxu0 0.0
    %3832 = vmatpush1.msra.mxu0 %v2258
    %3833 = vmatprep.subr.mxu0 0.0
    %3834 = vmatpush1.msra.mxu0 %v2261
    %3835 = vmatprep.subr.mxu0 0.0
    %3836 = vmatpush1.msra.mxu0 0.0
    %3837 = vmatprep.subr.mxu0 0.0
    %3838 = vmatpush1.msra.mxu0 0.0
    %3839 = vmatprep.subr.mxu0 0.0
    %3840 = vmatpush1.msra.mxu0 0.0
    %3841 = vmatprep.subr.mxu0 0.0
    %3842 = vmatpush1.msra.mxu0 0.0
    %3843 = vmatprep.subr.mxu0 0.0
    %3844 = vmatpush1.msra.mxu0 0.0
    %3845 = vmatprep.subr.mxu0 0.0
    %3846 = vmatpush1.msra.mxu0 0.0
    %3847 = vmatprep.subr.mxu0 0.0
    %3848 = vmatpush1.msra.mxu0 0.0
    %3849 = vmatprep.subr.mxu0 0.0
    %3850 = vmatpush1.msra.mxu0 0.0
    %3851 = vmatprep.subr.mxu0 0.0
    %3852 = vmatpush1.msra.mxu0 0.0
    %3853 = vmatprep.subr.mxu0 0.0
    %3854 = vmatpush1.msra.mxu0 0.0
    %3855 = vmatprep.subr.mxu0 0.0
    %3856 = vmatpush1.msra.mxu0 0.0
    %3857 = vmatprep.subr.mxu0 0.0
    %3858 = vmatpush1.msra.mxu0 0.0
    %3859 = vmatprep.subr.mxu0 0.0
    %3860 = vmatpush1.msra.mxu0 0.0
    %3861 = vmatprep.subr.mxu0 0.0
    %3862 = vmatpush1.msra.mxu0 0.0
    %3863 = vmatprep.subr.mxu0 0.0
    %3864 = vmatpush1.msra.mxu0 0.0
    %3865 = vmatprep.subr.mxu0 0.0
    %3866 = vmatpush1.msra.mxu0 0.0
    %3867 = vmatprep.mubr.f32.mxu0 0.0
    %3868 = vmatmul.mubr.f32.gmra.mrb[0].mxu0 %v3659
    %v3869 = vpop.f32.mrb[0].mxu0
    %v3870 = vadd.f32 0.0, %v3869
    %v3871 = vpop.f32.mrb[0].mxu0
    %3872 = vdwg.mxu0
    %v3873 = vld [vmem:[%s1659] sm:$0x3f]
    %v3876 = vcombine.low %v3799, %v3801
    %v3878 = vunpack.c.l.s4 1983009808
    %v3879 = vunpack.c.0.s8 %v3878
    %v3880 = vlaneseq
    %v3881 = vshrl.u32 %v3880, 7
    %v3882 = vsub.s32 %v3879, %v3881
    %v3883 = vrot.slane %v3876, %v3882
    %v3885 = vadd.f32 %v3873, %v3883
    %v3886 = vxor.u32 %v3885, 2147483648
    %v3887 = vmul.f32 %v3886, 1.442695
    %v3888 = vpow.pop %v3887
    %v3889 = vadd.f32 %v3888, 1.0
    %v3890 = vrcp.pop %v3889
    %v3891 = vmul.f32 1.0, %v3890
    %v3892 = vmul.f32 %v3891, %v3870
    %v3894 = vrot.slane %v3873, 4
    %v3896 = vadd.f32 %v3894, %v3892
    %v3897 = vtanh.pop %v3896
    %v3898 = vsub.f32 %v3659, %v3897
    %v3900 = vrot.slane %v3891, 2
    %v3902 = vmul.f32 %v3900, %v3898
    %v3903 = vadd.f32 %v3897, %v3902
    %3904 = vmatprep.subr.mxu0 0.0
    %3905 = vmatpush1.msra.mxu0 %v61
    %3906 = vmatprep.subr.mxu0 0.0
    %3907 = vmatpush1.msra.mxu0 %v62
    %3908 = vmatprep.subr.mxu0 0.0
    %3909 = vmatpush1.msra.mxu0 %v63
    %3910 = vmatprep.subr.mxu0 0.0
    %3911 = vmatpush1.msra.mxu0 %v64
    %3912 = vmatprep.subr.mxu0 0.0
    %3913 = vmatpush1.msra.mxu0 %v65
    %3914 = vmatprep.subr.mxu0 0.0
    %3915 = vmatpush1.msra.mxu0 %v66
    %3916 = vmatprep.subr.mxu0 0.0
    %3917 = vmatpush1.msra.mxu0 %v67
    %3918 = vmatprep.subr.mxu0 0.0
    %3919 = vmatpush1.msra.mxu0 %v68
    %3920 = vmatprep.subr.mxu0 0.0
    %3921 = vmatpush1.msra.mxu0 %v69
    %3922 = vmatprep.subr.mxu0 0.0
    %3923 = vmatpush1.msra.mxu0 %v70
    %3924 = vmatprep.subr.mxu0 0.0
    %3925 = vmatpush1.msra.mxu0 %v71
    %3926 = vmatprep.subr.mxu0 0.0
    %3927 = vmatpush1.msra.mxu0 %v72
    %3928 = vmatprep.subr.mxu0 0.0
    %3929 = vmatpush1.msra.mxu0 %v73
    %3930 = vmatprep.subr.mxu0 0.0
    %3931 = vmatpush1.msra.mxu0 %v74
    %3932 = vmatprep.subr.mxu0 0.0
    %3933 = vmatpush1.msra.mxu0 %v75
    %3934 = vmatprep.subr.mxu0 0.0
    %3935 = vmatpush1.msra.mxu0 %v76
    %3936 = vmatprep.subr.mxu0 0.0
    %3937 = vmatpush1.msra.mxu0 0.0
    %3938 = vmatprep.subr.mxu0 0.0
    %3939 = vmatpush1.msra.mxu0 0.0
    %3940 = vmatprep.subr.mxu0 0.0
    %3941 = vmatpush1.msra.mxu0 0.0
    %3942 = vmatprep.subr.mxu0 0.0
    %3943 = vmatpush1.msra.mxu0 0.0
    %3944 = vmatprep.subr.mxu0 0.0
    %3945 = vmatpush1.msra.mxu0 0.0
    %3946 = vmatprep.subr.mxu0 0.0
    %3947 = vmatpush1.msra.mxu0 0.0
    %3948 = vmatprep.subr.mxu0 0.0
    %3949 = vmatpush1.msra.mxu0 0.0
    %3950 = vmatprep.subr.mxu0 0.0
    %3951 = vmatpush1.msra.mxu0 0.0
    %3952 = vmatprep.subr.mxu0 0.0
    %3953 = vmatpush1.msra.mxu0 0.0
    %3954 = vmatprep.subr.mxu0 0.0
    %3955 = vmatpush1.msra.mxu0 0.0
    %3956 = vmatprep.subr.mxu0 0.0
    %3957 = vmatpush1.msra.mxu0 0.0
    %3958 = vmatprep.subr.mxu0 0.0
    %3959 = vmatpush1.msra.mxu0 0.0
    %3960 = vmatprep.subr.mxu0 0.0
    %3961 = vmatpush1.msra.mxu0 0.0
    %3962 = vmatprep.subr.mxu0 0.0
    %3963 = vmatpush1.msra.mxu0 0.0
    %3964 = vmatprep.subr.mxu0 0.0
    %3965 = vmatpush1.msra.mxu0 0.0
    %3966 = vmatprep.subr.mxu0 0.0
    %3967 = vmatpush1.msra.mxu0 0.0
    %3968 = vmatprep.mubr.f32.mxu0 0.0
    %3969 = vmatmul.mubr.f32.gmra.mrb[0].mxu0 %v3903
    %v3970 = vpop.f32.mrb[0].mxu0
    %v3971 = vadd.f32 %v2438, %v3970
    %v3972 = vpop.f32.mrb[0].mxu0
    %3973 = vdwg.mxu0
    %s3974 = scalar_lea.vmem %s5, 12
    %3975 = vst.msk [vmem:[%s3974] sm:$0x3] %vm2510, %v3971
    %3976 = vmatprep.subr.mxu0 %v2215
    %3977 = vmatpush1.msra.mxu0 %v2214
    %3978 = vmatprep.subr.mxu0 %v2218
    %3979 = vmatpush1.msra.mxu0 %v2217
    %3980 = vmatprep.subr.mxu0 %v2221
    %3981 = vmatpush1.msra.mxu0 %v2220
    %3982 = vmatprep.subr.mxu0 %v2224
    %3983 = vmatpush1.msra.mxu0 %v2223
    %3984 = vmatprep.subr.mxu0 %v2227
    %3985 = vmatpush1.msra.mxu0 %v2226
    %3986 = vmatprep.subr.mxu0 %v2230
    %3987 = vmatpush1.msra.mxu0 %v2229
    %3988 = vmatprep.subr.mxu0 %v2233
    %3989 = vmatpush1.msra.mxu0 %v2232
    %3990 = vmatprep.subr.mxu0 %v2236
    %3991 = vmatpush1.msra.mxu0 %v2235
    %3992 = vmatprep.subr.mxu0 %v2239
    %3993 = vmatpush1.msra.mxu0 %v2238
    %3994 = vmatprep.subr.mxu0 %v2242
    %3995 = vmatpush1.msra.mxu0 %v2241
    %3996 = vmatprep.subr.mxu0 %v2245
    %3997 = vmatpush1.msra.mxu0 %v2244
    %3998 = vmatprep.subr.mxu0 %v2248
    %3999 = vmatpush1.msra.mxu0 %v2247
    %4000 = vmatprep.subr.mxu0 %v2251
    %4001 = vmatpush1.msra.mxu0 %v2250
    %4002 = vmatprep.subr.mxu0 %v2254
    %4003 = vmatpush1.msra.mxu0 %v2253
    %4004 = vmatprep.subr.mxu0 %v2257
    %4005 = vmatpush1.msra.mxu0 %v2256
    %4006 = vmatprep.subr.mxu0 %v2260
    %4007 = vmatpush1.msra.mxu0 %v2259
    %4008 = vmatprep.subr.mxu0 0.0
    %4009 = vmatpush1.msra.mxu0 0.0
    %4010 = vmatprep.subr.mxu0 0.0
    %4011 = vmatpush1.msra.mxu0 0.0
    %4012 = vmatprep.subr.mxu0 0.0
    %4013 = vmatpush1.msra.mxu0 0.0
    %4014 = vmatprep.subr.mxu0 0.0
    %4015 = vmatpush1.msra.mxu0 0.0
    %4016 = vmatprep.subr.mxu0 0.0
    %4017 = vmatpush1.msra.mxu0 0.0
    %4018 = vmatprep.subr.mxu0 0.0
    %4019 = vmatpush1.msra.mxu0 0.0
    %4020 = vmatprep.subr.mxu0 0.0
    %4021 = vmatpush1.msra.mxu0 0.0
    %4022 = vmatprep.subr.mxu0 0.0
    %4023 = vmatpush1.msra.mxu0 0.0
    %4024 = vmatprep.subr.mxu0 0.0
    %4025 = vmatpush1.msra.mxu0 0.0
    %4026 = vmatprep.subr.mxu0 0.0
    %4027 = vmatpush1.msra.mxu0 0.0
    %4028 = vmatprep.subr.mxu0 0.0
    %4029 = vmatpush1.msra.mxu0 0.0
    %4030 = vmatprep.subr.mxu0 0.0
    %4031 = vmatpush1.msra.mxu0 0.0
    %4032 = vmatprep.subr.mxu0 0.0
    %4033 = vmatpush1.msra.mxu0 0.0
    %4034 = vmatprep.subr.mxu0 0.0
    %4035 = vmatpush1.msra.mxu0 0.0
    %4036 = vmatprep.subr.mxu0 0.0
    %4037 = vmatpush1.msra.mxu0 0.0
    %4038 = vmatprep.subr.mxu0 0.0
    %4039 = vmatpush1.msra.mxu0 0.0
    %4040 = vmatprep.mubr.f32.mxu0 0.0
    %4041 = vmatmul.mubr.f32.gmra.mrb[0].mxu0 %v3903
    %v4042 = vpop.f32.mrb[0].mxu0
    %v4043 = vadd.f32 0.0, %v4042
    %v4044 = vpop.f32.mrb[0].mxu0
    %v4045 = vadd.f32 0.0, %v4044
    %4046 = vdwg.mxu0
    %4047 = vmatprep.subr.mxu0 0.0
    %4048 = vmatpush1.msra.mxu0 %v2216
    %4049 = vmatprep.subr.mxu0 0.0
    %4050 = vmatpush1.msra.mxu0 %v2219
    %4051 = vmatprep.subr.mxu0 0.0
    %4052 = vmatpush1.msra.mxu0 %v2222
    %4053 = vmatprep.subr.mxu0 0.0
    %4054 = vmatpush1.msra.mxu0 %v2225
    %4055 = vmatprep.subr.mxu0 0.0
    %4056 = vmatpush1.msra.mxu0 %v2228
    %4057 = vmatprep.subr.mxu0 0.0
    %4058 = vmatpush1.msra.mxu0 %v2231
    %4059 = vmatprep.subr.mxu0 0.0
    %4060 = vmatpush1.msra.mxu0 %v2234
    %4061 = vmatprep.subr.mxu0 0.0
    %4062 = vmatpush1.msra.mxu0 %v2237
    %4063 = vmatprep.subr.mxu0 0.0
    %4064 = vmatpush1.msra.mxu0 %v2240
    %4065 = vmatprep.subr.mxu0 0.0
    %4066 = vmatpush1.msra.mxu0 %v2243
    %4067 = vmatprep.subr.mxu0 0.0
    %4068 = vmatpush1.msra.mxu0 %v2246
    %4069 = vmatprep.subr.mxu0 0.0
    %4070 = vmatpush1.msra.mxu0 %v2249
    %4071 = vmatprep.subr.mxu0 0.0
    %4072 = vmatpush1.msra.mxu0 %v2252
    %4073 = vmatprep.subr.mxu0 0.0
    %4074 = vmatpush1.msra.mxu0 %v2255
    %4075 = vmatprep.subr.mxu0 0.0
    %4076 = vmatpush1.msra.mxu0 %v2258
    %4077 = vmatprep.subr.mxu0 0.0
    %4078 = vmatpush1.msra.mxu0 %v2261
    %4079 = vmatprep.subr.mxu0 0.0
    %4080 = vmatpush1.msra.mxu0 0.0
    %4081 = vmatprep.subr.mxu0 0.0
    %4082 = vmatpush1.msra.mxu0 0.0
    %4083 = vmatprep.subr.mxu0 0.0
    %4084 = vmatpush1.msra.mxu0 0.0
    %4085 = vmatprep.subr.mxu0 0.0
    %4086 = vmatpush1.msra.mxu0 0.0
    %4087 = vmatprep.subr.mxu0 0.0
    %4088 = vmatpush1.msra.mxu0 0.0
    %4089 = vmatprep.subr.mxu0 0.0
    %4090 = vmatpush1.msra.mxu0 0.0
    %4091 = vmatprep.subr.mxu0 0.0
    %4092 = vmatpush1.msra.mxu0 0.0
    %4093 = vmatprep.subr.mxu0 0.0
    %4094 = vmatpush1.msra.mxu0 0.0
    %4095 = vmatprep.subr.mxu0 0.0
    %4096 = vmatpush1.msra.mxu0 0.0
    %4097 = vmatprep.subr.mxu0 0.0
    %4098 = vmatpush1.msra.mxu0 0.0
    %4099 = vmatprep.subr.mxu0 0.0
    %4100 = vmatpush1.msra.mxu0 0.0
    %4101 = vmatprep.subr.mxu0 0.0
    %4102 = vmatpush1.msra.mxu0 0.0
    %4103 = vmatprep.subr.mxu0 0.0
    %4104 = vmatpush1.msra.mxu0 0.0
    %4105 = vmatprep.subr.mxu0 0.0
    %4106 = vmatpush1.msra.mxu0 0.0
    %4107 = vmatprep.subr.mxu0 0.0
    %4108 = vmatpush1.msra.mxu0 0.0
    %4109 = vmatprep.subr.mxu0 0.0
    %4110 = vmatpush1.msra.mxu0 0.0
    %4111 = vmatprep.mubr.f32.mxu0 0.0
    %4112 = vmatmul.mubr.f32.gmra.mrb[0].mxu0 %v3903
    %v4113 = vpop.f32.mrb[0].mxu0
    %v4114 = vadd.f32 0.0, %v4113
    %v4115 = vpop.f32.mrb[0].mxu0
    %4116 = vdwg.mxu0
    %v4117 = vld [vmem:[%s1834] sm:$0x3f]
    %v4120 = vcombine.low %v4043, %v4045
    %v4122 = vunpack.c.l.s4 1983009808
    %v4123 = vunpack.c.0.s8 %v4122
    %v4124 = vlaneseq
    %v4125 = vshrl.u32 %v4124, 7
    %v4126 = vsub.s32 %v4123, %v4125
    %v4127 = vrot.slane %v4120, %v4126
    %v4129 = vadd.f32 %v4117, %v4127
    %v4130 = vxor.u32 %v4129, 2147483648
    %v4131 = vmul.f32 %v4130, 1.442695
    %v4132 = vpow.pop %v4131
    %v4133 = vadd.f32 %v4132, 1.0
    %v4134 = vrcp.pop %v4133
    %v4135 = vmul.f32 1.0, %v4134
    %v4136 = vmul.f32 %v4135, %v4114
    %v4138 = vrot.slane %v4117, 4
    %v4140 = vadd.f32 %v4138, %v4136
    %v4141 = vtanh.pop %v4140
    %v4142 = vsub.f32 %v3903, %v4141
    %v4144 = vrot.slane %v4135, 2
    %v4146 = vmul.f32 %v4144, %v4142
    %v4147 = vadd.f32 %v4141, %v4146
    %4148 = vmatprep.subr.mxu0 0.0
    %4149 = vmatpush1.msra.mxu0 %v61
    %4150 = vmatprep.subr.mxu0 0.0
    %4151 = vmatpush1.msra.mxu0 %v62
    %4152 = vmatprep.subr.mxu0 0.0
    %4153 = vmatpush1.msra.mxu0 %v63
    %4154 = vmatprep.subr.mxu0 0.0
    %4155 = vmatpush1.msra.mxu0 %v64
    %4156 = vmatprep.subr.mxu0 0.0
    %4157 = vmatpush1.msra.mxu0 %v65
    %4158 = vmatprep.subr.mxu0 0.0
    %4159 = vmatpush1.msra.mxu0 %v66
    %4160 = vmatprep.subr.mxu0 0.0
    %4161 = vmatpush1.msra.mxu0 %v67
    %4162 = vmatprep.subr.mxu0 0.0
    %4163 = vmatpush1.msra.mxu0 %v68
    %4164 = vmatprep.subr.mxu0 0.0
    %4165 = vmatpush1.msra.mxu0 %v69
    %4166 = vmatprep.subr.mxu0 0.0
    %4167 = vmatpush1.msra.mxu0 %v70
    %4168 = vmatprep.subr.mxu0 0.0
    %4169 = vmatpush1.msra.mxu0 %v71
    %4170 = vmatprep.subr.mxu0 0.0
    %4171 = vmatpush1.msra.mxu0 %v72
    %4172 = vmatprep.subr.mxu0 0.0
    %4173 = vmatpush1.msra.mxu0 %v73
    %4174 = vmatprep.subr.mxu0 0.0
    %4175 = vmatpush1.msra.mxu0 %v74
    %4176 = vmatprep.subr.mxu0 0.0
    %4177 = vmatpush1.msra.mxu0 %v75
    %4178 = vmatprep.subr.mxu0 0.0
    %4179 = vmatpush1.msra.mxu0 %v76
    %4180 = vmatprep.subr.mxu0 0.0
    %4181 = vmatpush1.msra.mxu0 0.0
    %4182 = vmatprep.subr.mxu0 0.0
    %4183 = vmatpush1.msra.mxu0 0.0
    %4184 = vmatprep.subr.mxu0 0.0
    %4185 = vmatpush1.msra.mxu0 0.0
    %4186 = vmatprep.subr.mxu0 0.0
    %4187 = vmatpush1.msra.mxu0 0.0
    %4188 = vmatprep.subr.mxu0 0.0
    %4189 = vmatpush1.msra.mxu0 0.0
    %4190 = vmatprep.subr.mxu0 0.0
    %4191 = vmatpush1.msra.mxu0 0.0
    %4192 = vmatprep.subr.mxu0 0.0
    %4193 = vmatpush1.msra.mxu0 0.0
    %4194 = vmatprep.subr.mxu0 0.0
    %4195 = vmatpush1.msra.mxu0 0.0
    %4196 = vmatprep.subr.mxu0 0.0
    %4197 = vmatpush1.msra.mxu0 0.0
    %4198 = vmatprep.subr.mxu0 0.0
    %4199 = vmatpush1.msra.mxu0 0.0
    %4200 = vmatprep.subr.mxu0 0.0
    %4201 = vmatpush1.msra.mxu0 0.0
    %4202 = vmatprep.subr.mxu0 0.0
    %4203 = vmatpush1.msra.mxu0 0.0
    %4204 = vmatprep.subr.mxu0 0.0
    %4205 = vmatpush1.msra.mxu0 0.0
    %4206 = vmatprep.subr.mxu0 0.0
    %4207 = vmatpush1.msra.mxu0 0.0
    %4208 = vmatprep.subr.mxu0 0.0
    %4209 = vmatpush1.msra.mxu0 0.0
    %4210 = vmatprep.subr.mxu0 0.0
    %4211 = vmatpush1.msra.mxu0 0.0
    %4212 = vmatprep.mubr.f32.mxu0 0.0
    %4213 = vmatmul.mubr.f32.gmra.mrb[0].mxu0 %v4147
    %v4214 = vpop.f32.mrb[0].mxu0
    %v4215 = vadd.f32 %v2438, %v4214
    %v4216 = vpop.f32.mrb[0].mxu0
    %4217 = vdwg.mxu0
    %s4218 = scalar_lea.vmem %s5, 14
    %4219 = vst.msk [vmem:[%s4218] sm:$0x3] %vm2510, %v4215
    // Predicated region
    $region34: #{_gru4rec_forward.1} parent=1 // pred_check
      _
    $region35: #{_gru4rec_forward.1} parent=1 // pred_check_branch
      %4221 = sbr.rel (0) target = $region37
    $region36: #{_gru4rec_forward.1} parent=1 // pred_region
      _
    $region37: #{_gru4rec_forward.1} parent=1 // pred_fallthru
      _
    // Predicated region
    $region38: #{_gru4rec_forward.1} parent=1 // pred_check
      _
    $region39: #{_gru4rec_forward.1} parent=1 // pred_check_branch
      %4223 = sbr.rel (0) target = $region41
    $region40: #{_gru4rec_forward.1} parent=1 // pred_region
      _
    $region41: #{_gru4rec_forward.1} parent=1 // pred_fallthru
      _
    %4224 = vsyncpa [#allocation5], 1
    %4225 = vsyncpa [#allocation7], 1

</llo_original>
